<compile_context>
chip_gen: v7x
topology: tpu7x:2x2x1
jax: 0.10.0
libtpu: 0.0.40
codegen_flags: <defaults>
</compile_context>

<pallas_src>
import functools

import numpy as np

import jax
import jax.numpy as jnp
from jax.experimental import pallas as pl
from jax.experimental.pallas import tpu as pltpu


CHANNELS = (3, 8, 8, 16, 16, 32)   # reduced VGG19 channel progression (demo)


# ---------------------------------------------------------------------------
# Host-side constant construction (band matrices, bias rows, pool selectors)
# ---------------------------------------------------------------------------
def _band_matrices(w_hwio, W):
    """(3,3,Cin,Cout) conv weight -> (3, W*Cin, W*Cout) banded matrices.

    M[dy][ws*Cin+ci, w*Cout+co] = w[dy, dx, ci, co] with ws = w + dx - 1,
    entries for ws outside [0, W) omitted (== horizontal SAME zero padding).
    """
    _, _, cin, cout = w_hwio.shape
    m = np.zeros((3, W * cin, W * cout), np.float32)
    for dy in range(3):
        for dx in range(3):
            for w in range(W):
                ws = w + dx - 1
                if 0 <= ws < W:
                    m[dy, ws * cin:(ws + 1) * cin,
                      w * cout:(w + 1) * cout] = w_hwio[dy, dx]
    return m


def _col_pool_selectors(W, C):
    """0/1 matrices (W*C, (W//2)*C) selecting even / odd w-blocks."""
    Wo = W // 2
    se = np.zeros((W * C, Wo * C), np.float32)
    so = np.zeros((W * C, Wo * C), np.float32)
    for w2 in range(Wo):
        for c in range(C):
            se[(2 * w2) * C + c, w2 * C + c] = 1.0
            so[(2 * w2 + 1) * C + c, w2 * C + c] = 1.0
    return se, so


def _row_pool_selectors(H):
    """0/1 matrices (H//2, H) selecting even / odd rows."""
    Ho = H // 2
    re = np.zeros((Ho, H), np.float32)
    ro = np.zeros((Ho, H), np.float32)
    for h2 in range(Ho):
        re[h2, 2 * h2] = 1.0
        ro[h2, 2 * h2 + 1] = 1.0
    return re, ro


def init_params(key):
    """Deterministic (w_hwio, b) pairs for the 5 convolutions."""
    params = []
    for i in range(5):
        cin, cout = CHANNELS[i], CHANNELS[i + 1]
        key, kw, kb = jax.random.split(key, 3)
        w = jax.random.normal(kw, (3, 3, cin, cout), jnp.float32) * 0.15
        b = jax.random.normal(kb, (cout,), jnp.float32) * 0.05
        params.append((w, b))
    return params


def prepare_constants(params, H, W):
    """Build the 18 constant arrays the fused kernel consumes."""
    C = CHANNELS
    widths = (W, W, W // 2, W // 2, W // 4)
    consts = []
    for i, (w, b) in enumerate(params):
        Wi = widths[i]
        m = _band_matrices(np.asarray(w, np.float32), Wi)
        consts.append(jnp.asarray(m, jnp.bfloat16))           # bf16 MXU weights
        brow = np.tile(np.asarray(b, np.float32), Wi)[None, :]
        consts.append(jnp.asarray(brow, jnp.float32))          # f32 bias row
    c1e, c1o = _col_pool_selectors(W, C[2])
    r1e, r1o = _row_pool_selectors(H)
    c2e, c2o = _col_pool_selectors(W // 2, C[4])
    r2e, r2o = _row_pool_selectors(H // 2)
    consts += [jnp.asarray(a, jnp.float32)
               for a in (c1e, c1o, r1e, r1o, c2e, c2o, r2e, r2o)]
    return tuple(consts)


# ---------------------------------------------------------------------------
# Fused Pallas kernel: conv->relu->conv->relu->pool (x2) ->conv->relu
# ---------------------------------------------------------------------------
def _make_kernel(H, W):
    H2, H4 = H // 2, H // 4

    def kernel(x_ref,
               m1, b1, m2, b2, m3, b3, m4, b4, m5, b5,
               c1e, c1o, r1e, r1o, c2e, c2o, r2e, r2o,
               o_ref,
               p1, p2, p3, p4, p5):

        def conv(act, pad_ref, m_ref, b_ref, h):
            # act: (h, W*Cin) f32. pad_ref: (h+2, W*Cin) VMEM scratch.
            pad_ref[...] = jnp.zeros(pad_ref.shape, pad_ref.dtype)
            pad_ref[pl.ds(1, h), :] = act
            nout = m_ref.shape[-1]
            acc = jnp.zeros((h, nout), jnp.float32)
            for dy in range(3):                      # 3 fat MXU matmuls
                lhs = pad_ref[pl.ds(dy, h), :].astype(jnp.bfloat16)
                acc = acc + jnp.dot(lhs, m_ref[dy],
                                    preferred_element_type=jnp.float32)
            return jnp.maximum(acc + b_ref[...], 0.0)   # bias + ReLU (f32)

        def pool(act, ce, co, re, ro):
            # exact 2x2 max-pool via 0/1 selection matmuls + elementwise max.
            colp = jnp.maximum(
                jnp.dot(act, ce[...], preferred_element_type=jnp.float32),
                jnp.dot(act, co[...], preferred_element_type=jnp.float32))
            return jnp.maximum(
                jnp.dot(re[...], colp, preferred_element_type=jnp.float32),
                jnp.dot(ro[...], colp, preferred_element_type=jnp.float32))

        a = x_ref[0]                                 # (H,  W*3)
        a = conv(a, p1, m1, b1, H)                   # (H,  W*8)
        a = conv(a, p2, m2, b2, H)                   # (H,  W*8)
        a = pool(a, c1e, c1o, r1e, r1o)              # (H2, W2*8)
        a = conv(a, p3, m3, b3, H2)                  # (H2, W2*16)
        a = conv(a, p4, m4, b4, H2)                  # (H2, W2*16)
        a = pool(a, c2e, c2o, r2e, r2o)              # (H4, W4*16)
        a = conv(a, p5, m5, b5, H4)                  # (H4, W4*32)
        o_ref[0] = a.astype(o_ref.dtype)             # lane-dense (H4, W4*32)

    return kernel


def _fused_forward(x2d, consts):
    """x2d: (N, H, W*3) f32 slabs; returns (N, H//4, (W//4)*32) f32 slabs."""
    N, H, WC0 = x2d.shape
    C = CHANNELS
    W = WC0 // C[0]
    H4, W4 = H // 4, W // 4

    in_specs = [pl.BlockSpec((1, H, WC0), lambda n: (n, 0, 0))]
    for arr in consts:
        if arr.ndim == 2:
            in_specs.append(pl.BlockSpec(arr.shape, lambda n: (0, 0)))
        else:
            in_specs.append(pl.BlockSpec(arr.shape, lambda n: (0, 0, 0)))

    scratch = [
        pltpu.VMEM((H + 2, W * C[0]), jnp.float32),            # pad for conv1
        pltpu.VMEM((H + 2, W * C[1]), jnp.float32),            # pad for conv2
        pltpu.VMEM((H // 2 + 2, (W // 2) * C[2]), jnp.float32),  # conv3
        pltpu.VMEM((H // 2 + 2, (W // 2) * C[3]), jnp.float32),  # conv4
        pltpu.VMEM((H // 4 + 2, (W // 4) * C[4]), jnp.float32),  # conv5
    ]

    return pl.pallas_call(
        _make_kernel(H, W),
        out_shape=jax.ShapeDtypeStruct((N, H4, W4 * C[5]), jnp.float32),
        grid=(N,),
        in_specs=in_specs,
        out_specs=pl.BlockSpec((1, H4, W4 * C[5]), lambda n: (n, 0, 0)),
        scratch_shapes=scratch,
        compiler_params=pltpu.CompilerParams(
            dimension_semantics=("parallel",)),
    )(x2d, *consts)


@jax.jit
def feature_extractor(x_nchw, consts):
    """PyTorch-equivalent forward: NCHW in, NCHW (features[:12]) out."""
    N, C0, H, W = x_nchw.shape
    # NCHW -> lane-dense (N, H, W*C) slabs (layout plumbing in XLA-land).
    x2d = jnp.transpose(x_nchw, (0, 2, 3, 1)).reshape(N, H, W * C0)
    out2d = _fused_forward(x2d, consts)
    C5 = CHANNELS[-1]
    out = out2d.reshape(N, H // 4, W // 4, C5)
    return jnp.transpose(out, (0, 3, 1, 2))


# ---------------------------------------------------------------------------
# Pure-JAX reference (same structure) for a numerical sanity check
# ---------------------------------------------------------------------------
def reference_forward(x_nchw, params):
    x = jnp.transpose(x_nchw, (0, 2, 3, 1))

    def conv(x, w, b):
        y = jax.lax.conv_general_dilated(
            x, w, window_strides=(1, 1), padding="SAME",
            dimension_numbers=("NHWC", "HWIO", "NHWC"),
            precision=jax.lax.Precision.HIGHEST)
        return jnp.maximum(y + b[None, None, None, :], 0.0)

    def pool(x):
        n, h, w, c = x.shape
        return jnp.max(x.reshape(n, h // 2, 2, w // 2, 2, c), axis=(2, 4))

    (w1, b1), (w2, b2), (w3, b3), (w4, b4), (w5, b5) = params
    x = conv(x, w1, b1)
    x = conv(x, w2, b2)
    x = pool(x)
    x = conv(x, w3, b3)
    x = conv(x, w4, b4)
    x = pool(x)
    x = conv(x, w5, b5)
    return jnp.transpose(x, (0, 3, 1, 2))


if __name__ == "__main__":
    key = jax.random.PRNGKey(0)
    key, kx = jax.random.split(key)
    x = jax.random.normal(kx, (2, 3, 16, 16), jnp.float32)   # NCHW like torch
    params = init_params(key)
    consts = prepare_constants(params, 16, 16)

    out = feature_extractor(x, consts)
    out = jax.block_until_ready(out)

    assert out.shape == (2, CHANNELS[-1], 4, 4), out.shape
    assert bool(jnp.all(out >= 0.0))            # final layer is a ReLU

    # Loose numerical check vs pure-JAX reference (kernel uses bf16 matmuls).
    ref = reference_forward(x, params)
    scale = float(jnp.max(jnp.abs(ref)))
    err = float(jnp.max(jnp.abs(out - ref)))
    assert err <= 0.06 * scale + 1e-2, (err, scale)

    print("KERNEL_OK")
</pallas_src>

<mosaic_0001>
module attributes {stable_mosaic.version = 11 : i64} {
  func.func @kernel(%arg0: i32, %arg1: memref<1x16x48xf32, #tpu.memory_space<vmem>>, %arg2: memref<3x48x128xbf16, #tpu.memory_space<vmem>>, %arg3: memref<1x128xf32, #tpu.memory_space<vmem>>, %arg4: memref<3x128x128xbf16, #tpu.memory_space<vmem>>, %arg5: memref<1x128xf32, #tpu.memory_space<vmem>>, %arg6: memref<3x64x128xbf16, #tpu.memory_space<vmem>>, %arg7: memref<1x128xf32, #tpu.memory_space<vmem>>, %arg8: memref<3x128x128xbf16, #tpu.memory_space<vmem>>, %arg9: memref<1x128xf32, #tpu.memory_space<vmem>>, %arg10: memref<3x64x128xbf16, #tpu.memory_space<vmem>>, %arg11: memref<1x128xf32, #tpu.memory_space<vmem>>, %arg12: memref<128x64xf32, #tpu.memory_space<vmem>>, %arg13: memref<128x64xf32, #tpu.memory_space<vmem>>, %arg14: memref<8x16xf32, #tpu.memory_space<vmem>>, %arg15: memref<8x16xf32, #tpu.memory_space<vmem>>, %arg16: memref<128x64xf32, #tpu.memory_space<vmem>>, %arg17: memref<128x64xf32, #tpu.memory_space<vmem>>, %arg18: memref<4x8xf32, #tpu.memory_space<vmem>>, %arg19: memref<4x8xf32, #tpu.memory_space<vmem>>, %arg20: memref<1x4x128xf32, #tpu.memory_space<vmem>>, %arg21: memref<18x48xf32, #tpu.memory_space<vmem>>, %arg22: memref<18x128xf32, #tpu.memory_space<vmem>>, %arg23: memref<10x64xf32, #tpu.memory_space<vmem>>, %arg24: memref<10x128xf32, #tpu.memory_space<vmem>>, %arg25: memref<6x64xf32, #tpu.memory_space<vmem>>) attributes {dimension_semantics = [#tpu.dimension_semantics<parallel>], iteration_bounds = array<i64: 2>, scalar_prefetch = 0 : i64, scratch_operands = 5 : i64, tpu.core_type = #tpu.core_type<tc>, window_params = [{transform_indices = @transform_0, window_bounds = array<i64: 1, 16, 48>}, {pipeline_mode = #tpu.pipeline_mode<synchronous>, transform_indices = @transform_1, window_bounds = array<i64: 3, 48, 128>}, {pipeline_mode = #tpu.pipeline_mode<synchronous>, transform_indices = @transform_2, window_bounds = array<i64: 1, 128>}, {pipeline_mode = #tpu.pipeline_mode<synchronous>, transform_indices = @transform_3, window_bounds = array<i64: 3, 128, 128>}, {pipeline_mode = #tpu.pipeline_mode<synchronous>, transform_indices = @transform_4, window_bounds = array<i64: 1, 128>}, {pipeline_mode = #tpu.pipeline_mode<synchronous>, transform_indices = @transform_5, window_bounds = array<i64: 3, 64, 128>}, {pipeline_mode = #tpu.pipeline_mode<synchronous>, transform_indices = @transform_6, window_bounds = array<i64: 1, 128>}, {pipeline_mode = #tpu.pipeline_mode<synchronous>, transform_indices = @transform_7, window_bounds = array<i64: 3, 128, 128>}, {pipeline_mode = #tpu.pipeline_mode<synchronous>, transform_indices = @transform_8, window_bounds = array<i64: 1, 128>}, {pipeline_mode = #tpu.pipeline_mode<synchronous>, transform_indices = @transform_9, window_bounds = array<i64: 3, 64, 128>}, {pipeline_mode = #tpu.pipeline_mode<synchronous>, transform_indices = @transform_10, window_bounds = array<i64: 1, 128>}, {pipeline_mode = #tpu.pipeline_mode<synchronous>, transform_indices = @transform_11, window_bounds = array<i64: 128, 64>}, {pipeline_mode = #tpu.pipeline_mode<synchronous>, transform_indices = @transform_12, window_bounds = array<i64: 128, 64>}, {pipeline_mode = #tpu.pipeline_mode<synchronous>, transform_indices = @transform_13, window_bounds = array<i64: 8, 16>}, {pipeline_mode = #tpu.pipeline_mode<synchronous>, transform_indices = @transform_14, window_bounds = array<i64: 8, 16>}, {pipeline_mode = #tpu.pipeline_mode<synchronous>, transform_indices = @transform_15, window_bounds = array<i64: 128, 64>}, {pipeline_mode = #tpu.pipeline_mode<synchronous>, transform_indices = @transform_16, window_bounds = array<i64: 128, 64>}, {pipeline_mode = #tpu.pipeline_mode<synchronous>, transform_indices = @transform_17, window_bounds = array<i64: 4, 8>}, {pipeline_mode = #tpu.pipeline_mode<synchronous>, transform_indices = @transform_18, window_bounds = array<i64: 4, 8>}, {transform_indices = @transform_19, window_bounds = array<i64: 1, 4, 128>}]} {
    %c0 = arith.constant 0 : index
    %c0_0 = arith.constant 0 : index
    %c0_1 = arith.constant 0 : index
    %0 = vector.load %arg1[%c0, %c0_0, %c0_1] : memref<1x16x48xf32, #tpu.memory_space<vmem>>, vector<1x16x48xf32>
    %1 = vector.shape_cast %0 : vector<1x16x48xf32> to vector<16x48xf32>
    %cst = arith.constant 0.000000e+00 : f32
    %2 = vector.broadcast %cst : f32 to vector<18x48xf32>
    %c0_2 = arith.constant 0 : index
    %c0_3 = arith.constant 0 : index
    %3 = vector.load %arg21[%c0_2, %c0_3] : memref<18x48xf32, #tpu.memory_space<vmem>>, vector<18x48xf32>
    tpu.vector_store %arg21[%c0_2, %c0_3], %2 {strides = array<i32>} : memref<18x48xf32, #tpu.memory_space<vmem>>, vector<18x48xf32>,
    %c1 = arith.constant 1 : index
    %c0_4 = arith.constant 0 : index
    %4 = vector.load %arg21[%c1, %c0_4] : memref<18x48xf32, #tpu.memory_space<vmem>>, vector<16x48xf32>
    tpu.vector_store %arg21[%c1, %c0_4], %1 {strides = array<i32>} : memref<18x48xf32, #tpu.memory_space<vmem>>, vector<16x48xf32>,
    %cst_5 = arith.constant 0.000000e+00 : f32
    %5 = vector.broadcast %cst_5 : f32 to vector<16x128xf32>
    %c0_6 = arith.constant 0 : index
    %c0_7 = arith.constant 0 : index
    %6 = vector.load %arg21[%c0_6, %c0_7] : memref<18x48xf32, #tpu.memory_space<vmem>>, vector<16x48xf32>
    %7 = arith.truncf %6 : vector<16x48xf32> to vector<16x48xbf16>
    %c0_8 = arith.constant 0 : index
    %c0_9 = arith.constant 0 : index
    %c0_10 = arith.constant 0 : index
    %8 = vector.load %arg2[%c0_8, %c0_9, %c0_10] : memref<3x48x128xbf16, #tpu.memory_space<vmem>>, vector<1x48x128xbf16>
    %9 = vector.shape_cast %8 : vector<1x48x128xbf16> to vector<48x128xbf16>
    %cst_11 = arith.constant dense<0.000000e+00> : vector<16x128xf32>
    %10 = tpu.matmul %7, %9, %cst_11 {dimension_numbers = #tpu.dot_dimension_numbers<[1], [0], [0], [1], [0, 0, 1, 1], [], []>} : vector<16x48xbf16>, vector<48x128xbf16>, vector<16x128xf32> -> vector<16x128xf32>
    %11 = arith.addf %5, %10 : vector<16x128xf32>
    %c1_12 = arith.constant 1 : index
    %c0_13 = arith.constant 0 : index
    %12 = vector.load %arg21[%c1_12, %c0_13] : memref<18x48xf32, #tpu.memory_space<vmem>>, vector<16x48xf32>
    %13 = arith.truncf %12 : vector<16x48xf32> to vector<16x48xbf16>
    %c1_14 = arith.constant 1 : index
    %c0_15 = arith.constant 0 : index
    %c0_16 = arith.constant 0 : index
    %14 = vector.load %arg2[%c1_14, %c0_15, %c0_16] : memref<3x48x128xbf16, #tpu.memory_space<vmem>>, vector<1x48x128xbf16>
    %15 = vector.shape_cast %14 : vector<1x48x128xbf16> to vector<48x128xbf16>
    %cst_17 = arith.constant dense<0.000000e+00> : vector<16x128xf32>
    %16 = tpu.matmul %13, %15, %cst_17 {dimension_numbers = #tpu.dot_dimension_numbers<[1], [0], [0], [1], [0, 0, 1, 1], [], []>} : vector<16x48xbf16>, vector<48x128xbf16>, vector<16x128xf32> -> vector<16x128xf32>
    %17 = arith.addf %11, %16 : vector<16x128xf32>
    %c2 = arith.constant 2 : index
    %c0_18 = arith.constant 0 : index
    %18 = vector.load %arg21[%c2, %c0_18] : memref<18x48xf32, #tpu.memory_space<vmem>>, vector<16x48xf32>
    %19 = arith.truncf %18 : vector<16x48xf32> to vector<16x48xbf16>
    %c2_19 = arith.constant 2 : index
    %c0_20 = arith.constant 0 : index
    %c0_21 = arith.constant 0 : index
    %20 = vector.load %arg2[%c2_19, %c0_20, %c0_21] : memref<3x48x128xbf16, #tpu.memory_space<vmem>>, vector<1x48x128xbf16>
    %21 = vector.shape_cast %20 : vector<1x48x128xbf16> to vector<48x128xbf16>
    %cst_22 = arith.constant dense<0.000000e+00> : vector<16x128xf32>
    %22 = tpu.matmul %19, %21, %cst_22 {dimension_numbers = #tpu.dot_dimension_numbers<[1], [0], [0], [1], [0, 0, 1, 1], [], []>} : vector<16x48xbf16>, vector<48x128xbf16>, vector<16x128xf32> -> vector<16x128xf32>
    %23 = arith.addf %17, %22 : vector<16x128xf32>
    %c0_23 = arith.constant 0 : index
    %c0_24 = arith.constant 0 : index
    %24 = vector.load %arg3[%c0_23, %c0_24] : memref<1x128xf32, #tpu.memory_space<vmem>>, vector<1x128xf32>
    %25 = vector.broadcast %24 : vector<1x128xf32> to vector<16x128xf32>
    %26 = arith.addf %23, %25 : vector<16x128xf32>
    %cst_25 = arith.constant 0.000000e+00 : f32
    %27 = vector.broadcast %cst_25 : f32 to vector<16x128xf32>
    %28 = arith.maximumf %26, %27 : vector<16x128xf32>
    %cst_26 = arith.constant 0.000000e+00 : f32
    %29 = vector.broadcast %cst_26 : f32 to vector<18x128xf32>
    %c0_27 = arith.constant 0 : index
    %c0_28 = arith.constant 0 : index
    %30 = vector.load %arg22[%c0_27, %c0_28] : memref<18x128xf32, #tpu.memory_space<vmem>>, vector<18x128xf32>
    tpu.vector_store %arg22[%c0_27, %c0_28], %29 {strides = array<i32>} : memref<18x128xf32, #tpu.memory_space<vmem>>, vector<18x128xf32>,
    %c1_29 = arith.constant 1 : index
    %c0_30 = arith.constant 0 : index
    %31 = vector.load %arg22[%c1_29, %c0_30] : memref<18x128xf32, #tpu.memory_space<vmem>>, vector<16x128xf32>
    tpu.vector_store %arg22[%c1_29, %c0_30], %28 {strides = array<i32>} : memref<18x128xf32, #tpu.memory_space<vmem>>, vector<16x128xf32>,
    %cst_31 = arith.constant 0.000000e+00 : f32
    %32 = vector.broadcast %cst_31 : f32 to vector<16x128xf32>
    %c0_32 = arith.constant 0 : index
    %c0_33 = arith.constant 0 : index
    %33 = vector.load %arg22[%c0_32, %c0_33] : memref<18x128xf32, #tpu.memory_space<vmem>>, vector<16x128xf32>
    %34 = arith.truncf %33 : vector<16x128xf32> to vector<16x128xbf16>
    %c0_34 = arith.constant 0 : index
    %c0_35 = arith.constant 0 : index
    %c0_36 = arith.constant 0 : index
    %35 = vector.load %arg4[%c0_34, %c0_35, %c0_36] : memref<3x128x128xbf16, #tpu.memory_space<vmem>>, vector<1x128x128xbf16>
    %36 = vector.shape_cast %35 : vector<1x128x128xbf16> to vector<128x128xbf16>
    %cst_37 = arith.constant dense<0.000000e+00> : vector<16x128xf32>
    %37 = tpu.matmul %34, %36, %cst_37 {dimension_numbers = #tpu.dot_dimension_numbers<[1], [0], [0], [1], [0, 0, 1, 1], [], []>} : vector<16x128xbf16>, vector<128x128xbf16>, vector<16x128xf32> -> vector<16x128xf32>
    %38 = arith.addf %32, %37 : vector<16x128xf32>
    %c1_38 = arith.constant 1 : index
    %c0_39 = arith.constant 0 : index
    %39 = vector.load %arg22[%c1_38, %c0_39] : memref<18x128xf32, #tpu.memory_space<vmem>>, vector<16x128xf32>
    %40 = arith.truncf %39 : vector<16x128xf32> to vector<16x128xbf16>
    %c1_40 = arith.constant 1 : index
    %c0_41 = arith.constant 0 : index
    %c0_42 = arith.constant 0 : index
    %41 = vector.load %arg4[%c1_40, %c0_41, %c0_42] : memref<3x128x128xbf16, #tpu.memory_space<vmem>>, vector<1x128x128xbf16>
    %42 = vector.shape_cast %41 : vector<1x128x128xbf16> to vector<128x128xbf16>
    %cst_43 = arith.constant dense<0.000000e+00> : vector<16x128xf32>
    %43 = tpu.matmul %40, %42, %cst_43 {dimension_numbers = #tpu.dot_dimension_numbers<[1], [0], [0], [1], [0, 0, 1, 1], [], []>} : vector<16x128xbf16>, vector<128x128xbf16>, vector<16x128xf32> -> vector<16x128xf32>
    %44 = arith.addf %38, %43 : vector<16x128xf32>
    %c2_44 = arith.constant 2 : index
    %c0_45 = arith.constant 0 : index
    %45 = vector.load %arg22[%c2_44, %c0_45] : memref<18x128xf32, #tpu.memory_space<vmem>>, vector<16x128xf32>
    %46 = arith.truncf %45 : vector<16x128xf32> to vector<16x128xbf16>
    %c2_46 = arith.constant 2 : index
    %c0_47 = arith.constant 0 : index
    %c0_48 = arith.constant 0 : index
    %47 = vector.load %arg4[%c2_46, %c0_47, %c0_48] : memref<3x128x128xbf16, #tpu.memory_space<vmem>>, vector<1x128x128xbf16>
    %48 = vector.shape_cast %47 : vector<1x128x128xbf16> to vector<128x128xbf16>
    %cst_49 = arith.constant dense<0.000000e+00> : vector<16x128xf32>
    %49 = tpu.matmul %46, %48, %cst_49 {dimension_numbers = #tpu.dot_dimension_numbers<[1], [0], [0], [1], [0, 0, 1, 1], [], []>} : vector<16x128xbf16>, vector<128x128xbf16>, vector<16x128xf32> -> vector<16x128xf32>
    %50 = arith.addf %44, %49 : vector<16x128xf32>
    %c0_50 = arith.constant 0 : index
    %c0_51 = arith.constant 0 : index
    %51 = vector.load %arg5[%c0_50, %c0_51] : memref<1x128xf32, #tpu.memory_space<vmem>>, vector<1x128xf32>
    %52 = vector.broadcast %51 : vector<1x128xf32> to vector<16x128xf32>
    %53 = arith.addf %50, %52 : vector<16x128xf32>
    %cst_52 = arith.constant 0.000000e+00 : f32
    %54 = vector.broadcast %cst_52 : f32 to vector<16x128xf32>
    %55 = arith.maximumf %53, %54 : vector<16x128xf32>
    %c0_53 = arith.constant 0 : index
    %c0_54 = arith.constant 0 : index
    %56 = vector.load %arg12[%c0_53, %c0_54] : memref<128x64xf32, #tpu.memory_space<vmem>>, vector<128x64xf32>
    %cst_55 = arith.constant dense<0.000000e+00> : vector<16x64xf32>
    %57 = tpu.matmul %55, %56, %cst_55 {dimension_numbers = #tpu.dot_dimension_numbers<[1], [0], [0], [1], [0, 0, 1, 1], [], []>} : vector<16x128xf32>, vector<128x64xf32>, vector<16x64xf32> -> vector<16x64xf32>
    %c0_56 = arith.constant 0 : index
    %c0_57 = arith.constant 0 : index
    %58 = vector.load %arg13[%c0_56, %c0_57] : memref<128x64xf32, #tpu.memory_space<vmem>>, vector<128x64xf32>
    %cst_58 = arith.constant dense<0.000000e+00> : vector<16x64xf32>
    %59 = tpu.matmul %55, %58, %cst_58 {dimension_numbers = #tpu.dot_dimension_numbers<[1], [0], [0], [1], [0, 0, 1, 1], [], []>} : vector<16x128xf32>, vector<128x64xf32>, vector<16x64xf32> -> vector<16x64xf32>
    %60 = arith.maximumf %57, %59 : vector<16x64xf32>
    %c0_59 = arith.constant 0 : index
    %c0_60 = arith.constant 0 : index
    %61 = vector.load %arg14[%c0_59, %c0_60] : memref<8x16xf32, #tpu.memory_space<vmem>>, vector<8x16xf32>
    %cst_61 = arith.constant dense<0.000000e+00> : vector<8x64xf32>
    %62 = tpu.matmul %61, %60, %cst_61 {dimension_numbers = #tpu.dot_dimension_numbers<[1], [0], [0], [1], [0, 0, 1, 1], [], []>} : vector<8x16xf32>, vector<16x64xf32>, vector<8x64xf32> -> vector<8x64xf32>
    %c0_62 = arith.constant 0 : index
    %c0_63 = arith.constant 0 : index
    %63 = vector.load %arg15[%c0_62, %c0_63] : memref<8x16xf32, #tpu.memory_space<vmem>>, vector<8x16xf32>
    %cst_64 = arith.constant dense<0.000000e+00> : vector<8x64xf32>
    %64 = tpu.matmul %63, %60, %cst_64 {dimension_numbers = #tpu.dot_dimension_numbers<[1], [0], [0], [1], [0, 0, 1, 1], [], []>} : vector<8x16xf32>, vector<16x64xf32>, vector<8x64xf32> -> vector<8x64xf32>
    %65 = arith.maximumf %62, %64 : vector<8x64xf32>
    %cst_65 = arith.constant 0.000000e+00 : f32
    %66 = vector.broadcast %cst_65 : f32 to vector<10x64xf32>
    %c0_66 = arith.constant 0 : index
    %c0_67 = arith.constant 0 : index
    %67 = vector.load %arg23[%c0_66, %c0_67] : memref<10x64xf32, #tpu.memory_space<vmem>>, vector<10x64xf32>
    tpu.vector_store %arg23[%c0_66, %c0_67], %66 {strides = array<i32>} : memref<10x64xf32, #tpu.memory_space<vmem>>, vector<10x64xf32>,
    %c1_68 = arith.constant 1 : index
    %c0_69 = arith.constant 0 : index
    %68 = vector.load %arg23[%c1_68, %c0_69] : memref<10x64xf32, #tpu.memory_space<vmem>>, vector<8x64xf32>
    tpu.vector_store %arg23[%c1_68, %c0_69], %65 {strides = array<i32>} : memref<10x64xf32, #tpu.memory_space<vmem>>, vector<8x64xf32>,
    %cst_70 = arith.constant 0.000000e+00 : f32
    %69 = vector.broadcast %cst_70 : f32 to vector<8x128xf32>
    %c0_71 = arith.constant 0 : index
    %c0_72 = arith.constant 0 : index
    %70 = vector.load %arg23[%c0_71, %c0_72] : memref<10x64xf32, #tpu.memory_space<vmem>>, vector<8x64xf32>
    %71 = arith.truncf %70 : vector<8x64xf32> to vector<8x64xbf16>
    %c0_73 = arith.constant 0 : index
    %c0_74 = arith.constant 0 : index
    %c0_75 = arith.constant 0 : index
    %72 = vector.load %arg6[%c0_73, %c0_74, %c0_75] : memref<3x64x128xbf16, #tpu.memory_space<vmem>>, vector<1x64x128xbf16>
    %73 = vector.shape_cast %72 : vector<1x64x128xbf16> to vector<64x128xbf16>
    %cst_76 = arith.constant dense<0.000000e+00> : vector<8x128xf32>
    %74 = tpu.matmul %71, %73, %cst_76 {dimension_numbers = #tpu.dot_dimension_numbers<[1], [0], [0], [1], [0, 0, 1, 1], [], []>} : vector<8x64xbf16>, vector<64x128xbf16>, vector<8x128xf32> -> vector<8x128xf32>
    %75 = arith.addf %69, %74 : vector<8x128xf32>
    %c1_77 = arith.constant 1 : index
    %c0_78 = arith.constant 0 : index
    %76 = vector.load %arg23[%c1_77, %c0_78] : memref<10x64xf32, #tpu.memory_space<vmem>>, vector<8x64xf32>
    %77 = arith.truncf %76 : vector<8x64xf32> to vector<8x64xbf16>
    %c1_79 = arith.constant 1 : index
    %c0_80 = arith.constant 0 : index
    %c0_81 = arith.constant 0 : index
    %78 = vector.load %arg6[%c1_79, %c0_80, %c0_81] : memref<3x64x128xbf16, #tpu.memory_space<vmem>>, vector<1x64x128xbf16>
    %79 = vector.shape_cast %78 : vector<1x64x128xbf16> to vector<64x128xbf16>
    %cst_82 = arith.constant dense<0.000000e+00> : vector<8x128xf32>
    %80 = tpu.matmul %77, %79, %cst_82 {dimension_numbers = #tpu.dot_dimension_numbers<[1], [0], [0], [1], [0, 0, 1, 1], [], []>} : vector<8x64xbf16>, vector<64x128xbf16>, vector<8x128xf32> -> vector<8x128xf32>
    %81 = arith.addf %75, %80 : vector<8x128xf32>
    %c2_83 = arith.constant 2 : index
    %c0_84 = arith.constant 0 : index
    %82 = vector.load %arg23[%c2_83, %c0_84] : memref<10x64xf32, #tpu.memory_space<vmem>>, vector<8x64xf32>
    %83 = arith.truncf %82 : vector<8x64xf32> to vector<8x64xbf16>
    %c2_85 = arith.constant 2 : index
    %c0_86 = arith.constant 0 : index
    %c0_87 = arith.constant 0 : index
    %84 = vector.load %arg6[%c2_85, %c0_86, %c0_87] : memref<3x64x128xbf16, #tpu.memory_space<vmem>>, vector<1x64x128xbf16>
    %85 = vector.shape_cast %84 : vector<1x64x128xbf16> to vector<64x128xbf16>
    %cst_88 = arith.constant dense<0.000000e+00> : vector<8x128xf32>
    %86 = tpu.matmul %83, %85, %cst_88 {dimension_numbers = #tpu.dot_dimension_numbers<[1], [0], [0], [1], [0, 0, 1, 1], [], []>} : vector<8x64xbf16>, vector<64x128xbf16>, vector<8x128xf32> -> vector<8x128xf32>
    %87 = arith.addf %81, %86 : vector<8x128xf32>
    %c0_89 = arith.constant 0 : index
    %c0_90 = arith.constant 0 : index
    %88 = vector.load %arg7[%c0_89, %c0_90] : memref<1x128xf32, #tpu.memory_space<vmem>>, vector<1x128xf32>
    %89 = vector.broadcast %88 : vector<1x128xf32> to vector<8x128xf32>
    %90 = arith.addf %87, %89 : vector<8x128xf32>
    %cst_91 = arith.constant 0.000000e+00 : f32
    %91 = vector.broadcast %cst_91 : f32 to vector<8x128xf32>
    %92 = arith.maximumf %90, %91 : vector<8x128xf32>
    %cst_92 = arith.constant 0.000000e+00 : f32
    %93 = vector.broadcast %cst_92 : f32 to vector<10x128xf32>
    %c0_93 = arith.constant 0 : index
    %c0_94 = arith.constant 0 : index
    %94 = vector.load %arg24[%c0_93, %c0_94] : memref<10x128xf32, #tpu.memory_space<vmem>>, vector<10x128xf32>
    tpu.vector_store %arg24[%c0_93, %c0_94], %93 {strides = array<i32>} : memref<10x128xf32, #tpu.memory_space<vmem>>, vector<10x128xf32>,
    %c1_95 = arith.constant 1 : index
    %c0_96 = arith.constant 0 : index
    %95 = vector.load %arg24[%c1_95, %c0_96] : memref<10x128xf32, #tpu.memory_space<vmem>>, vector<8x128xf32>
    tpu.vector_store %arg24[%c1_95, %c0_96], %92 {strides = array<i32>} : memref<10x128xf32, #tpu.memory_space<vmem>>, vector<8x128xf32>,
    %cst_97 = arith.constant 0.000000e+00 : f32
    %96 = vector.broadcast %cst_97 : f32 to vector<8x128xf32>
    %c0_98 = arith.constant 0 : index
    %c0_99 = arith.constant 0 : index
    %97 = vector.load %arg24[%c0_98, %c0_99] : memref<10x128xf32, #tpu.memory_space<vmem>>, vector<8x128xf32>
    %98 = arith.truncf %97 : vector<8x128xf32> to vector<8x128xbf16>
    %c0_100 = arith.constant 0 : index
    %c0_101 = arith.constant 0 : index
    %c0_102 = arith.constant 0 : index
    %99 = vector.load %arg8[%c0_100, %c0_101, %c0_102] : memref<3x128x128xbf16, #tpu.memory_space<vmem>>, vector<1x128x128xbf16>
    %100 = vector.shape_cast %99 : vector<1x128x128xbf16> to vector<128x128xbf16>
    %cst_103 = arith.constant dense<0.000000e+00> : vector<8x128xf32>
    %101 = tpu.matmul %98, %100, %cst_103 {dimension_numbers = #tpu.dot_dimension_numbers<[1], [0], [0], [1], [0, 0, 1, 1], [], []>} : vector<8x128xbf16>, vector<128x128xbf16>, vector<8x128xf32> -> vector<8x128xf32>
    %102 = arith.addf %96, %101 : vector<8x128xf32>
    %c1_104 = arith.constant 1 : index
    %c0_105 = arith.constant 0 : index
    %103 = vector.load %arg24[%c1_104, %c0_105] : memref<10x128xf32, #tpu.memory_space<vmem>>, vector<8x128xf32>
    %104 = arith.truncf %103 : vector<8x128xf32> to vector<8x128xbf16>
    %c1_106 = arith.constant 1 : index
    %c0_107 = arith.constant 0 : index
    %c0_108 = arith.constant 0 : index
    %105 = vector.load %arg8[%c1_106, %c0_107, %c0_108] : memref<3x128x128xbf16, #tpu.memory_space<vmem>>, vector<1x128x128xbf16>
    %106 = vector.shape_cast %105 : vector<1x128x128xbf16> to vector<128x128xbf16>
    %cst_109 = arith.constant dense<0.000000e+00> : vector<8x128xf32>
    %107 = tpu.matmul %104, %106, %cst_109 {dimension_numbers = #tpu.dot_dimension_numbers<[1], [0], [0], [1], [0, 0, 1, 1], [], []>} : vector<8x128xbf16>, vector<128x128xbf16>, vector<8x128xf32> -> vector<8x128xf32>
    %108 = arith.addf %102, %107 : vector<8x128xf32>
    %c2_110 = arith.constant 2 : index
    %c0_111 = arith.constant 0 : index
    %109 = vector.load %arg24[%c2_110, %c0_111] : memref<10x128xf32, #tpu.memory_space<vmem>>, vector<8x128xf32>
    %110 = arith.truncf %109 : vector<8x128xf32> to vector<8x128xbf16>
    %c2_112 = arith.constant 2 : index
    %c0_113 = arith.constant 0 : index
    %c0_114 = arith.constant 0 : index
    %111 = vector.load %arg8[%c2_112, %c0_113, %c0_114] : memref<3x128x128xbf16, #tpu.memory_space<vmem>>, vector<1x128x128xbf16>
    %112 = vector.shape_cast %111 : vector<1x128x128xbf16> to vector<128x128xbf16>
    %cst_115 = arith.constant dense<0.000000e+00> : vector<8x128xf32>
    %113 = tpu.matmul %110, %112, %cst_115 {dimension_numbers = #tpu.dot_dimension_numbers<[1], [0], [0], [1], [0, 0, 1, 1], [], []>} : vector<8x128xbf16>, vector<128x128xbf16>, vector<8x128xf32> -> vector<8x128xf32>
    %114 = arith.addf %108, %113 : vector<8x128xf32>
    %c0_116 = arith.constant 0 : index
    %c0_117 = arith.constant 0 : index
    %115 = vector.load %arg9[%c0_116, %c0_117] : memref<1x128xf32, #tpu.memory_space<vmem>>, vector<1x128xf32>
    %116 = vector.broadcast %115 : vector<1x128xf32> to vector<8x128xf32>
    %117 = arith.addf %114, %116 : vector<8x128xf32>
    %cst_118 = arith.constant 0.000000e+00 : f32
    %118 = vector.broadcast %cst_118 : f32 to vector<8x128xf32>
    %119 = arith.maximumf %117, %118 : vector<8x128xf32>
    %c0_119 = arith.constant 0 : index
    %c0_120 = arith.constant 0 : index
    %120 = vector.load %arg16[%c0_119, %c0_120] : memref<128x64xf32, #tpu.memory_space<vmem>>, vector<128x64xf32>
    %cst_121 = arith.constant dense<0.000000e+00> : vector<8x64xf32>
    %121 = tpu.matmul %119, %120, %cst_121 {dimension_numbers = #tpu.dot_dimension_numbers<[1], [0], [0], [1], [0, 0, 1, 1], [], []>} : vector<8x128xf32>, vector<128x64xf32>, vector<8x64xf32> -> vector<8x64xf32>
    %c0_122 = arith.constant 0 : index
    %c0_123 = arith.constant 0 : index
    %122 = vector.load %arg17[%c0_122, %c0_123] : memref<128x64xf32, #tpu.memory_space<vmem>>, vector<128x64xf32>
    %cst_124 = arith.constant dense<0.000000e+00> : vector<8x64xf32>
    %123 = tpu.matmul %119, %122, %cst_124 {dimension_numbers = #tpu.dot_dimension_numbers<[1], [0], [0], [1], [0, 0, 1, 1], [], []>} : vector<8x128xf32>, vector<128x64xf32>, vector<8x64xf32> -> vector<8x64xf32>
    %124 = arith.maximumf %121, %123 : vector<8x64xf32>
    %c0_125 = arith.constant 0 : index
    %c0_126 = arith.constant 0 : index
    %125 = vector.load %arg18[%c0_125, %c0_126] : memref<4x8xf32, #tpu.memory_space<vmem>>, vector<4x8xf32>
    %cst_127 = arith.constant dense<0.000000e+00> : vector<4x64xf32>
    %126 = tpu.matmul %125, %124, %cst_127 {dimension_numbers = #tpu.dot_dimension_numbers<[1], [0], [0], [1], [0, 0, 1, 1], [], []>} : vector<4x8xf32>, vector<8x64xf32>, vector<4x64xf32> -> vector<4x64xf32>
    %c0_128 = arith.constant 0 : index
    %c0_129 = arith.constant 0 : index
    %127 = vector.load %arg19[%c0_128, %c0_129] : memref<4x8xf32, #tpu.memory_space<vmem>>, vector<4x8xf32>
    %cst_130 = arith.constant dense<0.000000e+00> : vector<4x64xf32>
    %128 = tpu.matmul %127, %124, %cst_130 {dimension_numbers = #tpu.dot_dimension_numbers<[1], [0], [0], [1], [0, 0, 1, 1], [], []>} : vector<4x8xf32>, vector<8x64xf32>, vector<4x64xf32> -> vector<4x64xf32>
    %129 = arith.maximumf %126, %128 : vector<4x64xf32>
    %cst_131 = arith.constant 0.000000e+00 : f32
    %130 = vector.broadcast %cst_131 : f32 to vector<6x64xf32>
    %c0_132 = arith.constant 0 : index
    %c0_133 = arith.constant 0 : index
    %131 = vector.load %arg25[%c0_132, %c0_133] : memref<6x64xf32, #tpu.memory_space<vmem>>, vector<6x64xf32>
    tpu.vector_store %arg25[%c0_132, %c0_133], %130 {strides = array<i32>} : memref<6x64xf32, #tpu.memory_space<vmem>>, vector<6x64xf32>,
    %c1_134 = arith.constant 1 : index
    %c0_135 = arith.constant 0 : index
    %132 = vector.load %arg25[%c1_134, %c0_135] : memref<6x64xf32, #tpu.memory_space<vmem>>, vector<4x64xf32>
    tpu.vector_store %arg25[%c1_134, %c0_135], %129 {strides = array<i32>} : memref<6x64xf32, #tpu.memory_space<vmem>>, vector<4x64xf32>,
    %cst_136 = arith.constant 0.000000e+00 : f32
    %133 = vector.broadcast %cst_136 : f32 to vector<4x128xf32>
    %c0_137 = arith.constant 0 : index
    %c0_138 = arith.constant 0 : index
    %134 = vector.load %arg25[%c0_137, %c0_138] : memref<6x64xf32, #tpu.memory_space<vmem>>, vector<4x64xf32>
    %135 = arith.truncf %134 : vector<4x64xf32> to vector<4x64xbf16>
    %c0_139 = arith.constant 0 : index
    %c0_140 = arith.constant 0 : index
    %c0_141 = arith.constant 0 : index
    %136 = vector.load %arg10[%c0_139, %c0_140, %c0_141] : memref<3x64x128xbf16, #tpu.memory_space<vmem>>, vector<1x64x128xbf16>
    %137 = vector.shape_cast %136 : vector<1x64x128xbf16> to vector<64x128xbf16>
    %cst_142 = arith.constant dense<0.000000e+00> : vector<4x128xf32>
    %138 = tpu.matmul %135, %137, %cst_142 {dimension_numbers = #tpu.dot_dimension_numbers<[1], [0], [0], [1], [0, 0, 1, 1], [], []>} : vector<4x64xbf16>, vector<64x128xbf16>, vector<4x128xf32> -> vector<4x128xf32>
    %139 = arith.addf %133, %138 : vector<4x128xf32>
    %c1_143 = arith.constant 1 : index
    %c0_144 = arith.constant 0 : index
    %140 = vector.load %arg25[%c1_143, %c0_144] : memref<6x64xf32, #tpu.memory_space<vmem>>, vector<4x64xf32>
    %141 = arith.truncf %140 : vector<4x64xf32> to vector<4x64xbf16>
    %c1_145 = arith.constant 1 : index
    %c0_146 = arith.constant 0 : index
    %c0_147 = arith.constant 0 : index
    %142 = vector.load %arg10[%c1_145, %c0_146, %c0_147] : memref<3x64x128xbf16, #tpu.memory_space<vmem>>, vector<1x64x128xbf16>
    %143 = vector.shape_cast %142 : vector<1x64x128xbf16> to vector<64x128xbf16>
    %cst_148 = arith.constant dense<0.000000e+00> : vector<4x128xf32>
    %144 = tpu.matmul %141, %143, %cst_148 {dimension_numbers = #tpu.dot_dimension_numbers<[1], [0], [0], [1], [0, 0, 1, 1], [], []>} : vector<4x64xbf16>, vector<64x128xbf16>, vector<4x128xf32> -> vector<4x128xf32>
    %145 = arith.addf %139, %144 : vector<4x128xf32>
    %c2_149 = arith.constant 2 : index
    %c0_150 = arith.constant 0 : index
    %146 = vector.load %arg25[%c2_149, %c0_150] : memref<6x64xf32, #tpu.memory_space<vmem>>, vector<4x64xf32>
    %147 = arith.truncf %146 : vector<4x64xf32> to vector<4x64xbf16>
    %c2_151 = arith.constant 2 : index
    %c0_152 = arith.constant 0 : index
    %c0_153 = arith.constant 0 : index
    %148 = vector.load %arg10[%c2_151, %c0_152, %c0_153] : memref<3x64x128xbf16, #tpu.memory_space<vmem>>, vector<1x64x128xbf16>
    %149 = vector.shape_cast %148 : vector<1x64x128xbf16> to vector<64x128xbf16>
    %cst_154 = arith.constant dense<0.000000e+00> : vector<4x128xf32>
    %150 = tpu.matmul %147, %149, %cst_154 {dimension_numbers = #tpu.dot_dimension_numbers<[1], [0], [0], [1], [0, 0, 1, 1], [], []>} : vector<4x64xbf16>, vector<64x128xbf16>, vector<4x128xf32> -> vector<4x128xf32>
    %151 = arith.addf %145, %150 : vector<4x128xf32>
    %c0_155 = arith.constant 0 : index
    %c0_156 = arith.constant 0 : index
    %152 = vector.load %arg11[%c0_155, %c0_156] : memref<1x128xf32, #tpu.memory_space<vmem>>, vector<1x128xf32>
    %153 = vector.broadcast %152 : vector<1x128xf32> to vector<4x128xf32>
    %154 = arith.addf %151, %153 : vector<4x128xf32>
    %cst_157 = arith.constant 0.000000e+00 : f32
    %155 = vector.broadcast %cst_157 : f32 to vector<4x128xf32>
    %156 = arith.maximumf %154, %155 : vector<4x128xf32>
    %c0_158 = arith.constant 0 : index
    %c0_159 = arith.constant 0 : index
    %c0_160 = arith.constant 0 : index
    %157 = vector.load %arg20[%c0_158, %c0_159, %c0_160] : memref<1x4x128xf32, #tpu.memory_space<vmem>>, vector<1x4x128xf32>
    %158 = vector.shape_cast %157 : vector<1x4x128xf32> to vector<4x128xf32>
    %159 = vector.shape_cast %156 : vector<4x128xf32> to vector<1x4x128xf32>
    tpu.vector_store %arg20[%c0_158, %c0_159, %c0_160], %159 {strides = array<i32>} : memref<1x4x128xf32, #tpu.memory_space<vmem>>, vector<1x4x128xf32>,
    return
  }
  func.func @transform_0(%arg0: i32) -> (i32, i32, i32) {
    %c0_i32 = arith.constant 0 : i32
    %c0_i32_0 = arith.constant 0 : i32
    %c0_i32_1 = arith.constant 0 : i32
    return %arg0, %c0_i32, %c0_i32_0 : i32, i32, i32
  }
  func.func @transform_1(%arg0: i32) -> (i32, i32, i32) {
    %c0_i32 = arith.constant 0 : i32
    %c0_i32_0 = arith.constant 0 : i32
    %c0_i32_1 = arith.constant 0 : i32
    %c0_i32_2 = arith.constant 0 : i32
    return %c0_i32, %c0_i32_0, %c0_i32_1 : i32, i32, i32
  }
  func.func @transform_2(%arg0: i32) -> (i32, i32) {
    %c0_i32 = arith.constant 0 : i32
    %c0_i32_0 = arith.constant 0 : i32
    %c0_i32_1 = arith.constant 0 : i32
    return %c0_i32, %c0_i32_0 : i32, i32
  }
  func.func @transform_3(%arg0: i32) -> (i32, i32, i32) {
    %c0_i32 = arith.constant 0 : i32
    %c0_i32_0 = arith.constant 0 : i32
    %c0_i32_1 = arith.constant 0 : i32
    %c0_i32_2 = arith.constant 0 : i32
    return %c0_i32, %c0_i32_0, %c0_i32_1 : i32, i32, i32
  }
  func.func @transform_4(%arg0: i32) -> (i32, i32) {
    %c0_i32 = arith.constant 0 : i32
    %c0_i32_0 = arith.constant 0 : i32
    %c0_i32_1 = arith.constant 0 : i32
    return %c0_i32, %c0_i32_0 : i32, i32
  }
  func.func @transform_5(%arg0: i32) -> (i32, i32, i32) {
    %c0_i32 = arith.constant 0 : i32
    %c0_i32_0 = arith.constant 0 : i32
    %c0_i32_1 = arith.constant 0 : i32
    %c0_i32_2 = arith.constant 0 : i32
    return %c0_i32, %c0_i32_0, %c0_i32_1 : i32, i32, i32
  }
  func.func @transform_6(%arg0: i32) -> (i32, i32) {
    %c0_i32 = arith.constant 0 : i32
    %c0_i32_0 = arith.constant 0 : i32
    %c0_i32_1 = arith.constant 0 : i32
    return %c0_i32, %c0_i32_0 : i32, i32
  }
  func.func @transform_7(%arg0: i32) -> (i32, i32, i32) {
    %c0_i32 = arith.constant 0 : i32
    %c0_i32_0 = arith.constant 0 : i32
    %c0_i32_1 = arith.constant 0 : i32
    %c0_i32_2 = arith.constant 0 : i32
    return %c0_i32, %c0_i32_0, %c0_i32_1 : i32, i32, i32
  }
  func.func @transform_8(%arg0: i32) -> (i32, i32) {
    %c0_i32 = arith.constant 0 : i32
    %c0_i32_0 = arith.constant 0 : i32
    %c0_i32_1 = arith.constant 0 : i32
    return %c0_i32, %c0_i32_0 : i32, i32
  }
  func.func @transform_9(%arg0: i32) -> (i32, i32, i32) {
    %c0_i32 = arith.constant 0 : i32
    %c0_i32_0 = arith.constant 0 : i32
    %c0_i32_1 = arith.constant 0 : i32
    %c0_i32_2 = arith.constant 0 : i32
    return %c0_i32, %c0_i32_0, %c0_i32_1 : i32, i32, i32
  }
  func.func @transform_10(%arg0: i32) -> (i32, i32) {
    %c0_i32 = arith.constant 0 : i32
    %c0_i32_0 = arith.constant 0 : i32
    %c0_i32_1 = arith.constant 0 : i32
    return %c0_i32, %c0_i32_0 : i32, i32
  }
  func.func @transform_11(%arg0: i32) -> (i32, i32) {
    %c0_i32 = arith.constant 0 : i32
    %c0_i32_0 = arith.constant 0 : i32
    %c0_i32_1 = arith.constant 0 : i32
    return %c0_i32, %c0_i32_0 : i32, i32
  }
  func.func @transform_12(%arg0: i32) -> (i32, i32) {
    %c0_i32 = arith.constant 0 : i32
    %c0_i32_0 = arith.constant 0 : i32
    %c0_i32_1 = arith.constant 0 : i32
    return %c0_i32, %c0_i32_0 : i32, i32
  }
  func.func @transform_13(%arg0: i32) -> (i32, i32) {
    %c0_i32 = arith.constant 0 : i32
    %c0_i32_0 = arith.constant 0 : i32
    %c0_i32_1 = arith.constant 0 : i32
    return %c0_i32, %c0_i32_0 : i32, i32
  }
  func.func @transform_14(%arg0: i32) -> (i32, i32) {
    %c0_i32 = arith.constant 0 : i32
    %c0_i32_0 = arith.constant 0 : i32
    %c0_i32_1 = arith.constant 0 : i32
    return %c0_i32, %c0_i32_0 : i32, i32
  }
  func.func @transform_15(%arg0: i32) -> (i32, i32) {
    %c0_i32 = arith.constant 0 : i32
    %c0_i32_0 = arith.constant 0 : i32
    %c0_i32_1 = arith.constant 0 : i32
    return %c0_i32, %c0_i32_0 : i32, i32
  }
  func.func @transform_16(%arg0: i32) -> (i32, i32) {
    %c0_i32 = arith.constant 0 : i32
    %c0_i32_0 = arith.constant 0 : i32
    %c0_i32_1 = arith.constant 0 : i32
    return %c0_i32, %c0_i32_0 : i32, i32
  }
  func.func @transform_17(%arg0: i32) -> (i32, i32) {
    %c0_i32 = arith.constant 0 : i32
    %c0_i32_0 = arith.constant 0 : i32
    %c0_i32_1 = arith.constant 0 : i32
    return %c0_i32, %c0_i32_0 : i32, i32
  }
  func.func @transform_18(%arg0: i32) -> (i32, i32) {
    %c0_i32 = arith.constant 0 : i32
    %c0_i32_0 = arith.constant 0 : i32
    %c0_i32_1 = arith.constant 0 : i32
    return %c0_i32, %c0_i32_0 : i32, i32
  }
  func.func @transform_19(%arg0: i32) -> (i32, i32, i32) {
    %c0_i32 = arith.constant 0 : i32
    %c0_i32_0 = arith.constant 0 : i32
    %c0_i32_1 = arith.constant 0 : i32
    return %arg0, %c0_i32, %c0_i32_0 : i32, i32, i32
  }
}

</mosaic_0001>

<llo_original>
// kernel: feature_extractor.1
$region0: #{feature_extractor.1}
  #allocation0 [shape = 'u32[]', space=smem, size = 0x4, offset = 0x4, fixed_abs, tag = 'smem constant byte address 0x4 - core index']
  #allocation1 [shape = 'u32[144,128]{1,0:T(1,128)}', space=vmem, size = 0x12000, scoped, tag = 'internal scratch']
  #allocation2 [shape = 'f32[18,48]{1,0:T(8,128)}', space=vmem, size = 0x3000, scoped, tag = 'scratch operand']
  #allocation3 [shape = 'f32[18,128]{1,0:T(8,128)}', space=vmem, size = 0x3000, scoped, tag = 'scratch operand']
  #allocation4 [shape = 'f32[10,64]{1,0:T(8,128)}', space=vmem, size = 0x2000, scoped, tag = 'scratch operand']
  #allocation5 [shape = 'f32[10,128]{1,0:T(8,128)}', space=vmem, size = 0x2000, scoped, tag = 'scratch operand']
  #allocation6 [shape = 'f32[6,64]{1,0:T(8,128)}', space=vmem, size = 0x1000, scoped, tag = 'scratch operand']
  %s0 = inlined_call_operand.vmem [shape: f32[2,16,48], index: 0, kind: input, shape index: {}]
  %s1 = inlined_call_operand.vmem [shape: bf16[3,48,128], index: 1, kind: input, shape index: {}]
  %s2 = inlined_call_operand.vmem [shape: f32[1,128], index: 2, kind: input, shape index: {}]
  %s3 = inlined_call_operand.vmem [shape: bf16[3,128,128], index: 3, kind: input, shape index: {}]
  %s4 = inlined_call_operand.vmem [shape: f32[1,128], index: 4, kind: input, shape index: {}]
  %s5 = inlined_call_operand.vmem [shape: bf16[3,64,128], index: 5, kind: input, shape index: {}]
  %s6 = inlined_call_operand.vmem [shape: f32[1,128], index: 6, kind: input, shape index: {}]
  %s7 = inlined_call_operand.vmem [shape: bf16[3,128,128], index: 7, kind: input, shape index: {}]
  %s8 = inlined_call_operand.vmem [shape: f32[1,128], index: 8, kind: input, shape index: {}]
  %s9 = inlined_call_operand.vmem [shape: bf16[3,64,128], index: 9, kind: input, shape index: {}]
  %s10 = inlined_call_operand.vmem [shape: f32[1,128], index: 10, kind: input, shape index: {}]
  %s11 = inlined_call_operand.vmem [shape: f32[128,64], index: 11, kind: input, shape index: {}]
  %s12 = inlined_call_operand.vmem [shape: f32[128,64], index: 12, kind: input, shape index: {}]
  %s13 = inlined_call_operand.vmem [shape: f32[8,16], index: 13, kind: input, shape index: {}]
  %s14 = inlined_call_operand.vmem [shape: f32[8,16], index: 14, kind: input, shape index: {}]
  %s15 = inlined_call_operand.vmem [shape: f32[128,64], index: 15, kind: input, shape index: {}]
  %s16 = inlined_call_operand.vmem [shape: f32[128,64], index: 16, kind: input, shape index: {}]
  %s17 = inlined_call_operand.vmem [shape: f32[4,8], index: 17, kind: input, shape index: {}]
  %s18 = inlined_call_operand.vmem [shape: f32[4,8], index: 18, kind: input, shape index: {}]
  %s19 = inlined_call_operand.vmem [shape: f32[2,4,128], index: 19, kind: output, shape index: {}]
  %s20 = sld [smem:[#allocation0]]
  $region109: #{feature_extractor.1} parent=0
    _
  %s22 = ssub.s32 1, %s20
  %s23 = scalar_select 0, %s22, %s20
  loop: start=0, step=1, limit=4
  $region2: #{feature_extractor.1} parent=0 // loop_pre_header
    _
  $region3: #{feature_extractor.1} parent=0 // loop_header
    %s25 = sphi 0, %s29
    %p26 = scmp.ge.s32.totalorder %s25, 4
    %s35 = sphi 0, %s37
    %s38 = sphi 0, %s35
    %s39 = sphi 0, %s38
    %s55 = sphi 0, %s39
    %s59 = sphi 0, %s59
    %s61 = sphi 0, %s59
    %s62 = sphi 0, %s61
    %s76 = sphi 0, %s62
    %s80 = sphi 0, %s80
    %s82 = sphi 0, %s80
    %s83 = sphi 0, %s82
    %s97 = sphi 0, %s83
    %s101 = sphi 0, %s101
    %s103 = sphi 0, %s101
    %s104 = sphi 0, %s103
    %s118 = sphi 0, %s104
    %s122 = sphi 0, %s122
    %s124 = sphi 0, %s122
    %s125 = sphi 0, %s124
    %s139 = sphi 0, %s125
    %s143 = sphi 0, %s143
    %s145 = sphi 0, %s143
    %s146 = sphi 0, %s145
    %s160 = sphi 0, %s146
    %s164 = sphi 0, %s164
    %s166 = sphi 0, %s164
    %s167 = sphi 0, %s166
    %s181 = sphi 0, %s167
    %s185 = sphi 0, %s185
    %s187 = sphi 0, %s185
    %s188 = sphi 0, %s187
    %s202 = sphi 0, %s188
    %s206 = sphi 0, %s206
    %s208 = sphi 0, %s206
    %s209 = sphi 0, %s208
    %s223 = sphi 0, %s209
    %s227 = sphi 0, %s227
    %s229 = sphi 0, %s227
    %s230 = sphi 0, %s229
    %s244 = sphi 0, %s230
    %s248 = sphi 0, %s248
    %s250 = sphi 0, %s248
    %s251 = sphi 0, %s250
    %s265 = sphi 0, %s251
    %s269 = sphi 0, %s269
    %s271 = sphi 0, %s269
    %s272 = sphi 0, %s271
    %s286 = sphi 0, %s272
    %s290 = sphi 0, %s290
    %s292 = sphi 0, %s290
    %s293 = sphi 0, %s292
    %s307 = sphi 0, %s293
    %s311 = sphi 0, %s311
    %s313 = sphi 0, %s311
    %s314 = sphi 0, %s313
    %s328 = sphi 0, %s314
    %s332 = sphi 0, %s332
    %s334 = sphi 0, %s332
    %s335 = sphi 0, %s334
    %s349 = sphi 0, %s335
    %s353 = sphi 0, %s353
    %s355 = sphi 0, %s353
    %s356 = sphi 0, %s355
    %s370 = sphi 0, %s356
    %s374 = sphi 0, %s374
    %s376 = sphi 0, %s374
    %s377 = sphi 0, %s376
    %s391 = sphi 0, %s377
    %s395 = sphi 0, %s395
    %s397 = sphi 0, %s395
    %s398 = sphi 0, %s397
    %s412 = sphi 0, %s398
    %s416 = sphi 0, %s416
    %s418 = sphi 0, %s416
    %s419 = sphi 0, %s418
    %s433 = sphi 0, %s419
    %s439 = sphi 0, %s441
    %s442 = sphi 0, %s439
    %s443 = sphi 0, %s442
    %s459 = sphi 0, %s443
  $region4: #{feature_extractor.1} parent=0 // loop_header_branch
    %28 = sbr.rel (%p26) target = $region8
  $region5: #{feature_extractor.1} parent=0 // loop_body
    %s30 = ssub.s32 %s25, 1
    %s31 = ssub.s32 %s25, 2
    %s32 = sadd.s32 %s25, 1
    %s33 = ssub.s32 %s25, %s32
    %p34 = scmp.eq.s32.totalorder %s33, 0
    %s36 = sadd.s32 %s35, 1
    %s37 = scalar_select %p34, %s35, %s36
    %p40 = pneg %p34
    %p41 = scmp.eq.s32.totalorder %s25, 1
    %p42 = por %p40, %p41
    %p43 = scmp.ne.s32.totalorder %s35, %s38
    %p44 = scmp.eq.s32.totalorder %s25, 0
    %p45 = por %p43, %p44
    %p46 = scmp.ne.s32.totalorder %s35, %s38
    %p47 = scmp.eq.s32.totalorder %s30, 1
    %p48 = por %p46, %p47
    %p49 = scmp.ne.s32.totalorder %s38, %s39
    %p50 = scmp.eq.s32.totalorder %s30, 0
    %p51 = por %p49, %p50
    %p52 = scmp.ne.s32.totalorder %s38, %s39
    %p53 = scmp.eq.s32.totalorder %s31, 1
    %p54 = por %p52, %p53
    %p56 = scmp.ne.s32.totalorder %s39, %s55
    %p57 = scmp.eq.s32.totalorder %s31, 0
    %p58 = por %p56, %p57
    %s60 = sadd.s32 %s59, 1
    %p63 = scmp.eq.s32.totalorder %s25, 1
    %p64 = scmp.ne.s32.totalorder %s59, %s61
    %p65 = scmp.eq.s32.totalorder %s25, 0
    %p66 = por %p64, %p65
    %p67 = scmp.ne.s32.totalorder %s59, %s61
    %p68 = scmp.eq.s32.totalorder %s30, 1
    %p69 = por %p67, %p68
    %p70 = scmp.ne.s32.totalorder %s61, %s62
    %p71 = scmp.eq.s32.totalorder %s30, 0
    %p72 = por %p70, %p71
    %p73 = scmp.ne.s32.totalorder %s61, %s62
    %p74 = scmp.eq.s32.totalorder %s31, 1
    %p75 = por %p73, %p74
    %p77 = scmp.ne.s32.totalorder %s62, %s76
    %p78 = scmp.eq.s32.totalorder %s31, 0
    %p79 = por %p77, %p78
    %s81 = sadd.s32 %s80, 1
    %p84 = scmp.eq.s32.totalorder %s25, 1
    %p85 = scmp.ne.s32.totalorder %s80, %s82
    %p86 = scmp.eq.s32.totalorder %s25, 0
    %p87 = por %p85, %p86
    %p88 = scmp.ne.s32.totalorder %s80, %s82
    %p89 = scmp.eq.s32.totalorder %s30, 1
    %p90 = por %p88, %p89
    %p91 = scmp.ne.s32.totalorder %s82, %s83
    %p92 = scmp.eq.s32.totalorder %s30, 0
    %p93 = por %p91, %p92
    %p94 = scmp.ne.s32.totalorder %s82, %s83
    %p95 = scmp.eq.s32.totalorder %s31, 1
    %p96 = por %p94, %p95
    %p98 = scmp.ne.s32.totalorder %s83, %s97
    %p99 = scmp.eq.s32.totalorder %s31, 0
    %p100 = por %p98, %p99
    %s102 = sadd.s32 %s101, 1
    %p105 = scmp.eq.s32.totalorder %s25, 1
    %p106 = scmp.ne.s32.totalorder %s101, %s103
    %p107 = scmp.eq.s32.totalorder %s25, 0
    %p108 = por %p106, %p107
    %p109 = scmp.ne.s32.totalorder %s101, %s103
    %p110 = scmp.eq.s32.totalorder %s30, 1
    %p111 = por %p109, %p110
    %p112 = scmp.ne.s32.totalorder %s103, %s104
    %p113 = scmp.eq.s32.totalorder %s30, 0
    %p114 = por %p112, %p113
    %p115 = scmp.ne.s32.totalorder %s103, %s104
    %p116 = scmp.eq.s32.totalorder %s31, 1
    %p117 = por %p115, %p116
    %p119 = scmp.ne.s32.totalorder %s104, %s118
    %p120 = scmp.eq.s32.totalorder %s31, 0
    %p121 = por %p119, %p120
    %s123 = sadd.s32 %s122, 1
    %p126 = scmp.eq.s32.totalorder %s25, 1
    %p127 = scmp.ne.s32.totalorder %s122, %s124
    %p128 = scmp.eq.s32.totalorder %s25, 0
    %p129 = por %p127, %p128
    %p130 = scmp.ne.s32.totalorder %s122, %s124
    %p131 = scmp.eq.s32.totalorder %s30, 1
    %p132 = por %p130, %p131
    %p133 = scmp.ne.s32.totalorder %s124, %s125
    %p134 = scmp.eq.s32.totalorder %s30, 0
    %p135 = por %p133, %p134
    %p136 = scmp.ne.s32.totalorder %s124, %s125
    %p137 = scmp.eq.s32.totalorder %s31, 1
    %p138 = por %p136, %p137
    %p140 = scmp.ne.s32.totalorder %s125, %s139
    %p141 = scmp.eq.s32.totalorder %s31, 0
    %p142 = por %p140, %p141
    %s144 = sadd.s32 %s143, 1
    %p147 = scmp.eq.s32.totalorder %s25, 1
    %p148 = scmp.ne.s32.totalorder %s143, %s145
    %p149 = scmp.eq.s32.totalorder %s25, 0
    %p150 = por %p148, %p149
    %p151 = scmp.ne.s32.totalorder %s143, %s145
    %p152 = scmp.eq.s32.totalorder %s30, 1
    %p153 = por %p151, %p152
    %p154 = scmp.ne.s32.totalorder %s145, %s146
    %p155 = scmp.eq.s32.totalorder %s30, 0
    %p156 = por %p154, %p155
    %p157 = scmp.ne.s32.totalorder %s145, %s146
    %p158 = scmp.eq.s32.totalorder %s31, 1
    %p159 = por %p157, %p158
    %p161 = scmp.ne.s32.totalorder %s146, %s160
    %p162 = scmp.eq.s32.totalorder %s31, 0
    %p163 = por %p161, %p162
    %s165 = sadd.s32 %s164, 1
    %p168 = scmp.eq.s32.totalorder %s25, 1
    %p169 = scmp.ne.s32.totalorder %s164, %s166
    %p170 = scmp.eq.s32.totalorder %s25, 0
    %p171 = por %p169, %p170
    %p172 = scmp.ne.s32.totalorder %s164, %s166
    %p173 = scmp.eq.s32.totalorder %s30, 1
    %p174 = por %p172, %p173
    %p175 = scmp.ne.s32.totalorder %s166, %s167
    %p176 = scmp.eq.s32.totalorder %s30, 0
    %p177 = por %p175, %p176
    %p178 = scmp.ne.s32.totalorder %s166, %s167
    %p179 = scmp.eq.s32.totalorder %s31, 1
    %p180 = por %p178, %p179
    %p182 = scmp.ne.s32.totalorder %s167, %s181
    %p183 = scmp.eq.s32.totalorder %s31, 0
    %p184 = por %p182, %p183
    %s186 = sadd.s32 %s185, 1
    %p189 = scmp.eq.s32.totalorder %s25, 1
    %p190 = scmp.ne.s32.totalorder %s185, %s187
    %p191 = scmp.eq.s32.totalorder %s25, 0
    %p192 = por %p190, %p191
    %p193 = scmp.ne.s32.totalorder %s185, %s187
    %p194 = scmp.eq.s32.totalorder %s30, 1
    %p195 = por %p193, %p194
    %p196 = scmp.ne.s32.totalorder %s187, %s188
    %p197 = scmp.eq.s32.totalorder %s30, 0
    %p198 = por %p196, %p197
    %p199 = scmp.ne.s32.totalorder %s187, %s188
    %p200 = scmp.eq.s32.totalorder %s31, 1
    %p201 = por %p199, %p200
    %p203 = scmp.ne.s32.totalorder %s188, %s202
    %p204 = scmp.eq.s32.totalorder %s31, 0
    %p205 = por %p203, %p204
    %s207 = sadd.s32 %s206, 1
    %p210 = scmp.eq.s32.totalorder %s25, 1
    %p211 = scmp.ne.s32.totalorder %s206, %s208
    %p212 = scmp.eq.s32.totalorder %s25, 0
    %p213 = por %p211, %p212
    %p214 = scmp.ne.s32.totalorder %s206, %s208
    %p215 = scmp.eq.s32.totalorder %s30, 1
    %p216 = por %p214, %p215
    %p217 = scmp.ne.s32.totalorder %s208, %s209
    %p218 = scmp.eq.s32.totalorder %s30, 0
    %p219 = por %p217, %p218
    %p220 = scmp.ne.s32.totalorder %s208, %s209
    %p221 = scmp.eq.s32.totalorder %s31, 1
    %p222 = por %p220, %p221
    %p224 = scmp.ne.s32.totalorder %s209, %s223
    %p225 = scmp.eq.s32.totalorder %s31, 0
    %p226 = por %p224, %p225
    %s228 = sadd.s32 %s227, 1
    %p231 = scmp.eq.s32.totalorder %s25, 1
    %p232 = scmp.ne.s32.totalorder %s227, %s229
    %p233 = scmp.eq.s32.totalorder %s25, 0
    %p234 = por %p232, %p233
    %p235 = scmp.ne.s32.totalorder %s227, %s229
    %p236 = scmp.eq.s32.totalorder %s30, 1
    %p237 = por %p235, %p236
    %p238 = scmp.ne.s32.totalorder %s229, %s230
    %p239 = scmp.eq.s32.totalorder %s30, 0
    %p240 = por %p238, %p239
    %p241 = scmp.ne.s32.totalorder %s229, %s230
    %p242 = scmp.eq.s32.totalorder %s31, 1
    %p243 = por %p241, %p242
    %p245 = scmp.ne.s32.totalorder %s230, %s244
    %p246 = scmp.eq.s32.totalorder %s31, 0
    %p247 = por %p245, %p246
    %s249 = sadd.s32 %s248, 1
    %p252 = scmp.eq.s32.totalorder %s25, 1
    %p253 = scmp.ne.s32.totalorder %s248, %s250
    %p254 = scmp.eq.s32.totalorder %s25, 0
    %p255 = por %p253, %p254
    %p256 = scmp.ne.s32.totalorder %s248, %s250
    %p257 = scmp.eq.s32.totalorder %s30, 1
    %p258 = por %p256, %p257
    %p259 = scmp.ne.s32.totalorder %s250, %s251
    %p260 = scmp.eq.s32.totalorder %s30, 0
    %p261 = por %p259, %p260
    %p262 = scmp.ne.s32.totalorder %s250, %s251
    %p263 = scmp.eq.s32.totalorder %s31, 1
    %p264 = por %p262, %p263
    %p266 = scmp.ne.s32.totalorder %s251, %s265
    %p267 = scmp.eq.s32.totalorder %s31, 0
    %p268 = por %p266, %p267
    %s270 = sadd.s32 %s269, 1
    %p273 = scmp.eq.s32.totalorder %s25, 1
    %p274 = scmp.ne.s32.totalorder %s269, %s271
    %p275 = scmp.eq.s32.totalorder %s25, 0
    %p276 = por %p274, %p275
    %p277 = scmp.ne.s32.totalorder %s269, %s271
    %p278 = scmp.eq.s32.totalorder %s30, 1
    %p279 = por %p277, %p278
    %p280 = scmp.ne.s32.totalorder %s271, %s272
    %p281 = scmp.eq.s32.totalorder %s30, 0
    %p282 = por %p280, %p281
    %p283 = scmp.ne.s32.totalorder %s271, %s272
    %p284 = scmp.eq.s32.totalorder %s31, 1
    %p285 = por %p283, %p284
    %p287 = scmp.ne.s32.totalorder %s272, %s286
    %p288 = scmp.eq.s32.totalorder %s31, 0
    %p289 = por %p287, %p288
    %s291 = sadd.s32 %s290, 1
    %p294 = scmp.eq.s32.totalorder %s25, 1
    %p295 = scmp.ne.s32.totalorder %s290, %s292
    %p296 = scmp.eq.s32.totalorder %s25, 0
    %p297 = por %p295, %p296
    %p298 = scmp.ne.s32.totalorder %s290, %s292
    %p299 = scmp.eq.s32.totalorder %s30, 1
    %p300 = por %p298, %p299
    %p301 = scmp.ne.s32.totalorder %s292, %s293
    %p302 = scmp.eq.s32.totalorder %s30, 0
    %p303 = por %p301, %p302
    %p304 = scmp.ne.s32.totalorder %s292, %s293
    %p305 = scmp.eq.s32.totalorder %s31, 1
    %p306 = por %p304, %p305
    %p308 = scmp.ne.s32.totalorder %s293, %s307
    %p309 = scmp.eq.s32.totalorder %s31, 0
    %p310 = por %p308, %p309
    %s312 = sadd.s32 %s311, 1
    %p315 = scmp.eq.s32.totalorder %s25, 1
    %p316 = scmp.ne.s32.totalorder %s311, %s313
    %p317 = scmp.eq.s32.totalorder %s25, 0
    %p318 = por %p316, %p317
    %p319 = scmp.ne.s32.totalorder %s311, %s313
    %p320 = scmp.eq.s32.totalorder %s30, 1
    %p321 = por %p319, %p320
    %p322 = scmp.ne.s32.totalorder %s313, %s314
    %p323 = scmp.eq.s32.totalorder %s30, 0
    %p324 = por %p322, %p323
    %p325 = scmp.ne.s32.totalorder %s313, %s314
    %p326 = scmp.eq.s32.totalorder %s31, 1
    %p327 = por %p325, %p326
    %p329 = scmp.ne.s32.totalorder %s314, %s328
    %p330 = scmp.eq.s32.totalorder %s31, 0
    %p331 = por %p329, %p330
    %s333 = sadd.s32 %s332, 1
    %p336 = scmp.eq.s32.totalorder %s25, 1
    %p337 = scmp.ne.s32.totalorder %s332, %s334
    %p338 = scmp.eq.s32.totalorder %s25, 0
    %p339 = por %p337, %p338
    %p340 = scmp.ne.s32.totalorder %s332, %s334
    %p341 = scmp.eq.s32.totalorder %s30, 1
    %p342 = por %p340, %p341
    %p343 = scmp.ne.s32.totalorder %s334, %s335
    %p344 = scmp.eq.s32.totalorder %s30, 0
    %p345 = por %p343, %p344
    %p346 = scmp.ne.s32.totalorder %s334, %s335
    %p347 = scmp.eq.s32.totalorder %s31, 1
    %p348 = por %p346, %p347
    %p350 = scmp.ne.s32.totalorder %s335, %s349
    %p351 = scmp.eq.s32.totalorder %s31, 0
    %p352 = por %p350, %p351
    %s354 = sadd.s32 %s353, 1
    %p357 = scmp.eq.s32.totalorder %s25, 1
    %p358 = scmp.ne.s32.totalorder %s353, %s355
    %p359 = scmp.eq.s32.totalorder %s25, 0
    %p360 = por %p358, %p359
    %p361 = scmp.ne.s32.totalorder %s353, %s355
    %p362 = scmp.eq.s32.totalorder %s30, 1
    %p363 = por %p361, %p362
    %p364 = scmp.ne.s32.totalorder %s355, %s356
    %p365 = scmp.eq.s32.totalorder %s30, 0
    %p366 = por %p364, %p365
    %p367 = scmp.ne.s32.totalorder %s355, %s356
    %p368 = scmp.eq.s32.totalorder %s31, 1
    %p369 = por %p367, %p368
    %p371 = scmp.ne.s32.totalorder %s356, %s370
    %p372 = scmp.eq.s32.totalorder %s31, 0
    %p373 = por %p371, %p372
    %s375 = sadd.s32 %s374, 1
    %p378 = scmp.eq.s32.totalorder %s25, 1
    %p379 = scmp.ne.s32.totalorder %s374, %s376
    %p380 = scmp.eq.s32.totalorder %s25, 0
    %p381 = por %p379, %p380
    %p382 = scmp.ne.s32.totalorder %s374, %s376
    %p383 = scmp.eq.s32.totalorder %s30, 1
    %p384 = por %p382, %p383
    %p385 = scmp.ne.s32.totalorder %s376, %s377
    %p386 = scmp.eq.s32.totalorder %s30, 0
    %p387 = por %p385, %p386
    %p388 = scmp.ne.s32.totalorder %s376, %s377
    %p389 = scmp.eq.s32.totalorder %s31, 1
    %p390 = por %p388, %p389
    %p392 = scmp.ne.s32.totalorder %s377, %s391
    %p393 = scmp.eq.s32.totalorder %s31, 0
    %p394 = por %p392, %p393
    %s396 = sadd.s32 %s395, 1
    %p399 = scmp.eq.s32.totalorder %s25, 1
    %p400 = scmp.ne.s32.totalorder %s395, %s397
    %p401 = scmp.eq.s32.totalorder %s25, 0
    %p402 = por %p400, %p401
    %p403 = scmp.ne.s32.totalorder %s395, %s397
    %p404 = scmp.eq.s32.totalorder %s30, 1
    %p405 = por %p403, %p404
    %p406 = scmp.ne.s32.totalorder %s397, %s398
    %p407 = scmp.eq.s32.totalorder %s30, 0
    %p408 = por %p406, %p407
    %p409 = scmp.ne.s32.totalorder %s397, %s398
    %p410 = scmp.eq.s32.totalorder %s31, 1
    %p411 = por %p409, %p410
    %p413 = scmp.ne.s32.totalorder %s398, %s412
    %p414 = scmp.eq.s32.totalorder %s31, 0
    %p415 = por %p413, %p414
    %s417 = sadd.s32 %s416, 1
    %p420 = scmp.eq.s32.totalorder %s25, 1
    %p421 = scmp.ne.s32.totalorder %s416, %s418
    %p422 = scmp.eq.s32.totalorder %s25, 0
    %p423 = por %p421, %p422
    %p424 = scmp.ne.s32.totalorder %s416, %s418
    %p425 = scmp.eq.s32.totalorder %s30, 1
    %p426 = por %p424, %p425
    %p427 = scmp.ne.s32.totalorder %s418, %s419
    %p428 = scmp.eq.s32.totalorder %s30, 0
    %p429 = por %p427, %p428
    %p430 = scmp.ne.s32.totalorder %s418, %s419
    %p431 = scmp.eq.s32.totalorder %s31, 1
    %p432 = por %p430, %p431
    %p434 = scmp.ne.s32.totalorder %s419, %s433
    %p435 = scmp.eq.s32.totalorder %s31, 0
    %p436 = por %p434, %p435
    %s437 = ssub.s32 %s25, %s32
    %p438 = scmp.eq.s32.totalorder %s437, 0
    %s440 = sadd.s32 %s439, 1
    %s441 = scalar_select %p438, %s439, %s440
    %p444 = pneg %p438
    %p445 = scmp.eq.s32.totalorder %s25, 1
    %p446 = por %p444, %p445
    %p447 = scmp.ne.s32.totalorder %s439, %s442
    %p448 = scmp.eq.s32.totalorder %s25, 0
    %p449 = por %p447, %p448
    %p450 = scmp.ne.s32.totalorder %s439, %s442
    %p451 = scmp.eq.s32.totalorder %s30, 1
    %p452 = por %p450, %p451
    %p453 = scmp.ne.s32.totalorder %s442, %s443
    %p454 = scmp.eq.s32.totalorder %s30, 0
    %p455 = por %p453, %p454
    %p456 = scmp.ne.s32.totalorder %s442, %s443
    %p457 = scmp.eq.s32.totalorder %s31, 1
    %p458 = por %p456, %p457
    %p460 = scmp.ne.s32.totalorder %s443, %s459
    %p461 = scmp.eq.s32.totalorder %s31, 0
    %p462 = por %p460, %p461
    %p463 = scmp.le.s32.totalorder 1, %s25
    %p464 = scmp.lt.s32.totalorder %s25, 3
    %p465 = pnand %p463, %p464
    %p466 = pneg %p465
    // Predicated region
    $region9: #{feature_extractor.1} parent=5 // pred_check
      _
    $region10: #{feature_extractor.1} parent=5 // pred_check_branch
      %468 = sbr.rel (%p465) target = $region12
    $region11: #{feature_extractor.1} parent=5 // pred_region
      %s469 = ssub.s32 %s25, 1
      // Predicated region
      $region13: #{feature_extractor.1} parent=11 // pred_check
        %p470 = pneg %p72
      $region14: #{feature_extractor.1} parent=11 // pred_check_branch
        %472 = sbr.rel (%p470) target = $region16
      $region15: #{feature_extractor.1} parent=11 // pred_region
        _
      $region16: #{feature_extractor.1} parent=11 // pred_fallthru
        _
      // Predicated region
      $region17: #{feature_extractor.1} parent=11 // pred_check
        %p473 = pneg %p93
      $region18: #{feature_extractor.1} parent=11 // pred_check_branch
        %475 = sbr.rel (%p473) target = $region20
      $region19: #{feature_extractor.1} parent=11 // pred_region
        _
      $region20: #{feature_extractor.1} parent=11 // pred_fallthru
        _
      // Predicated region
      $region21: #{feature_extractor.1} parent=11 // pred_check
        %p476 = pneg %p114
      $region22: #{feature_extractor.1} parent=11 // pred_check_branch
        %478 = sbr.rel (%p476) target = $region24
      $region23: #{feature_extractor.1} parent=11 // pred_region
        _
      $region24: #{feature_extractor.1} parent=11 // pred_fallthru
        _
      // Predicated region
      $region25: #{feature_extractor.1} parent=11 // pred_check
        %p479 = pneg %p135
      $region26: #{feature_extractor.1} parent=11 // pred_check_branch
        %481 = sbr.rel (%p479) target = $region28
      $region27: #{feature_extractor.1} parent=11 // pred_region
        _
      $region28: #{feature_extractor.1} parent=11 // pred_fallthru
        _
      // Predicated region
      $region29: #{feature_extractor.1} parent=11 // pred_check
        %p482 = pneg %p156
      $region30: #{feature_extractor.1} parent=11 // pred_check_branch
        %484 = sbr.rel (%p482) target = $region32
      $region31: #{feature_extractor.1} parent=11 // pred_region
        _
      $region32: #{feature_extractor.1} parent=11 // pred_fallthru
        _
      // Predicated region
      $region33: #{feature_extractor.1} parent=11 // pred_check
        %p485 = pneg %p177
      $region34: #{feature_extractor.1} parent=11 // pred_check_branch
        %487 = sbr.rel (%p485) target = $region36
      $region35: #{feature_extractor.1} parent=11 // pred_region
        _
      $region36: #{feature_extractor.1} parent=11 // pred_fallthru
        _
      // Predicated region
      $region37: #{feature_extractor.1} parent=11 // pred_check
        %p488 = pneg %p198
      $region38: #{feature_extractor.1} parent=11 // pred_check_branch
        %490 = sbr.rel (%p488) target = $region40
      $region39: #{feature_extractor.1} parent=11 // pred_region
        _
      $region40: #{feature_extractor.1} parent=11 // pred_fallthru
        _
      // Predicated region
      $region41: #{feature_extractor.1} parent=11 // pred_check
        %p491 = pneg %p219
      $region42: #{feature_extractor.1} parent=11 // pred_check_branch
        %493 = sbr.rel (%p491) target = $region44
      $region43: #{feature_extractor.1} parent=11 // pred_region
        _
      $region44: #{feature_extractor.1} parent=11 // pred_fallthru
        _
      // Predicated region
      $region45: #{feature_extractor.1} parent=11 // pred_check
        %p494 = pneg %p240
      $region46: #{feature_extractor.1} parent=11 // pred_check_branch
        %496 = sbr.rel (%p494) target = $region48
      $region47: #{feature_extractor.1} parent=11 // pred_region
        _
      $region48: #{feature_extractor.1} parent=11 // pred_fallthru
        _
      // Predicated region
      $region49: #{feature_extractor.1} parent=11 // pred_check
        %p497 = pneg %p261
      $region50: #{feature_extractor.1} parent=11 // pred_check_branch
        %499 = sbr.rel (%p497) target = $region52
      $region51: #{feature_extractor.1} parent=11 // pred_region
        _
      $region52: #{feature_extractor.1} parent=11 // pred_fallthru
        _
      // Predicated region
      $region53: #{feature_extractor.1} parent=11 // pred_check
        %p500 = pneg %p282
      $region54: #{feature_extractor.1} parent=11 // pred_check_branch
        %502 = sbr.rel (%p500) target = $region56
      $region55: #{feature_extractor.1} parent=11 // pred_region
        _
      $region56: #{feature_extractor.1} parent=11 // pred_fallthru
        _
      // Predicated region
      $region57: #{feature_extractor.1} parent=11 // pred_check
        %p503 = pneg %p303
      $region58: #{feature_extractor.1} parent=11 // pred_check_branch
        %505 = sbr.rel (%p503) target = $region60
      $region59: #{feature_extractor.1} parent=11 // pred_region
        _
      $region60: #{feature_extractor.1} parent=11 // pred_fallthru
        _
      // Predicated region
      $region61: #{feature_extractor.1} parent=11 // pred_check
        %p506 = pneg %p324
      $region62: #{feature_extractor.1} parent=11 // pred_check_branch
        %508 = sbr.rel (%p506) target = $region64
      $region63: #{feature_extractor.1} parent=11 // pred_region
        _
      $region64: #{feature_extractor.1} parent=11 // pred_fallthru
        _
      // Predicated region
      $region65: #{feature_extractor.1} parent=11 // pred_check
        %p509 = pneg %p345
      $region66: #{feature_extractor.1} parent=11 // pred_check_branch
        %511 = sbr.rel (%p509) target = $region68
      $region67: #{feature_extractor.1} parent=11 // pred_region
        _
      $region68: #{feature_extractor.1} parent=11 // pred_fallthru
        _
      // Predicated region
      $region69: #{feature_extractor.1} parent=11 // pred_check
        %p512 = pneg %p366
      $region70: #{feature_extractor.1} parent=11 // pred_check_branch
        %514 = sbr.rel (%p512) target = $region72
      $region71: #{feature_extractor.1} parent=11 // pred_region
        _
      $region72: #{feature_extractor.1} parent=11 // pred_fallthru
        _
      // Predicated region
      $region73: #{feature_extractor.1} parent=11 // pred_check
        %p515 = pneg %p387
      $region74: #{feature_extractor.1} parent=11 // pred_check_branch
        %517 = sbr.rel (%p515) target = $region76
      $region75: #{feature_extractor.1} parent=11 // pred_region
        _
      $region76: #{feature_extractor.1} parent=11 // pred_fallthru
        _
      // Predicated region
      $region77: #{feature_extractor.1} parent=11 // pred_check
        %p518 = pneg %p408
      $region78: #{feature_extractor.1} parent=11 // pred_check_branch
        %520 = sbr.rel (%p518) target = $region80
      $region79: #{feature_extractor.1} parent=11 // pred_region
        _
      $region80: #{feature_extractor.1} parent=11 // pred_fallthru
        _
      // Predicated region
      $region81: #{feature_extractor.1} parent=11 // pred_check
        %p521 = pneg %p429
      $region82: #{feature_extractor.1} parent=11 // pred_check_branch
        %523 = sbr.rel (%p521) target = $region84
      $region83: #{feature_extractor.1} parent=11 // pred_region
        _
      $region84: #{feature_extractor.1} parent=11 // pred_fallthru
        _
    $region12: #{feature_extractor.1} parent=5 // pred_fallthru
      _
    %p524 = scmp.lt.s32.totalorder %s25, 2
    // Predicated region
    $region85: #{feature_extractor.1} parent=5 // pred_check
      %p525 = pneg %p524
    $region86: #{feature_extractor.1} parent=5 // pred_check_branch
      %527 = sbr.rel (%p525) target = $region88
    $region87: #{feature_extractor.1} parent=5 // pred_region
      // Predicated region
      $region89: #{feature_extractor.1} parent=87 // pred_check
        %p528 = pneg %p45
      $region90: #{feature_extractor.1} parent=87 // pred_check_branch
        %530 = sbr.rel (%p528) target = $region92
      $region91: #{feature_extractor.1} parent=87 // pred_region
        %p531 = scmp.lt.s32.totalorder %s25, 1
        %s532 = scalar_select %p531, %s25, 1
        %s533 = smul.addr %s532, 2
        %s534 = smul.addr %s533, 8
        %s535 = scalar_lea.vmem %s0, %s534
      $region92: #{feature_extractor.1} parent=87 // pred_fallthru
        _
    $region88: #{feature_extractor.1} parent=5 // pred_fallthru
      _
    %p536 = scmp.le.s32.totalorder 1, %s25
    %p537 = scmp.lt.s32.totalorder %s25, 3
    %p538 = pnand %p536, %p537
    %p539 = pneg %p538
    // Predicated region
    $region93: #{feature_extractor.1} parent=5 // pred_check
      _
    $region94: #{feature_extractor.1} parent=5 // pred_check_branch
      %541 = sbr.rel (%p538) target = $region96
    $region95: #{feature_extractor.1} parent=5 // pred_region
      %s542 = ssub.s32 %s25, 1
      %p543 = scmp.lt.s32.totalorder %s30, 1
      %s544 = scalar_select %p543, %s30, 1
      %s545 = smul.addr %s544, 2
      %s546 = smul.addr %s545, 8
      %s547 = scalar_lea.vmem %s0, %s546
      %p548 = pneg %p51
      %p549 = pneg %p48
      %p550 = pneg %p72
      %p551 = pneg %p69
      %p552 = pneg %p93
      %p553 = pneg %p90
      %p554 = pneg %p114
      %p555 = pneg %p111
      %p556 = pneg %p135
      %p557 = pneg %p132
      %p558 = pneg %p156
      %p559 = pneg %p153
      %p560 = pneg %p177
      %p561 = pneg %p174
      %p562 = pneg %p198
      %p563 = pneg %p195
      %p564 = pneg %p219
      %p565 = pneg %p216
      %p566 = pneg %p240
      %p567 = pneg %p237
      %p568 = pneg %p261
      %p569 = pneg %p258
      %p570 = pneg %p282
      %p571 = pneg %p279
      %p572 = pneg %p303
      %p573 = pneg %p300
      %p574 = pneg %p324
      %p575 = pneg %p321
      %p576 = pneg %p345
      %p577 = pneg %p342
      %p578 = pneg %p366
      %p579 = pneg %p363
      %p580 = pneg %p387
      %p581 = pneg %p384
      %p582 = pneg %p408
      %p583 = pneg %p405
      %p584 = pneg %p429
      %p585 = pneg %p426
      %p586 = pneg %p455
      %p587 = pneg %p452
      %p588 = scmp.lt.s32.totalorder %s30, 1
      %s589 = scalar_select %p588, %s30, 1
      %s590 = smul.addr %s589, 4
      %s591 = scalar_lea.vmem %s19, %s590
      %p592 = scmp.lt.s32.totalorder %s30, 1
      %s593 = scalar_select %p592, %s30, 1
      %s594 = smul.addr %s593, 2
      %s595 = smul.addr %s594, 8
      %s596 = scalar_lea.vmem %s0, %s595
      %p597 = scmp.lt.s32.totalorder %s30, 1
      %s598 = scalar_select %p597, %s30, 1
      %s599 = smul.addr %s598, 4
      %s600 = scalar_lea.vmem %s19, %s599
      %v602 = vld [vmem:[%s596] sm:$0xff]
      %v603 = vld [vmem:[%s596 + $0x8] sm:$0xff]
      %vm604 = vcmask 392192
      %605 = vst.msk [vmem:[#allocation2] sm:$0xff] %vm604, 0.0
      %606 = vst.msk [vmem:[#allocation2 + $0x8] sm:$0xff] %vm604, 0.0
      %vm607 = vcmask 386048
      %608 = vst.msk [vmem:[#allocation2 + $0x10] sm:$0x3] %vm607, 0.0
      %609 = vst.msk [vmem:[#allocation2 + $0x1] sm:$0xff] %vm604, %v602
      %610 = vst.msk [vmem:[#allocation2 + $0x9] sm:$0xff] %vm604, %v603
      %v611 = vld [vmem:[#allocation2] sm:$0xff]
      %v612 = vld [vmem:[#allocation2 + $0x8] sm:$0xff]
      %v613 = vpack.c.bf16 %v612, %v611
      %v614 = vld [vmem:[%s1] sm:$0xf]
      %v615 = vld [vmem:[%s1 + $0x4] sm:$0xf]
      %v616 = vld [vmem:[%s1 + $0x8] sm:$0xf]
      %v617 = vld [vmem:[%s1 + $0xc] sm:$0xf]
      %v618 = vld [vmem:[%s1 + $0x10] sm:$0xf]
      %v619 = vld [vmem:[%s1 + $0x14] sm:$0xf]
      %v620 = vld [vmem:[#allocation2 + $0x1] sm:$0xff]
      %v621 = vld [vmem:[#allocation2 + $0x9] sm:$0xff]
      %v622 = vpack.c.bf16 %v621, %v620
      %s623 = scalar_lea.vmem %s1, 24
      %v624 = vld [vmem:[%s623] sm:$0xf]
      %v625 = vld [vmem:[%s623 + $0x4] sm:$0xf]
      %v626 = vld [vmem:[%s623 + $0x8] sm:$0xf]
      %v627 = vld [vmem:[%s623 + $0xc] sm:$0xf]
      %v628 = vld [vmem:[%s623 + $0x10] sm:$0xf]
      %v629 = vld [vmem:[%s623 + $0x14] sm:$0xf]
      %v636 = vunpack.c.l.b16 %v624
      %v637 = vunpack.c.l.b16 %v625
      %v638 = vunpack.c.l.b16 %v626
      %v639 = vunpack.c.l.b16 %v627
      %v640 = vunpack.c.l.b16 %v628
      %v641 = vunpack.c.l.b16 %v629
      %v642 = vpack.c.b16 %v637, %v636
      %v643 = vpack.c.b16 %v639, %v638
      %v644 = vpack.c.b16 %v641, %v640
      %v649 = vsel %vm604, %v622, 0
      %651 = vmatprep.subr.bf16.mxu0 0
      %652 = vmatpush1.bf16.msra.mxu0 %v642
      %653 = vmatprep.subr.bf16.mxu0 0
      %654 = vmatpush1.bf16.msra.mxu0 %v643
      %655 = vmatprep.subr.bf16.mxu0 0
      %656 = vmatpush1.bf16.msra.mxu0 %v644
      %657 = vmatprep.subr.bf16.mxu0 0
      %658 = vmatpush1.bf16.msra.mxu0 0
      %659 = vmatprep.subr.bf16.mxu0 0
      %660 = vmatpush1.bf16.msra.mxu0 0
      %661 = vmatprep.subr.bf16.mxu0 0
      %662 = vmatpush1.bf16.msra.mxu0 0
      %663 = vmatprep.subr.bf16.mxu0 0
      %664 = vmatpush1.bf16.msra.mxu0 0
      %665 = vmatprep.subr.bf16.mxu0 0
      %666 = vmatpush1.bf16.msra.mxu0 0
      %667 = vmatprep.subr.bf16.mxu0 0
      %668 = vmatpush1.bf16.msra.mxu0 0
      %669 = vmatprep.subr.bf16.mxu0 0
      %670 = vmatpush1.bf16.msra.mxu0 0
      %671 = vmatprep.subr.bf16.mxu0 0
      %672 = vmatpush1.bf16.msra.mxu0 0
      %673 = vmatprep.subr.bf16.mxu0 0
      %674 = vmatpush1.bf16.msra.mxu0 0
      %675 = vmatprep.subr.bf16.mxu0 0
      %676 = vmatpush1.bf16.msra.mxu0 0
      %677 = vmatprep.subr.bf16.mxu0 0
      %678 = vmatpush1.bf16.msra.mxu0 0
      %679 = vmatprep.subr.bf16.mxu0 0
      %680 = vmatpush1.bf16.msra.mxu0 0
      %681 = vmatprep.subr.bf16.mxu0 0
      %682 = vmatpush1.bf16.msra.mxu0 0
      %683 = vmatprep.mubr.bf16.mxu0 0
      %684 = vmatmul.mubr.bf16.gmra.mrb[0].mxu0 %v649
      %v685 = vpop.f32.mrb[0].mxu0
      %v686 = vadd.f32 0.0, %v685
      %v687 = vpop.f32.mrb[0].mxu0
      %v688 = vpop.f32.mrb[0].mxu0
      %v689 = vadd.f32 0.0, %v688
      %v690 = vpop.f32.mrb[0].mxu0
      %691 = vdwg.mxu0
      %v698 = vunpack.c.l.b16 %v614
      %v699 = vunpack.c.l.b16 %v615
      %v700 = vunpack.c.l.b16 %v616
      %v701 = vunpack.c.l.b16 %v617
      %v702 = vunpack.c.l.b16 %v618
      %v703 = vunpack.c.l.b16 %v619
      %v704 = vpack.c.b16 %v699, %v698
      %v705 = vpack.c.b16 %v701, %v700
      %v706 = vpack.c.b16 %v703, %v702
      %v711 = vsel %vm604, %v613, 0
      %713 = vmatprep.subr.bf16.mxu0 0
      %714 = vmatpush1.bf16.msra.mxu0 %v704
      %715 = vmatprep.subr.bf16.mxu0 0
      %716 = vmatpush1.bf16.msra.mxu0 %v705
      %717 = vmatprep.subr.bf16.mxu0 0
      %718 = vmatpush1.bf16.msra.mxu0 %v706
      %719 = vmatprep.subr.bf16.mxu0 0
      %720 = vmatpush1.bf16.msra.mxu0 0
      %721 = vmatprep.subr.bf16.mxu0 0
      %722 = vmatpush1.bf16.msra.mxu0 0
      %723 = vmatprep.subr.bf16.mxu0 0
      %724 = vmatpush1.bf16.msra.mxu0 0
      %725 = vmatprep.subr.bf16.mxu0 0
      %726 = vmatpush1.bf16.msra.mxu0 0
      %727 = vmatprep.subr.bf16.mxu0 0
      %728 = vmatpush1.bf16.msra.mxu0 0
      %729 = vmatprep.subr.bf16.mxu0 0
      %730 = vmatpush1.bf16.msra.mxu0 0
      %731 = vmatprep.subr.bf16.mxu0 0
      %732 = vmatpush1.bf16.msra.mxu0 0
      %733 = vmatprep.subr.bf16.mxu0 0
      %734 = vmatpush1.bf16.msra.mxu0 0
      %735 = vmatprep.subr.bf16.mxu0 0
      %736 = vmatpush1.bf16.msra.mxu0 0
      %737 = vmatprep.subr.bf16.mxu0 0
      %738 = vmatpush1.bf16.msra.mxu0 0
      %739 = vmatprep.subr.bf16.mxu0 0
      %740 = vmatpush1.bf16.msra.mxu0 0
      %741 = vmatprep.subr.bf16.mxu0 0
      %742 = vmatpush1.bf16.msra.mxu0 0
      %743 = vmatprep.subr.bf16.mxu0 0
      %744 = vmatpush1.bf16.msra.mxu0 0
      %745 = vmatprep.mubr.bf16.mxu0 0
      %746 = vmatmul.mubr.bf16.gmra.mrb[0].mxu0 %v711
      %v747 = vpop.f32.mrb[0].mxu0
      %v748 = vadd.f32 %v686, %v747
      %v749 = vpop.f32.mrb[0].mxu0
      %v750 = vpop.f32.mrb[0].mxu0
      %v751 = vadd.f32 %v689, %v750
      %v752 = vpop.f32.mrb[0].mxu0
      %753 = vdwg.mxu0
      %v754 = vld [vmem:[#allocation2 + $0x2] sm:$0xff]
      %v755 = vld [vmem:[#allocation2 + $0xa] sm:$0xff]
      %v756 = vpack.c.bf16 %v755, %v754
      %s757 = scalar_lea.vmem %s1, 48
      %v758 = vld [vmem:[%s757] sm:$0xf]
      %v759 = vld [vmem:[%s757 + $0x4] sm:$0xf]
      %v760 = vld [vmem:[%s757 + $0x8] sm:$0xf]
      %v761 = vld [vmem:[%s757 + $0xc] sm:$0xf]
      %v762 = vld [vmem:[%s757 + $0x10] sm:$0xf]
      %v763 = vld [vmem:[%s757 + $0x14] sm:$0xf]
      %v770 = vunpack.c.l.b16 %v758
      %v771 = vunpack.c.l.b16 %v759
      %v772 = vunpack.c.l.b16 %v760
      %v773 = vunpack.c.l.b16 %v761
      %v774 = vunpack.c.l.b16 %v762
      %v775 = vunpack.c.l.b16 %v763
      %v776 = vpack.c.b16 %v771, %v770
      %v777 = vpack.c.b16 %v773, %v772
      %v778 = vpack.c.b16 %v775, %v774
      %v783 = vsel %vm604, %v756, 0
      %785 = vmatprep.subr.bf16.mxu0 0
      %786 = vmatpush1.bf16.msra.mxu0 %v776
      %787 = vmatprep.subr.bf16.mxu0 0
      %788 = vmatpush1.bf16.msra.mxu0 %v777
      %789 = vmatprep.subr.bf16.mxu0 0
      %790 = vmatpush1.bf16.msra.mxu0 %v778
      %791 = vmatprep.subr.bf16.mxu0 0
      %792 = vmatpush1.bf16.msra.mxu0 0
      %793 = vmatprep.subr.bf16.mxu0 0
      %794 = vmatpush1.bf16.msra.mxu0 0
      %795 = vmatprep.subr.bf16.mxu0 0
      %796 = vmatpush1.bf16.msra.mxu0 0
      %797 = vmatprep.subr.bf16.mxu0 0
      %798 = vmatpush1.bf16.msra.mxu0 0
      %799 = vmatprep.subr.bf16.mxu0 0
      %800 = vmatpush1.bf16.msra.mxu0 0
      %801 = vmatprep.subr.bf16.mxu0 0
      %802 = vmatpush1.bf16.msra.mxu0 0
      %803 = vmatprep.subr.bf16.mxu0 0
      %804 = vmatpush1.bf16.msra.mxu0 0
      %805 = vmatprep.subr.bf16.mxu0 0
      %806 = vmatpush1.bf16.msra.mxu0 0
      %807 = vmatprep.subr.bf16.mxu0 0
      %808 = vmatpush1.bf16.msra.mxu0 0
      %809 = vmatprep.subr.bf16.mxu0 0
      %810 = vmatpush1.bf16.msra.mxu0 0
      %811 = vmatprep.subr.bf16.mxu0 0
      %812 = vmatpush1.bf16.msra.mxu0 0
      %813 = vmatprep.subr.bf16.mxu0 0
      %814 = vmatpush1.bf16.msra.mxu0 0
      %815 = vmatprep.subr.bf16.mxu0 0
      %816 = vmatpush1.bf16.msra.mxu0 0
      %817 = vmatprep.mubr.bf16.mxu0 0
      %818 = vmatmul.mubr.bf16.gmra.mrb[0].mxu0 %v783
      %v819 = vpop.f32.mrb[0].mxu0
      %v820 = vadd.f32 0.0, %v819
      %v821 = vpop.f32.mrb[0].mxu0
      %v822 = vpop.f32.mrb[0].mxu0
      %v823 = vadd.f32 0.0, %v822
      %v824 = vpop.f32.mrb[0].mxu0
      %825 = vdwg.mxu0
      %v826 = vadd.f32 %v748, %v820
      %v827 = vadd.f32 %v751, %v823
      %v828 = vld [vmem:[%s2] sm:$0x1]
      %v830 = vlaneseq
      %v831 = vshrl.u32 %v830, 7
      %v832 = vsub.s32 0, %v831
      %v833 = vrot.slane %v828, %v832
      %v835 = vadd.f32 %v826, %v833
      %v836 = vadd.f32 %v827, %v833
      %v837 = vmax.f32 %v835, 0.0
      %v838 = vmax.f32 %v836, 0.0
      %839 = vst [vmem:[#allocation3] sm:$0xff] 0.0
      %840 = vst [vmem:[#allocation3 + $0x8] sm:$0xff] 0.0
      %841 = vst [vmem:[#allocation3 + $0x10] sm:$0x3] 0.0
      %842 = vst [vmem:[#allocation3 + $0x1] sm:$0xff] %v837
      %843 = vst [vmem:[#allocation3 + $0x9] sm:$0xff] %v838
      %v844 = vld [vmem:[#allocation3] sm:$0xff]
      %v845 = vld [vmem:[#allocation3 + $0x8] sm:$0xff]
      %v846 = vpack.c.bf16 %v845, %v844
      %v847 = vld [vmem:[%s3] sm:$0xf]
      %v848 = vld [vmem:[%s3 + $0x4] sm:$0xf]
      %v849 = vld [vmem:[%s3 + $0x8] sm:$0xf]
      %v850 = vld [vmem:[%s3 + $0xc] sm:$0xf]
      %v851 = vld [vmem:[%s3 + $0x10] sm:$0xf]
      %v852 = vld [vmem:[%s3 + $0x14] sm:$0xf]
      %v853 = vld [vmem:[%s3 + $0x18] sm:$0xf]
      %v854 = vld [vmem:[%s3 + $0x1c] sm:$0xf]
      %v855 = vld [vmem:[%s3 + $0x20] sm:$0xf]
      %v856 = vld [vmem:[%s3 + $0x24] sm:$0xf]
      %v857 = vld [vmem:[%s3 + $0x28] sm:$0xf]
      %v858 = vld [vmem:[%s3 + $0x2c] sm:$0xf]
      %v859 = vld [vmem:[%s3 + $0x30] sm:$0xf]
      %v860 = vld [vmem:[%s3 + $0x34] sm:$0xf]
      %v861 = vld [vmem:[%s3 + $0x38] sm:$0xf]
      %v862 = vld [vmem:[%s3 + $0x3c] sm:$0xf]
      %v863 = vld [vmem:[#allocation3 + $0x1] sm:$0xff]
      %v864 = vld [vmem:[#allocation3 + $0x9] sm:$0xff]
      %v865 = vpack.c.bf16 %v864, %v863
      %s866 = scalar_lea.vmem %s3, 64
      %v867 = vld [vmem:[%s866] sm:$0xf]
      %v868 = vld [vmem:[%s866 + $0x4] sm:$0xf]
      %v869 = vld [vmem:[%s866 + $0x8] sm:$0xf]
      %v870 = vld [vmem:[%s866 + $0xc] sm:$0xf]
      %v871 = vld [vmem:[%s866 + $0x10] sm:$0xf]
      %v872 = vld [vmem:[%s866 + $0x14] sm:$0xf]
      %v873 = vld [vmem:[%s866 + $0x18] sm:$0xf]
      %v874 = vld [vmem:[%s866 + $0x1c] sm:$0xf]
      %v875 = vld [vmem:[%s866 + $0x20] sm:$0xf]
      %v876 = vld [vmem:[%s866 + $0x24] sm:$0xf]
      %v877 = vld [vmem:[%s866 + $0x28] sm:$0xf]
      %v878 = vld [vmem:[%s866 + $0x2c] sm:$0xf]
      %v879 = vld [vmem:[%s866 + $0x30] sm:$0xf]
      %v880 = vld [vmem:[%s866 + $0x34] sm:$0xf]
      %v881 = vld [vmem:[%s866 + $0x38] sm:$0xf]
      %v882 = vld [vmem:[%s866 + $0x3c] sm:$0xf]
      %v899 = vunpack.c.l.b16 %v867
      %v900 = vunpack.c.l.b16 %v868
      %v901 = vunpack.c.l.b16 %v869
      %v902 = vunpack.c.l.b16 %v870
      %v903 = vunpack.c.l.b16 %v871
      %v904 = vunpack.c.l.b16 %v872
      %v905 = vunpack.c.l.b16 %v873
      %v906 = vunpack.c.l.b16 %v874
      %v907 = vunpack.c.l.b16 %v875
      %v908 = vunpack.c.l.b16 %v876
      %v909 = vunpack.c.l.b16 %v877
      %v910 = vunpack.c.l.b16 %v878
      %v911 = vunpack.c.l.b16 %v879
      %v912 = vunpack.c.l.b16 %v880
      %v913 = vunpack.c.l.b16 %v881
      %v914 = vunpack.c.l.b16 %v882
      %v915 = vpack.c.b16 %v900, %v899
      %v916 = vpack.c.b16 %v902, %v901
      %v917 = vpack.c.b16 %v904, %v903
      %v918 = vpack.c.b16 %v906, %v905
      %v919 = vpack.c.b16 %v908, %v907
      %v920 = vpack.c.b16 %v910, %v909
      %v921 = vpack.c.b16 %v912, %v911
      %v922 = vpack.c.b16 %v914, %v913
      %931 = vmatprep.subr.bf16.mxu0 0
      %932 = vmatpush1.bf16.msra.mxu0 %v915
      %933 = vmatprep.subr.bf16.mxu0 0
      %934 = vmatpush1.bf16.msra.mxu0 %v916
      %935 = vmatprep.subr.bf16.mxu0 0
      %936 = vmatpush1.bf16.msra.mxu0 %v917
      %937 = vmatprep.subr.bf16.mxu0 0
      %938 = vmatpush1.bf16.msra.mxu0 %v918
      %939 = vmatprep.subr.bf16.mxu0 0
      %940 = vmatpush1.bf16.msra.mxu0 %v919
      %941 = vmatprep.subr.bf16.mxu0 0
      %942 = vmatpush1.bf16.msra.mxu0 %v920
      %943 = vmatprep.subr.bf16.mxu0 0
      %944 = vmatpush1.bf16.msra.mxu0 %v921
      %945 = vmatprep.subr.bf16.mxu0 0
      %946 = vmatpush1.bf16.msra.mxu0 %v922
      %947 = vmatprep.subr.bf16.mxu0 0
      %948 = vmatpush1.bf16.msra.mxu0 0
      %949 = vmatprep.subr.bf16.mxu0 0
      %950 = vmatpush1.bf16.msra.mxu0 0
      %951 = vmatprep.subr.bf16.mxu0 0
      %952 = vmatpush1.bf16.msra.mxu0 0
      %953 = vmatprep.subr.bf16.mxu0 0
      %954 = vmatpush1.bf16.msra.mxu0 0
      %955 = vmatprep.subr.bf16.mxu0 0
      %956 = vmatpush1.bf16.msra.mxu0 0
      %957 = vmatprep.subr.bf16.mxu0 0
      %958 = vmatpush1.bf16.msra.mxu0 0
      %959 = vmatprep.subr.bf16.mxu0 0
      %960 = vmatpush1.bf16.msra.mxu0 0
      %961 = vmatprep.subr.bf16.mxu0 0
      %962 = vmatpush1.bf16.msra.mxu0 0
      %963 = vmatprep.mubr.bf16.mxu0 0
      %964 = vmatmul.mubr.bf16.gmra.mrb[0].mxu0 %v865
      %v965 = vpop.f32.mrb[0].mxu0
      %v966 = vadd.f32 0.0, %v965
      %v967 = vpop.f32.mrb[0].mxu0
      %v968 = vpop.f32.mrb[0].mxu0
      %v969 = vadd.f32 0.0, %v968
      %v970 = vpop.f32.mrb[0].mxu0
      %971 = vdwg.mxu0
      %v988 = vunpack.c.l.b16 %v847
      %v989 = vunpack.c.l.b16 %v848
      %v990 = vunpack.c.l.b16 %v849
      %v991 = vunpack.c.l.b16 %v850
      %v992 = vunpack.c.l.b16 %v851
      %v993 = vunpack.c.l.b16 %v852
      %v994 = vunpack.c.l.b16 %v853
      %v995 = vunpack.c.l.b16 %v854
      %v996 = vunpack.c.l.b16 %v855
      %v997 = vunpack.c.l.b16 %v856
      %v998 = vunpack.c.l.b16 %v857
      %v999 = vunpack.c.l.b16 %v858
      %v1000 = vunpack.c.l.b16 %v859
      %v1001 = vunpack.c.l.b16 %v860
      %v1002 = vunpack.c.l.b16 %v861
      %v1003 = vunpack.c.l.b16 %v862
      %v1004 = vpack.c.b16 %v989, %v988
      %v1005 = vpack.c.b16 %v991, %v990
      %v1006 = vpack.c.b16 %v993, %v992
      %v1007 = vpack.c.b16 %v995, %v994
      %v1008 = vpack.c.b16 %v997, %v996
      %v1009 = vpack.c.b16 %v999, %v998
      %v1010 = vpack.c.b16 %v1001, %v1000
      %v1011 = vpack.c.b16 %v1003, %v1002
      %1020 = vmatprep.subr.bf16.mxu0 0
      %1021 = vmatpush1.bf16.msra.mxu0 %v1004
      %1022 = vmatprep.subr.bf16.mxu0 0
      %1023 = vmatpush1.bf16.msra.mxu0 %v1005
      %1024 = vmatprep.subr.bf16.mxu0 0
      %1025 = vmatpush1.bf16.msra.mxu0 %v1006
      %1026 = vmatprep.subr.bf16.mxu0 0
      %1027 = vmatpush1.bf16.msra.mxu0 %v1007
      %1028 = vmatprep.subr.bf16.mxu0 0
      %1029 = vmatpush1.bf16.msra.mxu0 %v1008
      %1030 = vmatprep.subr.bf16.mxu0 0
      %1031 = vmatpush1.bf16.msra.mxu0 %v1009
      %1032 = vmatprep.subr.bf16.mxu0 0
      %1033 = vmatpush1.bf16.msra.mxu0 %v1010
      %1034 = vmatprep.subr.bf16.mxu0 0
      %1035 = vmatpush1.bf16.msra.mxu0 %v1011
      %1036 = vmatprep.subr.bf16.mxu0 0
      %1037 = vmatpush1.bf16.msra.mxu0 0
      %1038 = vmatprep.subr.bf16.mxu0 0
      %1039 = vmatpush1.bf16.msra.mxu0 0
      %1040 = vmatprep.subr.bf16.mxu0 0
      %1041 = vmatpush1.bf16.msra.mxu0 0
      %1042 = vmatprep.subr.bf16.mxu0 0
      %1043 = vmatpush1.bf16.msra.mxu0 0
      %1044 = vmatprep.subr.bf16.mxu0 0
      %1045 = vmatpush1.bf16.msra.mxu0 0
      %1046 = vmatprep.subr.bf16.mxu0 0
      %1047 = vmatpush1.bf16.msra.mxu0 0
      %1048 = vmatprep.subr.bf16.mxu0 0
      %1049 = vmatpush1.bf16.msra.mxu0 0
      %1050 = vmatprep.subr.bf16.mxu0 0
      %1051 = vmatpush1.bf16.msra.mxu0 0
      %1052 = vmatprep.mubr.bf16.mxu0 0
      %1053 = vmatmul.mubr.bf16.gmra.mrb[0].mxu0 %v846
      %v1054 = vpop.f32.mrb[0].mxu0
      %v1055 = vadd.f32 %v966, %v1054
      %v1056 = vpop.f32.mrb[0].mxu0
      %v1057 = vpop.f32.mrb[0].mxu0
      %v1058 = vadd.f32 %v969, %v1057
      %v1059 = vpop.f32.mrb[0].mxu0
      %1060 = vdwg.mxu0
      %v1061 = vld [vmem:[#allocation3 + $0x2] sm:$0xff]
      %v1062 = vld [vmem:[#allocation3 + $0xa] sm:$0xff]
      %v1063 = vpack.c.bf16 %v1062, %v1061
      %s1064 = scalar_lea.vmem %s3, 128
      %v1065 = vld [vmem:[%s1064] sm:$0xf]
      %v1066 = vld [vmem:[%s1064 + $0x4] sm:$0xf]
      %v1067 = vld [vmem:[%s1064 + $0x8] sm:$0xf]
      %v1068 = vld [vmem:[%s1064 + $0xc] sm:$0xf]
      %v1069 = vld [vmem:[%s1064 + $0x10] sm:$0xf]
      %v1070 = vld [vmem:[%s1064 + $0x14] sm:$0xf]
      %v1071 = vld [vmem:[%s1064 + $0x18] sm:$0xf]
      %v1072 = vld [vmem:[%s1064 + $0x1c] sm:$0xf]
      %v1073 = vld [vmem:[%s1064 + $0x20] sm:$0xf]
      %v1074 = vld [vmem:[%s1064 + $0x24] sm:$0xf]
      %v1075 = vld [vmem:[%s1064 + $0x28] sm:$0xf]
      %v1076 = vld [vmem:[%s1064 + $0x2c] sm:$0xf]
      %v1077 = vld [vmem:[%s1064 + $0x30] sm:$0xf]
      %v1078 = vld [vmem:[%s1064 + $0x34] sm:$0xf]
      %v1079 = vld [vmem:[%s1064 + $0x38] sm:$0xf]
      %v1080 = vld [vmem:[%s1064 + $0x3c] sm:$0xf]
      %v1097 = vunpack.c.l.b16 %v1065
      %v1098 = vunpack.c.l.b16 %v1066
      %v1099 = vunpack.c.l.b16 %v1067
      %v1100 = vunpack.c.l.b16 %v1068
      %v1101 = vunpack.c.l.b16 %v1069
      %v1102 = vunpack.c.l.b16 %v1070
      %v1103 = vunpack.c.l.b16 %v1071
      %v1104 = vunpack.c.l.b16 %v1072
      %v1105 = vunpack.c.l.b16 %v1073
      %v1106 = vunpack.c.l.b16 %v1074
      %v1107 = vunpack.c.l.b16 %v1075
      %v1108 = vunpack.c.l.b16 %v1076
      %v1109 = vunpack.c.l.b16 %v1077
      %v1110 = vunpack.c.l.b16 %v1078
      %v1111 = vunpack.c.l.b16 %v1079
      %v1112 = vunpack.c.l.b16 %v1080
      %v1113 = vpack.c.b16 %v1098, %v1097
      %v1114 = vpack.c.b16 %v1100, %v1099
      %v1115 = vpack.c.b16 %v1102, %v1101
      %v1116 = vpack.c.b16 %v1104, %v1103
      %v1117 = vpack.c.b16 %v1106, %v1105
      %v1118 = vpack.c.b16 %v1108, %v1107
      %v1119 = vpack.c.b16 %v1110, %v1109
      %v1120 = vpack.c.b16 %v1112, %v1111
      %1129 = vmatprep.subr.bf16.mxu0 0
      %1130 = vmatpush1.bf16.msra.mxu0 %v1113
      %1131 = vmatprep.subr.bf16.mxu0 0
      %1132 = vmatpush1.bf16.msra.mxu0 %v1114
      %1133 = vmatprep.subr.bf16.mxu0 0
      %1134 = vmatpush1.bf16.msra.mxu0 %v1115
      %1135 = vmatprep.subr.bf16.mxu0 0
      %1136 = vmatpush1.bf16.msra.mxu0 %v1116
      %1137 = vmatprep.subr.bf16.mxu0 0
      %1138 = vmatpush1.bf16.msra.mxu0 %v1117
      %1139 = vmatprep.subr.bf16.mxu0 0
      %1140 = vmatpush1.bf16.msra.mxu0 %v1118
      %1141 = vmatprep.subr.bf16.mxu0 0
      %1142 = vmatpush1.bf16.msra.mxu0 %v1119
      %1143 = vmatprep.subr.bf16.mxu0 0
      %1144 = vmatpush1.bf16.msra.mxu0 %v1120
      %1145 = vmatprep.subr.bf16.mxu0 0
      %1146 = vmatpush1.bf16.msra.mxu0 0
      %1147 = vmatprep.subr.bf16.mxu0 0
      %1148 = vmatpush1.bf16.msra.mxu0 0
      %1149 = vmatprep.subr.bf16.mxu0 0
      %1150 = vmatpush1.bf16.msra.mxu0 0
      %1151 = vmatprep.subr.bf16.mxu0 0
      %1152 = vmatpush1.bf16.msra.mxu0 0
      %1153 = vmatprep.subr.bf16.mxu0 0
      %1154 = vmatpush1.bf16.msra.mxu0 0
      %1155 = vmatprep.subr.bf16.mxu0 0
      %1156 = vmatpush1.bf16.msra.mxu0 0
      %1157 = vmatprep.subr.bf16.mxu0 0
      %1158 = vmatpush1.bf16.msra.mxu0 0
      %1159 = vmatprep.subr.bf16.mxu0 0
      %1160 = vmatpush1.bf16.msra.mxu0 0
      %1161 = vmatprep.mubr.bf16.mxu0 0
      %1162 = vmatmul.mubr.bf16.gmra.mrb[0].mxu0 %v1063
      %v1163 = vpop.f32.mrb[0].mxu0
      %v1164 = vadd.f32 0.0, %v1163
      %v1165 = vpop.f32.mrb[0].mxu0
      %v1166 = vpop.f32.mrb[0].mxu0
      %v1167 = vadd.f32 0.0, %v1166
      %v1168 = vpop.f32.mrb[0].mxu0
      %1169 = vdwg.mxu0
      %v1170 = vadd.f32 %v1055, %v1164
      %v1171 = vadd.f32 %v1058, %v1167
      %v1172 = vld [vmem:[%s4] sm:$0x1]
      %v1174 = vlaneseq
      %v1175 = vshrl.u32 %v1174, 7
      %v1176 = vsub.s32 0, %v1175
      %v1177 = vrot.slane %v1172, %v1176
      %v1179 = vadd.f32 %v1170, %v1177
      %v1180 = vadd.f32 %v1171, %v1177
      %v1181 = vmax.f32 %v1179, 0.0
      %v1182 = vmax.f32 %v1180, 0.0
      %v1183 = vld [vmem:[%s11] sm:$0xff]
      %v1184 = vld [vmem:[%s11 + $0x8] sm:$0xff]
      %v1185 = vld [vmem:[%s11 + $0x10] sm:$0xff]
      %v1186 = vld [vmem:[%s11 + $0x18] sm:$0xff]
      %v1187 = vld [vmem:[%s11 + $0x20] sm:$0xff]
      %v1188 = vld [vmem:[%s11 + $0x28] sm:$0xff]
      %v1189 = vld [vmem:[%s11 + $0x30] sm:$0xff]
      %v1190 = vld [vmem:[%s11 + $0x38] sm:$0xff]
      %v1191 = vld [vmem:[%s11 + $0x40] sm:$0xff]
      %v1192 = vld [vmem:[%s11 + $0x48] sm:$0xff]
      %v1193 = vld [vmem:[%s11 + $0x50] sm:$0xff]
      %v1194 = vld [vmem:[%s11 + $0x58] sm:$0xff]
      %v1195 = vld [vmem:[%s11 + $0x60] sm:$0xff]
      %v1196 = vld [vmem:[%s11 + $0x68] sm:$0xff]
      %v1197 = vld [vmem:[%s11 + $0x70] sm:$0xff]
      %v1198 = vld [vmem:[%s11 + $0x78] sm:$0xff]
      %1199 = vmatprep.subr.mxu0 0.0
      %1200 = vmatpush1.msra.mxu0 %v1183
      %1201 = vmatprep.subr.mxu0 0.0
      %1202 = vmatpush1.msra.mxu0 %v1184
      %1203 = vmatprep.subr.mxu0 0.0
      %1204 = vmatpush1.msra.mxu0 %v1185
      %1205 = vmatprep.subr.mxu0 0.0
      %1206 = vmatpush1.msra.mxu0 %v1186
      %1207 = vmatprep.subr.mxu0 0.0
      %1208 = vmatpush1.msra.mxu0 %v1187
      %1209 = vmatprep.subr.mxu0 0.0
      %1210 = vmatpush1.msra.mxu0 %v1188
      %1211 = vmatprep.subr.mxu0 0.0
      %1212 = vmatpush1.msra.mxu0 %v1189
      %1213 = vmatprep.subr.mxu0 0.0
      %1214 = vmatpush1.msra.mxu0 %v1190
      %1215 = vmatprep.subr.mxu0 0.0
      %1216 = vmatpush1.msra.mxu0 %v1191
      %1217 = vmatprep.subr.mxu0 0.0
      %1218 = vmatpush1.msra.mxu0 %v1192
      %1219 = vmatprep.subr.mxu0 0.0
      %1220 = vmatpush1.msra.mxu0 %v1193
      %1221 = vmatprep.subr.mxu0 0.0
      %1222 = vmatpush1.msra.mxu0 %v1194
      %1223 = vmatprep.subr.mxu0 0.0
      %1224 = vmatpush1.msra.mxu0 %v1195
      %1225 = vmatprep.subr.mxu0 0.0
      %1226 = vmatpush1.msra.mxu0 %v1196
      %1227 = vmatprep.subr.mxu0 0.0
      %1228 = vmatpush1.msra.mxu0 %v1197
      %1229 = vmatprep.subr.mxu0 0.0
      %1230 = vmatpush1.msra.mxu0 %v1198
      %1231 = vmatprep.subr.mxu0 0.0
      %1232 = vmatpush1.msra.mxu0 0.0
      %1233 = vmatprep.subr.mxu0 0.0
      %1234 = vmatpush1.msra.mxu0 0.0
      %1235 = vmatprep.subr.mxu0 0.0
      %1236 = vmatpush1.msra.mxu0 0.0
      %1237 = vmatprep.subr.mxu0 0.0
      %1238 = vmatpush1.msra.mxu0 0.0
      %1239 = vmatprep.subr.mxu0 0.0
      %1240 = vmatpush1.msra.mxu0 0.0
      %1241 = vmatprep.subr.mxu0 0.0
      %1242 = vmatpush1.msra.mxu0 0.0
      %1243 = vmatprep.subr.mxu0 0.0
      %1244 = vmatpush1.msra.mxu0 0.0
      %1245 = vmatprep.subr.mxu0 0.0
      %1246 = vmatpush1.msra.mxu0 0.0
      %1247 = vmatprep.subr.mxu0 0.0
      %1248 = vmatpush1.msra.mxu0 0.0
      %1249 = vmatprep.subr.mxu0 0.0
      %1250 = vmatpush1.msra.mxu0 0.0
      %1251 = vmatprep.subr.mxu0 0.0
      %1252 = vmatpush1.msra.mxu0 0.0
      %1253 = vmatprep.subr.mxu0 0.0
      %1254 = vmatpush1.msra.mxu0 0.0
      %1255 = vmatprep.subr.mxu0 0.0
      %1256 = vmatpush1.msra.mxu0 0.0
      %1257 = vmatprep.subr.mxu0 0.0
      %1258 = vmatpush1.msra.mxu0 0.0
      %1259 = vmatprep.subr.mxu0 0.0
      %1260 = vmatpush1.msra.mxu0 0.0
      %1261 = vmatprep.subr.mxu0 0.0
      %1262 = vmatpush1.msra.mxu0 0.0
      %1263 = vmatprep.mubr.f32.mxu0 0.0
      %1264 = vmatmul.mubr.f32.gmra.mrb[0].mxu0 %v1181
      %v1265 = vpop.f32.mrb[0].mxu0
      %v1266 = vadd.f32 0.0, %v1265
      %v1267 = vpop.f32.mrb[0].mxu0
      %1268 = vmatprep.mubr.f32.mxu0 0.0
      %1269 = vmatmul.mubr.f32.gmra.mrb[0].mxu0 %v1182
      %v1270 = vpop.f32.mrb[0].mxu0
      %v1271 = vadd.f32 0.0, %v1270
      %v1272 = vpop.f32.mrb[0].mxu0
      %1273 = vdwg.mxu0
      %v1274 = vld [vmem:[%s12] sm:$0xff]
      %v1275 = vld [vmem:[%s12 + $0x8] sm:$0xff]
      %v1276 = vld [vmem:[%s12 + $0x10] sm:$0xff]
      %v1277 = vld [vmem:[%s12 + $0x18] sm:$0xff]
      %v1278 = vld [vmem:[%s12 + $0x20] sm:$0xff]
      %v1279 = vld [vmem:[%s12 + $0x28] sm:$0xff]
      %v1280 = vld [vmem:[%s12 + $0x30] sm:$0xff]
      %v1281 = vld [vmem:[%s12 + $0x38] sm:$0xff]
      %v1282 = vld [vmem:[%s12 + $0x40] sm:$0xff]
      %v1283 = vld [vmem:[%s12 + $0x48] sm:$0xff]
      %v1284 = vld [vmem:[%s12 + $0x50] sm:$0xff]
      %v1285 = vld [vmem:[%s12 + $0x58] sm:$0xff]
      %v1286 = vld [vmem:[%s12 + $0x60] sm:$0xff]
      %v1287 = vld [vmem:[%s12 + $0x68] sm:$0xff]
      %v1288 = vld [vmem:[%s12 + $0x70] sm:$0xff]
      %v1289 = vld [vmem:[%s12 + $0x78] sm:$0xff]
      %1290 = vmatprep.subr.mxu0 0.0
      %1291 = vmatpush1.msra.mxu0 %v1274
      %1292 = vmatprep.subr.mxu0 0.0
      %1293 = vmatpush1.msra.mxu0 %v1275
      %1294 = vmatprep.subr.mxu0 0.0
      %1295 = vmatpush1.msra.mxu0 %v1276
      %1296 = vmatprep.subr.mxu0 0.0
      %1297 = vmatpush1.msra.mxu0 %v1277
      %1298 = vmatprep.subr.mxu0 0.0
      %1299 = vmatpush1.msra.mxu0 %v1278
      %1300 = vmatprep.subr.mxu0 0.0
      %1301 = vmatpush1.msra.mxu0 %v1279
      %1302 = vmatprep.subr.mxu0 0.0
      %1303 = vmatpush1.msra.mxu0 %v1280
      %1304 = vmatprep.subr.mxu0 0.0
      %1305 = vmatpush1.msra.mxu0 %v1281
      %1306 = vmatprep.subr.mxu0 0.0
      %1307 = vmatpush1.msra.mxu0 %v1282
      %1308 = vmatprep.subr.mxu0 0.0
      %1309 = vmatpush1.msra.mxu0 %v1283
      %1310 = vmatprep.subr.mxu0 0.0
      %1311 = vmatpush1.msra.mxu0 %v1284
      %1312 = vmatprep.subr.mxu0 0.0
      %1313 = vmatpush1.msra.mxu0 %v1285
      %1314 = vmatprep.subr.mxu0 0.0
      %1315 = vmatpush1.msra.mxu0 %v1286
      %1316 = vmatprep.subr.mxu0 0.0
      %1317 = vmatpush1.msra.mxu0 %v1287
      %1318 = vmatprep.subr.mxu0 0.0
      %1319 = vmatpush1.msra.mxu0 %v1288
      %1320 = vmatprep.subr.mxu0 0.0
      %1321 = vmatpush1.msra.mxu0 %v1289
      %1322 = vmatprep.subr.mxu0 0.0
      %1323 = vmatpush1.msra.mxu0 0.0
      %1324 = vmatprep.subr.mxu0 0.0
      %1325 = vmatpush1.msra.mxu0 0.0
      %1326 = vmatprep.subr.mxu0 0.0
      %1327 = vmatpush1.msra.mxu0 0.0
      %1328 = vmatprep.subr.mxu0 0.0
      %1329 = vmatpush1.msra.mxu0 0.0
      %1330 = vmatprep.subr.mxu0 0.0
      %1331 = vmatpush1.msra.mxu0 0.0
      %1332 = vmatprep.subr.mxu0 0.0
      %1333 = vmatpush1.msra.mxu0 0.0
      %1334 = vmatprep.subr.mxu0 0.0
      %1335 = vmatpush1.msra.mxu0 0.0
      %1336 = vmatprep.subr.mxu0 0.0
      %1337 = vmatpush1.msra.mxu0 0.0
      %1338 = vmatprep.subr.mxu0 0.0
      %1339 = vmatpush1.msra.mxu0 0.0
      %1340 = vmatprep.subr.mxu0 0.0
      %1341 = vmatpush1.msra.mxu0 0.0
      %1342 = vmatprep.subr.mxu0 0.0
      %1343 = vmatpush1.msra.mxu0 0.0
      %1344 = vmatprep.subr.mxu0 0.0
      %1345 = vmatpush1.msra.mxu0 0.0
      %1346 = vmatprep.subr.mxu0 0.0
      %1347 = vmatpush1.msra.mxu0 0.0
      %1348 = vmatprep.subr.mxu0 0.0
      %1349 = vmatpush1.msra.mxu0 0.0
      %1350 = vmatprep.subr.mxu0 0.0
      %1351 = vmatpush1.msra.mxu0 0.0
      %1352 = vmatprep.subr.mxu0 0.0
      %1353 = vmatpush1.msra.mxu0 0.0
      %1354 = vmatprep.mubr.f32.mxu0 0.0
      %1355 = vmatmul.mubr.f32.gmra.mrb[0].mxu0 %v1181
      %v1356 = vpop.f32.mrb[0].mxu0
      %v1357 = vadd.f32 0.0, %v1356
      %v1358 = vpop.f32.mrb[0].mxu0
      %1359 = vmatprep.mubr.f32.mxu0 0.0
      %1360 = vmatmul.mubr.f32.gmra.mrb[0].mxu0 %v1182
      %v1361 = vpop.f32.mrb[0].mxu0
      %v1362 = vadd.f32 0.0, %v1361
      %v1363 = vpop.f32.mrb[0].mxu0
      %1364 = vdwg.mxu0
      %v1365 = vmax.f32 %v1266, %v1357
      %v1366 = vmax.f32 %v1271, %v1362
      %v1367 = vld [vmem:[%s13] sm:$0xff]
      %vm1368 = vcmask 130048
      %v1370 = vsel %vm1368, %v1367, 0
      %1372 = vmatprep.subr.mxu0 0.0
      %1373 = vmatpush1.msra.mxu0 %v1365
      %1374 = vmatprep.subr.mxu0 0.0
      %1375 = vmatpush1.msra.mxu0 %v1366
      %1376 = vmatprep.subr.mxu0 0.0
      %1377 = vmatpush1.msra.mxu0 0.0
      %1378 = vmatprep.subr.mxu0 0.0
      %1379 = vmatpush1.msra.mxu0 0.0
      %1380 = vmatprep.subr.mxu0 0.0
      %1381 = vmatpush1.msra.mxu0 0.0
      %1382 = vmatprep.subr.mxu0 0.0
      %1383 = vmatpush1.msra.mxu0 0.0
      %1384 = vmatprep.subr.mxu0 0.0
      %1385 = vmatpush1.msra.mxu0 0.0
      %1386 = vmatprep.subr.mxu0 0.0
      %1387 = vmatpush1.msra.mxu0 0.0
      %1388 = vmatprep.subr.mxu0 0.0
      %1389 = vmatpush1.msra.mxu0 0.0
      %1390 = vmatprep.subr.mxu0 0.0
      %1391 = vmatpush1.msra.mxu0 0.0
      %1392 = vmatprep.subr.mxu0 0.0
      %1393 = vmatpush1.msra.mxu0 0.0
      %1394 = vmatprep.subr.mxu0 0.0
      %1395 = vmatpush1.msra.mxu0 0.0
      %1396 = vmatprep.subr.mxu0 0.0
      %1397 = vmatpush1.msra.mxu0 0.0
      %1398 = vmatprep.subr.mxu0 0.0
      %1399 = vmatpush1.msra.mxu0 0.0
      %1400 = vmatprep.subr.mxu0 0.0
      %1401 = vmatpush1.msra.mxu0 0.0
      %1402 = vmatprep.subr.mxu0 0.0
      %1403 = vmatpush1.msra.mxu0 0.0
      %1404 = vmatprep.subr.mxu0 0.0
      %1405 = vmatpush1.msra.mxu0 0.0
      %1406 = vmatprep.subr.mxu0 0.0
      %1407 = vmatpush1.msra.mxu0 0.0
      %1408 = vmatprep.subr.mxu0 0.0
      %1409 = vmatpush1.msra.mxu0 0.0
      %1410 = vmatprep.subr.mxu0 0.0
      %1411 = vmatpush1.msra.mxu0 0.0
      %1412 = vmatprep.subr.mxu0 0.0
      %1413 = vmatpush1.msra.mxu0 0.0
      %1414 = vmatprep.subr.mxu0 0.0
      %1415 = vmatpush1.msra.mxu0 0.0
      %1416 = vmatprep.subr.mxu0 0.0
      %1417 = vmatpush1.msra.mxu0 0.0
      %1418 = vmatprep.subr.mxu0 0.0
      %1419 = vmatpush1.msra.mxu0 0.0
      %1420 = vmatprep.subr.mxu0 0.0
      %1421 = vmatpush1.msra.mxu0 0.0
      %1422 = vmatprep.subr.mxu0 0.0
      %1423 = vmatpush1.msra.mxu0 0.0
      %1424 = vmatprep.subr.mxu0 0.0
      %1425 = vmatpush1.msra.mxu0 0.0
      %1426 = vmatprep.subr.mxu0 0.0
      %1427 = vmatpush1.msra.mxu0 0.0
      %1428 = vmatprep.subr.mxu0 0.0
      %1429 = vmatpush1.msra.mxu0 0.0
      %1430 = vmatprep.subr.mxu0 0.0
      %1431 = vmatpush1.msra.mxu0 0.0
      %1432 = vmatprep.subr.mxu0 0.0
      %1433 = vmatpush1.msra.mxu0 0.0
      %1434 = vmatprep.subr.mxu0 0.0
      %1435 = vmatpush1.msra.mxu0 0.0
      %1436 = vmatprep.mubr.f32.mxu0 0.0
      %1437 = vmatmul.mubr.f32.gmra.mrb[0].mxu0 %v1370
      %v1438 = vpop.f32.mrb[0].mxu0
      %v1439 = vadd.f32 0.0, %v1438
      %v1440 = vpop.f32.mrb[0].mxu0
      %1441 = vdwg.mxu0
      %v1442 = vld [vmem:[%s14] sm:$0xff]
      %v1444 = vsel %vm1368, %v1442, 0
      %1446 = vmatprep.subr.mxu0 0.0
      %1447 = vmatpush1.msra.mxu0 %v1365
      %1448 = vmatprep.subr.mxu0 0.0
      %1449 = vmatpush1.msra.mxu0 %v1366
      %1450 = vmatprep.subr.mxu0 0.0
      %1451 = vmatpush1.msra.mxu0 0.0
      %1452 = vmatprep.subr.mxu0 0.0
      %1453 = vmatpush1.msra.mxu0 0.0
      %1454 = vmatprep.subr.mxu0 0.0
      %1455 = vmatpush1.msra.mxu0 0.0
      %1456 = vmatprep.subr.mxu0 0.0
      %1457 = vmatpush1.msra.mxu0 0.0
      %1458 = vmatprep.subr.mxu0 0.0
      %1459 = vmatpush1.msra.mxu0 0.0
      %1460 = vmatprep.subr.mxu0 0.0
      %1461 = vmatpush1.msra.mxu0 0.0
      %1462 = vmatprep.subr.mxu0 0.0
      %1463 = vmatpush1.msra.mxu0 0.0
      %1464 = vmatprep.subr.mxu0 0.0
      %1465 = vmatpush1.msra.mxu0 0.0
      %1466 = vmatprep.subr.mxu0 0.0
      %1467 = vmatpush1.msra.mxu0 0.0
      %1468 = vmatprep.subr.mxu0 0.0
      %1469 = vmatpush1.msra.mxu0 0.0
      %1470 = vmatprep.subr.mxu0 0.0
      %1471 = vmatpush1.msra.mxu0 0.0
      %1472 = vmatprep.subr.mxu0 0.0
      %1473 = vmatpush1.msra.mxu0 0.0
      %1474 = vmatprep.subr.mxu0 0.0
      %1475 = vmatpush1.msra.mxu0 0.0
      %1476 = vmatprep.subr.mxu0 0.0
      %1477 = vmatpush1.msra.mxu0 0.0
      %1478 = vmatprep.subr.mxu0 0.0
      %1479 = vmatpush1.msra.mxu0 0.0
      %1480 = vmatprep.subr.mxu0 0.0
      %1481 = vmatpush1.msra.mxu0 0.0
      %1482 = vmatprep.subr.mxu0 0.0
      %1483 = vmatpush1.msra.mxu0 0.0
      %1484 = vmatprep.subr.mxu0 0.0
      %1485 = vmatpush1.msra.mxu0 0.0
      %1486 = vmatprep.subr.mxu0 0.0
      %1487 = vmatpush1.msra.mxu0 0.0
      %1488 = vmatprep.subr.mxu0 0.0
      %1489 = vmatpush1.msra.mxu0 0.0
      %1490 = vmatprep.subr.mxu0 0.0
      %1491 = vmatpush1.msra.mxu0 0.0
      %1492 = vmatprep.subr.mxu0 0.0
      %1493 = vmatpush1.msra.mxu0 0.0
      %1494 = vmatprep.subr.mxu0 0.0
      %1495 = vmatpush1.msra.mxu0 0.0
      %1496 = vmatprep.subr.mxu0 0.0
      %1497 = vmatpush1.msra.mxu0 0.0
      %1498 = vmatprep.subr.mxu0 0.0
      %1499 = vmatpush1.msra.mxu0 0.0
      %1500 = vmatprep.subr.mxu0 0.0
      %1501 = vmatpush1.msra.mxu0 0.0
      %1502 = vmatprep.subr.mxu0 0.0
      %1503 = vmatpush1.msra.mxu0 0.0
      %1504 = vmatprep.subr.mxu0 0.0
      %1505 = vmatpush1.msra.mxu0 0.0
      %1506 = vmatprep.subr.mxu0 0.0
      %1507 = vmatpush1.msra.mxu0 0.0
      %1508 = vmatprep.subr.mxu0 0.0
      %1509 = vmatpush1.msra.mxu0 0.0
      %1510 = vmatprep.mubr.f32.mxu0 0.0
      %1511 = vmatmul.mubr.f32.gmra.mrb[0].mxu0 %v1444
      %v1512 = vpop.f32.mrb[0].mxu0
      %v1513 = vadd.f32 0.0, %v1512
      %v1514 = vpop.f32.mrb[0].mxu0
      %1515 = vdwg.mxu0
      %v1516 = vmax.f32 %v1439, %v1513
      %vm1517 = vcmask 523264
      %1518 = vst.msk [vmem:[#allocation4] sm:$0xff] %vm1517, 0.0
      %vm1519 = vcmask 517120
      %1520 = vst.msk [vmem:[#allocation4 + $0x8] sm:$0x3] %vm1519, 0.0
      %1521 = vst.msk [vmem:[#allocation4 + $0x1] sm:$0xff] %vm1517, %v1516
      %v1522 = vld [vmem:[#allocation4] sm:$0xff]
      %v1523 = vpack.c.bf16 %v1522, %v1522
      %v1524 = vld [vmem:[%s5] sm:$0xf]
      %v1525 = vld [vmem:[%s5 + $0x4] sm:$0xf]
      %v1526 = vld [vmem:[%s5 + $0x8] sm:$0xf]
      %v1527 = vld [vmem:[%s5 + $0xc] sm:$0xf]
      %v1528 = vld [vmem:[%s5 + $0x10] sm:$0xf]
      %v1529 = vld [vmem:[%s5 + $0x14] sm:$0xf]
      %v1530 = vld [vmem:[%s5 + $0x18] sm:$0xf]
      %v1531 = vld [vmem:[%s5 + $0x1c] sm:$0xf]
      %v1532 = vld [vmem:[#allocation4 + $0x1] sm:$0xff]
      %v1533 = vpack.c.bf16 %v1532, %v1532
      %s1534 = scalar_lea.vmem %s5, 32
      %v1535 = vld [vmem:[%s1534] sm:$0xf]
      %v1536 = vld [vmem:[%s1534 + $0x4] sm:$0xf]
      %v1537 = vld [vmem:[%s1534 + $0x8] sm:$0xf]
      %v1538 = vld [vmem:[%s1534 + $0xc] sm:$0xf]
      %v1539 = vld [vmem:[%s1534 + $0x10] sm:$0xf]
      %v1540 = vld [vmem:[%s1534 + $0x14] sm:$0xf]
      %v1541 = vld [vmem:[%s1534 + $0x18] sm:$0xf]
      %v1542 = vld [vmem:[%s1534 + $0x1c] sm:$0xf]
      %v1551 = vunpack.c.l.b16 %v1535
      %v1552 = vunpack.c.l.b16 %v1536
      %v1553 = vunpack.c.l.b16 %v1537
      %v1554 = vunpack.c.l.b16 %v1538
      %v1555 = vunpack.c.l.b16 %v1539
      %v1556 = vunpack.c.l.b16 %v1540
      %v1557 = vunpack.c.l.b16 %v1541
      %v1558 = vunpack.c.l.b16 %v1542
      %v1559 = vpack.c.b16 %v1552, %v1551
      %v1560 = vpack.c.b16 %v1554, %v1553
      %v1561 = vpack.c.b16 %v1556, %v1555
      %v1562 = vpack.c.b16 %v1558, %v1557
      %v1568 = vsel %vm1517, %v1533, 0
      %1570 = vmatprep.subr.bf16.mxu0 0
      %1571 = vmatpush1.bf16.msra.mxu0 %v1559
      %1572 = vmatprep.subr.bf16.mxu0 0
      %1573 = vmatpush1.bf16.msra.mxu0 %v1560
      %1574 = vmatprep.subr.bf16.mxu0 0
      %1575 = vmatpush1.bf16.msra.mxu0 %v1561
      %1576 = vmatprep.subr.bf16.mxu0 0
      %1577 = vmatpush1.bf16.msra.mxu0 %v1562
      %1578 = vmatprep.subr.bf16.mxu0 0
      %1579 = vmatpush1.bf16.msra.mxu0 0
      %1580 = vmatprep.subr.bf16.mxu0 0
      %1581 = vmatpush1.bf16.msra.mxu0 0
      %1582 = vmatprep.subr.bf16.mxu0 0
      %1583 = vmatpush1.bf16.msra.mxu0 0
      %1584 = vmatprep.subr.bf16.mxu0 0
      %1585 = vmatpush1.bf16.msra.mxu0 0
      %1586 = vmatprep.subr.bf16.mxu0 0
      %1587 = vmatpush1.bf16.msra.mxu0 0
      %1588 = vmatprep.subr.bf16.mxu0 0
      %1589 = vmatpush1.bf16.msra.mxu0 0
      %1590 = vmatprep.subr.bf16.mxu0 0
      %1591 = vmatpush1.bf16.msra.mxu0 0
      %1592 = vmatprep.subr.bf16.mxu0 0
      %1593 = vmatpush1.bf16.msra.mxu0 0
      %1594 = vmatprep.subr.bf16.mxu0 0
      %1595 = vmatpush1.bf16.msra.mxu0 0
      %1596 = vmatprep.subr.bf16.mxu0 0
      %1597 = vmatpush1.bf16.msra.mxu0 0
      %1598 = vmatprep.subr.bf16.mxu0 0
      %1599 = vmatpush1.bf16.msra.mxu0 0
      %1600 = vmatprep.subr.bf16.mxu0 0
      %1601 = vmatpush1.bf16.msra.mxu0 0
      %1602 = vmatprep.mubr.bf16.mxu0 0
      %1603 = vmatmul.mubr.bf16.gmra.mrb[0].mxu0 %v1568
      %v1604 = vpop.f32.mrb[0].mxu0
      %v1605 = vadd.f32 0.0, %v1604
      %v1606 = vpop.f32.mrb[0].mxu0
      %v1607 = vpop.f32.mrb[0].mxu0
      %v1608 = vpop.f32.mrb[0].mxu0
      %1609 = vdwg.mxu0
      %v1618 = vunpack.c.l.b16 %v1524
      %v1619 = vunpack.c.l.b16 %v1525
      %v1620 = vunpack.c.l.b16 %v1526
      %v1621 = vunpack.c.l.b16 %v1527
      %v1622 = vunpack.c.l.b16 %v1528
      %v1623 = vunpack.c.l.b16 %v1529
      %v1624 = vunpack.c.l.b16 %v1530
      %v1625 = vunpack.c.l.b16 %v1531
      %v1626 = vpack.c.b16 %v1619, %v1618
      %v1627 = vpack.c.b16 %v1621, %v1620
      %v1628 = vpack.c.b16 %v1623, %v1622
      %v1629 = vpack.c.b16 %v1625, %v1624
      %v1635 = vsel %vm1517, %v1523, 0
      %1637 = vmatprep.subr.bf16.mxu0 0
      %1638 = vmatpush1.bf16.msra.mxu0 %v1626
      %1639 = vmatprep.subr.bf16.mxu0 0
      %1640 = vmatpush1.bf16.msra.mxu0 %v1627
      %1641 = vmatprep.subr.bf16.mxu0 0
      %1642 = vmatpush1.bf16.msra.mxu0 %v1628
      %1643 = vmatprep.subr.bf16.mxu0 0
      %1644 = vmatpush1.bf16.msra.mxu0 %v1629
      %1645 = vmatprep.subr.bf16.mxu0 0
      %1646 = vmatpush1.bf16.msra.mxu0 0
      %1647 = vmatprep.subr.bf16.mxu0 0
      %1648 = vmatpush1.bf16.msra.mxu0 0
      %1649 = vmatprep.subr.bf16.mxu0 0
      %1650 = vmatpush1.bf16.msra.mxu0 0
      %1651 = vmatprep.subr.bf16.mxu0 0
      %1652 = vmatpush1.bf16.msra.mxu0 0
      %1653 = vmatprep.subr.bf16.mxu0 0
      %1654 = vmatpush1.bf16.msra.mxu0 0
      %1655 = vmatprep.subr.bf16.mxu0 0
      %1656 = vmatpush1.bf16.msra.mxu0 0
      %1657 = vmatprep.subr.bf16.mxu0 0
      %1658 = vmatpush1.bf16.msra.mxu0 0
      %1659 = vmatprep.subr.bf16.mxu0 0
      %1660 = vmatpush1.bf16.msra.mxu0 0
      %1661 = vmatprep.subr.bf16.mxu0 0
      %1662 = vmatpush1.bf16.msra.mxu0 0
      %1663 = vmatprep.subr.bf16.mxu0 0
      %1664 = vmatpush1.bf16.msra.mxu0 0
      %1665 = vmatprep.subr.bf16.mxu0 0
      %1666 = vmatpush1.bf16.msra.mxu0 0
      %1667 = vmatprep.subr.bf16.mxu0 0
      %1668 = vmatpush1.bf16.msra.mxu0 0
      %1669 = vmatprep.mubr.bf16.mxu0 0
      %1670 = vmatmul.mubr.bf16.gmra.mrb[0].mxu0 %v1635
      %v1671 = vpop.f32.mrb[0].mxu0
      %v1672 = vadd.f32 %v1605, %v1671
      %v1673 = vpop.f32.mrb[0].mxu0
      %v1674 = vpop.f32.mrb[0].mxu0
      %v1675 = vpop.f32.mrb[0].mxu0
      %1676 = vdwg.mxu0
      %v1677 = vld [vmem:[#allocation4 + $0x2] sm:$0xff]
      %v1678 = vpack.c.bf16 %v1677, %v1677
      %s1679 = scalar_lea.vmem %s5, 64
      %v1680 = vld [vmem:[%s1679] sm:$0xf]
      %v1681 = vld [vmem:[%s1679 + $0x4] sm:$0xf]
      %v1682 = vld [vmem:[%s1679 + $0x8] sm:$0xf]
      %v1683 = vld [vmem:[%s1679 + $0xc] sm:$0xf]
      %v1684 = vld [vmem:[%s1679 + $0x10] sm:$0xf]
      %v1685 = vld [vmem:[%s1679 + $0x14] sm:$0xf]
      %v1686 = vld [vmem:[%s1679 + $0x18] sm:$0xf]
      %v1687 = vld [vmem:[%s1679 + $0x1c] sm:$0xf]
      %v1696 = vunpack.c.l.b16 %v1680
      %v1697 = vunpack.c.l.b16 %v1681
      %v1698 = vunpack.c.l.b16 %v1682
      %v1699 = vunpack.c.l.b16 %v1683
      %v1700 = vunpack.c.l.b16 %v1684
      %v1701 = vunpack.c.l.b16 %v1685
      %v1702 = vunpack.c.l.b16 %v1686
      %v1703 = vunpack.c.l.b16 %v1687
      %v1704 = vpack.c.b16 %v1697, %v1696
      %v1705 = vpack.c.b16 %v1699, %v1698
      %v1706 = vpack.c.b16 %v1701, %v1700
      %v1707 = vpack.c.b16 %v1703, %v1702
      %v1713 = vsel %vm1517, %v1678, 0
      %1715 = vmatprep.subr.bf16.mxu0 0
      %1716 = vmatpush1.bf16.msra.mxu0 %v1704
      %1717 = vmatprep.subr.bf16.mxu0 0
      %1718 = vmatpush1.bf16.msra.mxu0 %v1705
      %1719 = vmatprep.subr.bf16.mxu0 0
      %1720 = vmatpush1.bf16.msra.mxu0 %v1706
      %1721 = vmatprep.subr.bf16.mxu0 0
      %1722 = vmatpush1.bf16.msra.mxu0 %v1707
      %1723 = vmatprep.subr.bf16.mxu0 0
      %1724 = vmatpush1.bf16.msra.mxu0 0
      %1725 = vmatprep.subr.bf16.mxu0 0
      %1726 = vmatpush1.bf16.msra.mxu0 0
      %1727 = vmatprep.subr.bf16.mxu0 0
      %1728 = vmatpush1.bf16.msra.mxu0 0
      %1729 = vmatprep.subr.bf16.mxu0 0
      %1730 = vmatpush1.bf16.msra.mxu0 0
      %1731 = vmatprep.subr.bf16.mxu0 0
      %1732 = vmatpush1.bf16.msra.mxu0 0
      %1733 = vmatprep.subr.bf16.mxu0 0
      %1734 = vmatpush1.bf16.msra.mxu0 0
      %1735 = vmatprep.subr.bf16.mxu0 0
      %1736 = vmatpush1.bf16.msra.mxu0 0
      %1737 = vmatprep.subr.bf16.mxu0 0
      %1738 = vmatpush1.bf16.msra.mxu0 0
      %1739 = vmatprep.subr.bf16.mxu0 0
      %1740 = vmatpush1.bf16.msra.mxu0 0
      %1741 = vmatprep.subr.bf16.mxu0 0
      %1742 = vmatpush1.bf16.msra.mxu0 0
      %1743 = vmatprep.subr.bf16.mxu0 0
      %1744 = vmatpush1.bf16.msra.mxu0 0
      %1745 = vmatprep.subr.bf16.mxu0 0
      %1746 = vmatpush1.bf16.msra.mxu0 0
      %1747 = vmatprep.mubr.bf16.mxu0 0
      %1748 = vmatmul.mubr.bf16.gmra.mrb[0].mxu0 %v1713
      %v1749 = vpop.f32.mrb[0].mxu0
      %v1750 = vadd.f32 0.0, %v1749
      %v1751 = vpop.f32.mrb[0].mxu0
      %v1752 = vpop.f32.mrb[0].mxu0
      %v1753 = vpop.f32.mrb[0].mxu0
      %1754 = vdwg.mxu0
      %v1755 = vadd.f32 %v1672, %v1750
      %v1756 = vld [vmem:[%s6] sm:$0x1]
      %v1758 = vlaneseq
      %v1759 = vshrl.u32 %v1758, 7
      %v1760 = vsub.s32 0, %v1759
      %v1761 = vrot.slane %v1756, %v1760
      %v1763 = vadd.f32 %v1755, %v1761
      %v1764 = vmax.f32 %v1763, 0.0
      %1765 = vst [vmem:[#allocation5] sm:$0xff] 0.0
      %1766 = vst [vmem:[#allocation5 + $0x8] sm:$0x3] 0.0
      %1767 = vst [vmem:[#allocation5 + $0x1] sm:$0xff] %v1764
      %v1768 = vld [vmem:[#allocation5] sm:$0xff]
      %v1769 = vpack.c.bf16 %v1768, %v1768
      %v1770 = vld [vmem:[%s7] sm:$0xf]
      %v1771 = vld [vmem:[%s7 + $0x4] sm:$0xf]
      %v1772 = vld [vmem:[%s7 + $0x8] sm:$0xf]
      %v1773 = vld [vmem:[%s7 + $0xc] sm:$0xf]
      %v1774 = vld [vmem:[%s7 + $0x10] sm:$0xf]
      %v1775 = vld [vmem:[%s7 + $0x14] sm:$0xf]
      %v1776 = vld [vmem:[%s7 + $0x18] sm:$0xf]
      %v1777 = vld [vmem:[%s7 + $0x1c] sm:$0xf]
      %v1778 = vld [vmem:[%s7 + $0x20] sm:$0xf]
      %v1779 = vld [vmem:[%s7 + $0x24] sm:$0xf]
      %v1780 = vld [vmem:[%s7 + $0x28] sm:$0xf]
      %v1781 = vld [vmem:[%s7 + $0x2c] sm:$0xf]
      %v1782 = vld [vmem:[%s7 + $0x30] sm:$0xf]
      %v1783 = vld [vmem:[%s7 + $0x34] sm:$0xf]
      %v1784 = vld [vmem:[%s7 + $0x38] sm:$0xf]
      %v1785 = vld [vmem:[%s7 + $0x3c] sm:$0xf]
      %v1786 = vld [vmem:[#allocation5 + $0x1] sm:$0xff]
      %v1787 = vpack.c.bf16 %v1786, %v1786
      %s1788 = scalar_lea.vmem %s7, 64
      %v1789 = vld [vmem:[%s1788] sm:$0xf]
      %v1790 = vld [vmem:[%s1788 + $0x4] sm:$0xf]
      %v1791 = vld [vmem:[%s1788 + $0x8] sm:$0xf]
      %v1792 = vld [vmem:[%s1788 + $0xc] sm:$0xf]
      %v1793 = vld [vmem:[%s1788 + $0x10] sm:$0xf]
      %v1794 = vld [vmem:[%s1788 + $0x14] sm:$0xf]
      %v1795 = vld [vmem:[%s1788 + $0x18] sm:$0xf]
      %v1796 = vld [vmem:[%s1788 + $0x1c] sm:$0xf]
      %v1797 = vld [vmem:[%s1788 + $0x20] sm:$0xf]
      %v1798 = vld [vmem:[%s1788 + $0x24] sm:$0xf]
      %v1799 = vld [vmem:[%s1788 + $0x28] sm:$0xf]
      %v1800 = vld [vmem:[%s1788 + $0x2c] sm:$0xf]
      %v1801 = vld [vmem:[%s1788 + $0x30] sm:$0xf]
      %v1802 = vld [vmem:[%s1788 + $0x34] sm:$0xf]
      %v1803 = vld [vmem:[%s1788 + $0x38] sm:$0xf]
      %v1804 = vld [vmem:[%s1788 + $0x3c] sm:$0xf]
      %v1821 = vunpack.c.l.b16 %v1789
      %v1822 = vunpack.c.l.b16 %v1790
      %v1823 = vunpack.c.l.b16 %v1791
      %v1824 = vunpack.c.l.b16 %v1792
      %v1825 = vunpack.c.l.b16 %v1793
      %v1826 = vunpack.c.l.b16 %v1794
      %v1827 = vunpack.c.l.b16 %v1795
      %v1828 = vunpack.c.l.b16 %v1796
      %v1829 = vunpack.c.l.b16 %v1797
      %v1830 = vunpack.c.l.b16 %v1798
      %v1831 = vunpack.c.l.b16 %v1799
      %v1832 = vunpack.c.l.b16 %v1800
      %v1833 = vunpack.c.l.b16 %v1801
      %v1834 = vunpack.c.l.b16 %v1802
      %v1835 = vunpack.c.l.b16 %v1803
      %v1836 = vunpack.c.l.b16 %v1804
      %v1837 = vpack.c.b16 %v1822, %v1821
      %v1838 = vpack.c.b16 %v1824, %v1823
      %v1839 = vpack.c.b16 %v1826, %v1825
      %v1840 = vpack.c.b16 %v1828, %v1827
      %v1841 = vpack.c.b16 %v1830, %v1829
      %v1842 = vpack.c.b16 %v1832, %v1831
      %v1843 = vpack.c.b16 %v1834, %v1833
      %v1844 = vpack.c.b16 %v1836, %v1835
      %1853 = vmatprep.subr.bf16.mxu0 0
      %1854 = vmatpush1.bf16.msra.mxu0 %v1837
      %1855 = vmatprep.subr.bf16.mxu0 0
      %1856 = vmatpush1.bf16.msra.mxu0 %v1838
      %1857 = vmatprep.subr.bf16.mxu0 0
      %1858 = vmatpush1.bf16.msra.mxu0 %v1839
      %1859 = vmatprep.subr.bf16.mxu0 0
      %1860 = vmatpush1.bf16.msra.mxu0 %v1840
      %1861 = vmatprep.subr.bf16.mxu0 0
      %1862 = vmatpush1.bf16.msra.mxu0 %v1841
      %1863 = vmatprep.subr.bf16.mxu0 0
      %1864 = vmatpush1.bf16.msra.mxu0 %v1842
      %1865 = vmatprep.subr.bf16.mxu0 0
      %1866 = vmatpush1.bf16.msra.mxu0 %v1843
      %1867 = vmatprep.subr.bf16.mxu0 0
      %1868 = vmatpush1.bf16.msra.mxu0 %v1844
      %1869 = vmatprep.subr.bf16.mxu0 0
      %1870 = vmatpush1.bf16.msra.mxu0 0
      %1871 = vmatprep.subr.bf16.mxu0 0
      %1872 = vmatpush1.bf16.msra.mxu0 0
      %1873 = vmatprep.subr.bf16.mxu0 0
      %1874 = vmatpush1.bf16.msra.mxu0 0
      %1875 = vmatprep.subr.bf16.mxu0 0
      %1876 = vmatpush1.bf16.msra.mxu0 0
      %1877 = vmatprep.subr.bf16.mxu0 0
      %1878 = vmatpush1.bf16.msra.mxu0 0
      %1879 = vmatprep.subr.bf16.mxu0 0
      %1880 = vmatpush1.bf16.msra.mxu0 0
      %1881 = vmatprep.subr.bf16.mxu0 0
      %1882 = vmatpush1.bf16.msra.mxu0 0
      %1883 = vmatprep.subr.bf16.mxu0 0
      %1884 = vmatpush1.bf16.msra.mxu0 0
      %1885 = vmatprep.mubr.bf16.mxu0 0
      %1886 = vmatmul.mubr.bf16.gmra.mrb[0].mxu0 %v1787
      %v1887 = vpop.f32.mrb[0].mxu0
      %v1888 = vadd.f32 0.0, %v1887
      %v1889 = vpop.f32.mrb[0].mxu0
      %v1890 = vpop.f32.mrb[0].mxu0
      %v1891 = vpop.f32.mrb[0].mxu0
      %1892 = vdwg.mxu0
      %v1909 = vunpack.c.l.b16 %v1770
      %v1910 = vunpack.c.l.b16 %v1771
      %v1911 = vunpack.c.l.b16 %v1772
      %v1912 = vunpack.c.l.b16 %v1773
      %v1913 = vunpack.c.l.b16 %v1774
      %v1914 = vunpack.c.l.b16 %v1775
      %v1915 = vunpack.c.l.b16 %v1776
      %v1916 = vunpack.c.l.b16 %v1777
      %v1917 = vunpack.c.l.b16 %v1778
      %v1918 = vunpack.c.l.b16 %v1779
      %v1919 = vunpack.c.l.b16 %v1780
      %v1920 = vunpack.c.l.b16 %v1781
      %v1921 = vunpack.c.l.b16 %v1782
      %v1922 = vunpack.c.l.b16 %v1783
      %v1923 = vunpack.c.l.b16 %v1784
      %v1924 = vunpack.c.l.b16 %v1785
      %v1925 = vpack.c.b16 %v1910, %v1909
      %v1926 = vpack.c.b16 %v1912, %v1911
      %v1927 = vpack.c.b16 %v1914, %v1913
      %v1928 = vpack.c.b16 %v1916, %v1915
      %v1929 = vpack.c.b16 %v1918, %v1917
      %v1930 = vpack.c.b16 %v1920, %v1919
      %v1931 = vpack.c.b16 %v1922, %v1921
      %v1932 = vpack.c.b16 %v1924, %v1923
      %1941 = vmatprep.subr.bf16.mxu0 0
      %1942 = vmatpush1.bf16.msra.mxu0 %v1925
      %1943 = vmatprep.subr.bf16.mxu0 0
      %1944 = vmatpush1.bf16.msra.mxu0 %v1926
      %1945 = vmatprep.subr.bf16.mxu0 0
      %1946 = vmatpush1.bf16.msra.mxu0 %v1927
      %1947 = vmatprep.subr.bf16.mxu0 0
      %1948 = vmatpush1.bf16.msra.mxu0 %v1928
      %1949 = vmatprep.subr.bf16.mxu0 0
      %1950 = vmatpush1.bf16.msra.mxu0 %v1929
      %1951 = vmatprep.subr.bf16.mxu0 0
      %1952 = vmatpush1.bf16.msra.mxu0 %v1930
      %1953 = vmatprep.subr.bf16.mxu0 0
      %1954 = vmatpush1.bf16.msra.mxu0 %v1931
      %1955 = vmatprep.subr.bf16.mxu0 0
      %1956 = vmatpush1.bf16.msra.mxu0 %v1932
      %1957 = vmatprep.subr.bf16.mxu0 0
      %1958 = vmatpush1.bf16.msra.mxu0 0
      %1959 = vmatprep.subr.bf16.mxu0 0
      %1960 = vmatpush1.bf16.msra.mxu0 0
      %1961 = vmatprep.subr.bf16.mxu0 0
      %1962 = vmatpush1.bf16.msra.mxu0 0
      %1963 = vmatprep.subr.bf16.mxu0 0
      %1964 = vmatpush1.bf16.msra.mxu0 0
      %1965 = vmatprep.subr.bf16.mxu0 0
      %1966 = vmatpush1.bf16.msra.mxu0 0
      %1967 = vmatprep.subr.bf16.mxu0 0
      %1968 = vmatpush1.bf16.msra.mxu0 0
      %1969 = vmatprep.subr.bf16.mxu0 0
      %1970 = vmatpush1.bf16.msra.mxu0 0
      %1971 = vmatprep.subr.bf16.mxu0 0
      %1972 = vmatpush1.bf16.msra.mxu0 0
      %1973 = vmatprep.mubr.bf16.mxu0 0
      %1974 = vmatmul.mubr.bf16.gmra.mrb[0].mxu0 %v1769
      %v1975 = vpop.f32.mrb[0].mxu0
      %v1976 = vadd.f32 %v1888, %v1975
      %v1977 = vpop.f32.mrb[0].mxu0
      %v1978 = vpop.f32.mrb[0].mxu0
      %v1979 = vpop.f32.mrb[0].mxu0
      %1980 = vdwg.mxu0
      %v1981 = vld [vmem:[#allocation5 + $0x2] sm:$0xff]
      %v1982 = vpack.c.bf16 %v1981, %v1981
      %s1983 = scalar_lea.vmem %s7, 128
      %v1984 = vld [vmem:[%s1983] sm:$0xf]
      %v1985 = vld [vmem:[%s1983 + $0x4] sm:$0xf]
      %v1986 = vld [vmem:[%s1983 + $0x8] sm:$0xf]
      %v1987 = vld [vmem:[%s1983 + $0xc] sm:$0xf]
      %v1988 = vld [vmem:[%s1983 + $0x10] sm:$0xf]
      %v1989 = vld [vmem:[%s1983 + $0x14] sm:$0xf]
      %v1990 = vld [vmem:[%s1983 + $0x18] sm:$0xf]
      %v1991 = vld [vmem:[%s1983 + $0x1c] sm:$0xf]
      %v1992 = vld [vmem:[%s1983 + $0x20] sm:$0xf]
      %v1993 = vld [vmem:[%s1983 + $0x24] sm:$0xf]
      %v1994 = vld [vmem:[%s1983 + $0x28] sm:$0xf]
      %v1995 = vld [vmem:[%s1983 + $0x2c] sm:$0xf]
      %v1996 = vld [vmem:[%s1983 + $0x30] sm:$0xf]
      %v1997 = vld [vmem:[%s1983 + $0x34] sm:$0xf]
      %v1998 = vld [vmem:[%s1983 + $0x38] sm:$0xf]
      %v1999 = vld [vmem:[%s1983 + $0x3c] sm:$0xf]
      %v2016 = vunpack.c.l.b16 %v1984
      %v2017 = vunpack.c.l.b16 %v1985
      %v2018 = vunpack.c.l.b16 %v1986
      %v2019 = vunpack.c.l.b16 %v1987
      %v2020 = vunpack.c.l.b16 %v1988
      %v2021 = vunpack.c.l.b16 %v1989
      %v2022 = vunpack.c.l.b16 %v1990
      %v2023 = vunpack.c.l.b16 %v1991
      %v2024 = vunpack.c.l.b16 %v1992
      %v2025 = vunpack.c.l.b16 %v1993
      %v2026 = vunpack.c.l.b16 %v1994
      %v2027 = vunpack.c.l.b16 %v1995
      %v2028 = vunpack.c.l.b16 %v1996
      %v2029 = vunpack.c.l.b16 %v1997
      %v2030 = vunpack.c.l.b16 %v1998
      %v2031 = vunpack.c.l.b16 %v1999
      %v2032 = vpack.c.b16 %v2017, %v2016
      %v2033 = vpack.c.b16 %v2019, %v2018
      %v2034 = vpack.c.b16 %v2021, %v2020
      %v2035 = vpack.c.b16 %v2023, %v2022
      %v2036 = vpack.c.b16 %v2025, %v2024
      %v2037 = vpack.c.b16 %v2027, %v2026
      %v2038 = vpack.c.b16 %v2029, %v2028
      %v2039 = vpack.c.b16 %v2031, %v2030
      %2048 = vmatprep.subr.bf16.mxu0 0
      %2049 = vmatpush1.bf16.msra.mxu0 %v2032
      %2050 = vmatprep.subr.bf16.mxu0 0
      %2051 = vmatpush1.bf16.msra.mxu0 %v2033
      %2052 = vmatprep.subr.bf16.mxu0 0
      %2053 = vmatpush1.bf16.msra.mxu0 %v2034
      %2054 = vmatprep.subr.bf16.mxu0 0
      %2055 = vmatpush1.bf16.msra.mxu0 %v2035
      %2056 = vmatprep.subr.bf16.mxu0 0
      %2057 = vmatpush1.bf16.msra.mxu0 %v2036
      %2058 = vmatprep.subr.bf16.mxu0 0
      %2059 = vmatpush1.bf16.msra.mxu0 %v2037
      %2060 = vmatprep.subr.bf16.mxu0 0
      %2061 = vmatpush1.bf16.msra.mxu0 %v2038
      %2062 = vmatprep.subr.bf16.mxu0 0
      %2063 = vmatpush1.bf16.msra.mxu0 %v2039
      %2064 = vmatprep.subr.bf16.mxu0 0
      %2065 = vmatpush1.bf16.msra.mxu0 0
      %2066 = vmatprep.subr.bf16.mxu0 0
      %2067 = vmatpush1.bf16.msra.mxu0 0
      %2068 = vmatprep.subr.bf16.mxu0 0
      %2069 = vmatpush1.bf16.msra.mxu0 0
      %2070 = vmatprep.subr.bf16.mxu0 0
      %2071 = vmatpush1.bf16.msra.mxu0 0
      %2072 = vmatprep.subr.bf16.mxu0 0
      %2073 = vmatpush1.bf16.msra.mxu0 0
      %2074 = vmatprep.subr.bf16.mxu0 0
      %2075 = vmatpush1.bf16.msra.mxu0 0
      %2076 = vmatprep.subr.bf16.mxu0 0
      %2077 = vmatpush1.bf16.msra.mxu0 0
      %2078 = vmatprep.subr.bf16.mxu0 0
      %2079 = vmatpush1.bf16.msra.mxu0 0
      %2080 = vmatprep.mubr.bf16.mxu0 0
      %2081 = vmatmul.mubr.bf16.gmra.mrb[0].mxu0 %v1982
      %v2082 = vpop.f32.mrb[0].mxu0
      %v2083 = vadd.f32 0.0, %v2082
      %v2084 = vpop.f32.mrb[0].mxu0
      %v2085 = vpop.f32.mrb[0].mxu0
      %v2086 = vpop.f32.mrb[0].mxu0
      %2087 = vdwg.mxu0
      %v2088 = vadd.f32 %v1976, %v2083
      %v2089 = vld [vmem:[%s8] sm:$0x1]
      %v2091 = vlaneseq
      %v2092 = vshrl.u32 %v2091, 7
      %v2093 = vsub.s32 0, %v2092
      %v2094 = vrot.slane %v2089, %v2093
      %v2096 = vadd.f32 %v2088, %v2094
      %v2097 = vmax.f32 %v2096, 0.0
      %v2098 = vld [vmem:[%s15] sm:$0xff]
      %v2099 = vld [vmem:[%s15 + $0x8] sm:$0xff]
      %v2100 = vld [vmem:[%s15 + $0x10] sm:$0xff]
      %v2101 = vld [vmem:[%s15 + $0x18] sm:$0xff]
      %v2102 = vld [vmem:[%s15 + $0x20] sm:$0xff]
      %v2103 = vld [vmem:[%s15 + $0x28] sm:$0xff]
      %v2104 = vld [vmem:[%s15 + $0x30] sm:$0xff]
      %v2105 = vld [vmem:[%s15 + $0x38] sm:$0xff]
      %v2106 = vld [vmem:[%s15 + $0x40] sm:$0xff]
      %v2107 = vld [vmem:[%s15 + $0x48] sm:$0xff]
      %v2108 = vld [vmem:[%s15 + $0x50] sm:$0xff]
      %v2109 = vld [vmem:[%s15 + $0x58] sm:$0xff]
      %v2110 = vld [vmem:[%s15 + $0x60] sm:$0xff]
      %v2111 = vld [vmem:[%s15 + $0x68] sm:$0xff]
      %v2112 = vld [vmem:[%s15 + $0x70] sm:$0xff]
      %v2113 = vld [vmem:[%s15 + $0x78] sm:$0xff]
      %2114 = vmatprep.subr.mxu0 0.0
      %2115 = vmatpush1.msra.mxu0 %v2098
      %2116 = vmatprep.subr.mxu0 0.0
      %2117 = vmatpush1.msra.mxu0 %v2099
      %2118 = vmatprep.subr.mxu0 0.0
      %2119 = vmatpush1.msra.mxu0 %v2100
      %2120 = vmatprep.subr.mxu0 0.0
      %2121 = vmatpush1.msra.mxu0 %v2101
      %2122 = vmatprep.subr.mxu0 0.0
      %2123 = vmatpush1.msra.mxu0 %v2102
      %2124 = vmatprep.subr.mxu0 0.0
      %2125 = vmatpush1.msra.mxu0 %v2103
      %2126 = vmatprep.subr.mxu0 0.0
      %2127 = vmatpush1.msra.mxu0 %v2104
      %2128 = vmatprep.subr.mxu0 0.0
      %2129 = vmatpush1.msra.mxu0 %v2105
      %2130 = vmatprep.subr.mxu0 0.0
      %2131 = vmatpush1.msra.mxu0 %v2106
      %2132 = vmatprep.subr.mxu0 0.0
      %2133 = vmatpush1.msra.mxu0 %v2107
      %2134 = vmatprep.subr.mxu0 0.0
      %2135 = vmatpush1.msra.mxu0 %v2108
      %2136 = vmatprep.subr.mxu0 0.0
      %2137 = vmatpush1.msra.mxu0 %v2109
      %2138 = vmatprep.subr.mxu0 0.0
      %2139 = vmatpush1.msra.mxu0 %v2110
      %2140 = vmatprep.subr.mxu0 0.0
      %2141 = vmatpush1.msra.mxu0 %v2111
      %2142 = vmatprep.subr.mxu0 0.0
      %2143 = vmatpush1.msra.mxu0 %v2112
      %2144 = vmatprep.subr.mxu0 0.0
      %2145 = vmatpush1.msra.mxu0 %v2113
      %2146 = vmatprep.subr.mxu0 0.0
      %2147 = vmatpush1.msra.mxu0 0.0
      %2148 = vmatprep.subr.mxu0 0.0
      %2149 = vmatpush1.msra.mxu0 0.0
      %2150 = vmatprep.subr.mxu0 0.0
      %2151 = vmatpush1.msra.mxu0 0.0
      %2152 = vmatprep.subr.mxu0 0.0
      %2153 = vmatpush1.msra.mxu0 0.0
      %2154 = vmatprep.subr.mxu0 0.0
      %2155 = vmatpush1.msra.mxu0 0.0
      %2156 = vmatprep.subr.mxu0 0.0
      %2157 = vmatpush1.msra.mxu0 0.0
      %2158 = vmatprep.subr.mxu0 0.0
      %2159 = vmatpush1.msra.mxu0 0.0
      %2160 = vmatprep.subr.mxu0 0.0
      %2161 = vmatpush1.msra.mxu0 0.0
      %2162 = vmatprep.subr.mxu0 0.0
      %2163 = vmatpush1.msra.mxu0 0.0
      %2164 = vmatprep.subr.mxu0 0.0
      %2165 = vmatpush1.msra.mxu0 0.0
      %2166 = vmatprep.subr.mxu0 0.0
      %2167 = vmatpush1.msra.mxu0 0.0
      %2168 = vmatprep.subr.mxu0 0.0
      %2169 = vmatpush1.msra.mxu0 0.0
      %2170 = vmatprep.subr.mxu0 0.0
      %2171 = vmatpush1.msra.mxu0 0.0
      %2172 = vmatprep.subr.mxu0 0.0
      %2173 = vmatpush1.msra.mxu0 0.0
      %2174 = vmatprep.subr.mxu0 0.0
      %2175 = vmatpush1.msra.mxu0 0.0
      %2176 = vmatprep.subr.mxu0 0.0
      %2177 = vmatpush1.msra.mxu0 0.0
      %2178 = vmatprep.mubr.f32.mxu0 0.0
      %2179 = vmatmul.mubr.f32.gmra.mrb[0].mxu0 %v2097
      %v2180 = vpop.f32.mrb[0].mxu0
      %v2181 = vadd.f32 0.0, %v2180
      %v2182 = vpop.f32.mrb[0].mxu0
      %2183 = vdwg.mxu0
      %v2184 = vld [vmem:[%s16] sm:$0xff]
      %v2185 = vld [vmem:[%s16 + $0x8] sm:$0xff]
      %v2186 = vld [vmem:[%s16 + $0x10] sm:$0xff]
      %v2187 = vld [vmem:[%s16 + $0x18] sm:$0xff]
      %v2188 = vld [vmem:[%s16 + $0x20] sm:$0xff]
      %v2189 = vld [vmem:[%s16 + $0x28] sm:$0xff]
      %v2190 = vld [vmem:[%s16 + $0x30] sm:$0xff]
      %v2191 = vld [vmem:[%s16 + $0x38] sm:$0xff]
      %v2192 = vld [vmem:[%s16 + $0x40] sm:$0xff]
      %v2193 = vld [vmem:[%s16 + $0x48] sm:$0xff]
      %v2194 = vld [vmem:[%s16 + $0x50] sm:$0xff]
      %v2195 = vld [vmem:[%s16 + $0x58] sm:$0xff]
      %v2196 = vld [vmem:[%s16 + $0x60] sm:$0xff]
      %v2197 = vld [vmem:[%s16 + $0x68] sm:$0xff]
      %v2198 = vld [vmem:[%s16 + $0x70] sm:$0xff]
      %v2199 = vld [vmem:[%s16 + $0x78] sm:$0xff]
      %2200 = vmatprep.subr.mxu0 0.0
      %2201 = vmatpush1.msra.mxu0 %v2184
      %2202 = vmatprep.subr.mxu0 0.0
      %2203 = vmatpush1.msra.mxu0 %v2185
      %2204 = vmatprep.subr.mxu0 0.0
      %2205 = vmatpush1.msra.mxu0 %v2186
      %2206 = vmatprep.subr.mxu0 0.0
      %2207 = vmatpush1.msra.mxu0 %v2187
      %2208 = vmatprep.subr.mxu0 0.0
      %2209 = vmatpush1.msra.mxu0 %v2188
      %2210 = vmatprep.subr.mxu0 0.0
      %2211 = vmatpush1.msra.mxu0 %v2189
      %2212 = vmatprep.subr.mxu0 0.0
      %2213 = vmatpush1.msra.mxu0 %v2190
      %2214 = vmatprep.subr.mxu0 0.0
      %2215 = vmatpush1.msra.mxu0 %v2191
      %2216 = vmatprep.subr.mxu0 0.0
      %2217 = vmatpush1.msra.mxu0 %v2192
      %2218 = vmatprep.subr.mxu0 0.0
      %2219 = vmatpush1.msra.mxu0 %v2193
      %2220 = vmatprep.subr.mxu0 0.0
      %2221 = vmatpush1.msra.mxu0 %v2194
      %2222 = vmatprep.subr.mxu0 0.0
      %2223 = vmatpush1.msra.mxu0 %v2195
      %2224 = vmatprep.subr.mxu0 0.0
      %2225 = vmatpush1.msra.mxu0 %v2196
      %2226 = vmatprep.subr.mxu0 0.0
      %2227 = vmatpush1.msra.mxu0 %v2197
      %2228 = vmatprep.subr.mxu0 0.0
      %2229 = vmatpush1.msra.mxu0 %v2198
      %2230 = vmatprep.subr.mxu0 0.0
      %2231 = vmatpush1.msra.mxu0 %v2199
      %2232 = vmatprep.subr.mxu0 0.0
      %2233 = vmatpush1.msra.mxu0 0.0
      %2234 = vmatprep.subr.mxu0 0.0
      %2235 = vmatpush1.msra.mxu0 0.0
      %2236 = vmatprep.subr.mxu0 0.0
      %2237 = vmatpush1.msra.mxu0 0.0
      %2238 = vmatprep.subr.mxu0 0.0
      %2239 = vmatpush1.msra.mxu0 0.0
      %2240 = vmatprep.subr.mxu0 0.0
      %2241 = vmatpush1.msra.mxu0 0.0
      %2242 = vmatprep.subr.mxu0 0.0
      %2243 = vmatpush1.msra.mxu0 0.0
      %2244 = vmatprep.subr.mxu0 0.0
      %2245 = vmatpush1.msra.mxu0 0.0
      %2246 = vmatprep.subr.mxu0 0.0
      %2247 = vmatpush1.msra.mxu0 0.0
      %2248 = vmatprep.subr.mxu0 0.0
      %2249 = vmatpush1.msra.mxu0 0.0
      %2250 = vmatprep.subr.mxu0 0.0
      %2251 = vmatpush1.msra.mxu0 0.0
      %2252 = vmatprep.subr.mxu0 0.0
      %2253 = vmatpush1.msra.mxu0 0.0
      %2254 = vmatprep.subr.mxu0 0.0
      %2255 = vmatpush1.msra.mxu0 0.0
      %2256 = vmatprep.subr.mxu0 0.0
      %2257 = vmatpush1.msra.mxu0 0.0
      %2258 = vmatprep.subr.mxu0 0.0
      %2259 = vmatpush1.msra.mxu0 0.0
      %2260 = vmatprep.subr.mxu0 0.0
      %2261 = vmatpush1.msra.mxu0 0.0
      %2262 = vmatprep.subr.mxu0 0.0
      %2263 = vmatpush1.msra.mxu0 0.0
      %2264 = vmatprep.mubr.f32.mxu0 0.0
      %2265 = vmatmul.mubr.f32.gmra.mrb[0].mxu0 %v2097
      %v2266 = vpop.f32.mrb[0].mxu0
      %v2267 = vadd.f32 0.0, %v2266
      %v2268 = vpop.f32.mrb[0].mxu0
      %2269 = vdwg.mxu0
      %v2270 = vmax.f32 %v2181, %v2267
      %v2271 = vld [vmem:[%s17] sm:$0xf]
      %vm2272 = vcmask 64512
      %v2274 = vsel %vm2272, %v2271, 0
      %2276 = vmatprep.subr.mxu0 0.0
      %2277 = vmatpush1.msra.mxu0 %v2270
      %2278 = vmatprep.subr.mxu0 0.0
      %2279 = vmatpush1.msra.mxu0 0.0
      %2280 = vmatprep.subr.mxu0 0.0
      %2281 = vmatpush1.msra.mxu0 0.0
      %2282 = vmatprep.subr.mxu0 0.0
      %2283 = vmatpush1.msra.mxu0 0.0
      %2284 = vmatprep.subr.mxu0 0.0
      %2285 = vmatpush1.msra.mxu0 0.0
      %2286 = vmatprep.subr.mxu0 0.0
      %2287 = vmatpush1.msra.mxu0 0.0
      %2288 = vmatprep.subr.mxu0 0.0
      %2289 = vmatpush1.msra.mxu0 0.0
      %2290 = vmatprep.subr.mxu0 0.0
      %2291 = vmatpush1.msra.mxu0 0.0
      %2292 = vmatprep.subr.mxu0 0.0
      %2293 = vmatpush1.msra.mxu0 0.0
      %2294 = vmatprep.subr.mxu0 0.0
      %2295 = vmatpush1.msra.mxu0 0.0
      %2296 = vmatprep.subr.mxu0 0.0
      %2297 = vmatpush1.msra.mxu0 0.0
      %2298 = vmatprep.subr.mxu0 0.0
      %2299 = vmatpush1.msra.mxu0 0.0
      %2300 = vmatprep.subr.mxu0 0.0
      %2301 = vmatpush1.msra.mxu0 0.0
      %2302 = vmatprep.subr.mxu0 0.0
      %2303 = vmatpush1.msra.mxu0 0.0
      %2304 = vmatprep.subr.mxu0 0.0
      %2305 = vmatpush1.msra.mxu0 0.0
      %2306 = vmatprep.subr.mxu0 0.0
      %2307 = vmatpush1.msra.mxu0 0.0
      %2308 = vmatprep.subr.mxu0 0.0
      %2309 = vmatpush1.msra.mxu0 0.0
      %2310 = vmatprep.subr.mxu0 0.0
      %2311 = vmatpush1.msra.mxu0 0.0
      %2312 = vmatprep.subr.mxu0 0.0
      %2313 = vmatpush1.msra.mxu0 0.0
      %2314 = vmatprep.subr.mxu0 0.0
      %2315 = vmatpush1.msra.mxu0 0.0
      %2316 = vmatprep.subr.mxu0 0.0
      %2317 = vmatpush1.msra.mxu0 0.0
      %2318 = vmatprep.subr.mxu0 0.0
      %2319 = vmatpush1.msra.mxu0 0.0
      %2320 = vmatprep.subr.mxu0 0.0
      %2321 = vmatpush1.msra.mxu0 0.0
      %2322 = vmatprep.subr.mxu0 0.0
      %2323 = vmatpush1.msra.mxu0 0.0
      %2324 = vmatprep.subr.mxu0 0.0
      %2325 = vmatpush1.msra.mxu0 0.0
      %2326 = vmatprep.subr.mxu0 0.0
      %2327 = vmatpush1.msra.mxu0 0.0
      %2328 = vmatprep.subr.mxu0 0.0
      %2329 = vmatpush1.msra.mxu0 0.0
      %2330 = vmatprep.subr.mxu0 0.0
      %2331 = vmatpush1.msra.mxu0 0.0
      %2332 = vmatprep.subr.mxu0 0.0
      %2333 = vmatpush1.msra.mxu0 0.0
      %2334 = vmatprep.subr.mxu0 0.0
      %2335 = vmatpush1.msra.mxu0 0.0
      %2336 = vmatprep.subr.mxu0 0.0
      %2337 = vmatpush1.msra.mxu0 0.0
      %2338 = vmatprep.subr.mxu0 0.0
      %2339 = vmatpush1.msra.mxu0 0.0
      %2340 = vmatprep.mubr.f32.mxu0 0.0
      %2341 = vmatmul.mubr.f32.gmra.mrb[0].mxu0 %v2274
      %v2342 = vpop.f32.mrb[0].mxu0
      %v2343 = vadd.f32 0.0, %v2342
      %v2344 = vpop.f32.mrb[0].mxu0
      %2345 = vdwg.mxu0
      %v2346 = vld [vmem:[%s18] sm:$0xf]
      %v2348 = vsel %vm2272, %v2346, 0
      %2350 = vmatprep.subr.mxu0 0.0
      %2351 = vmatpush1.msra.mxu0 %v2270
      %2352 = vmatprep.subr.mxu0 0.0
      %2353 = vmatpush1.msra.mxu0 0.0
      %2354 = vmatprep.subr.mxu0 0.0
      %2355 = vmatpush1.msra.mxu0 0.0
      %2356 = vmatprep.subr.mxu0 0.0
      %2357 = vmatpush1.msra.mxu0 0.0
      %2358 = vmatprep.subr.mxu0 0.0
      %2359 = vmatpush1.msra.mxu0 0.0
      %2360 = vmatprep.subr.mxu0 0.0
      %2361 = vmatpush1.msra.mxu0 0.0
      %2362 = vmatprep.subr.mxu0 0.0
      %2363 = vmatpush1.msra.mxu0 0.0
      %2364 = vmatprep.subr.mxu0 0.0
      %2365 = vmatpush1.msra.mxu0 0.0
      %2366 = vmatprep.subr.mxu0 0.0
      %2367 = vmatpush1.msra.mxu0 0.0
      %2368 = vmatprep.subr.mxu0 0.0
      %2369 = vmatpush1.msra.mxu0 0.0
      %2370 = vmatprep.subr.mxu0 0.0
      %2371 = vmatpush1.msra.mxu0 0.0
      %2372 = vmatprep.subr.mxu0 0.0
      %2373 = vmatpush1.msra.mxu0 0.0
      %2374 = vmatprep.subr.mxu0 0.0
      %2375 = vmatpush1.msra.mxu0 0.0
      %2376 = vmatprep.subr.mxu0 0.0
      %2377 = vmatpush1.msra.mxu0 0.0
      %2378 = vmatprep.subr.mxu0 0.0
      %2379 = vmatpush1.msra.mxu0 0.0
      %2380 = vmatprep.subr.mxu0 0.0
      %2381 = vmatpush1.msra.mxu0 0.0
      %2382 = vmatprep.subr.mxu0 0.0
      %2383 = vmatpush1.msra.mxu0 0.0
      %2384 = vmatprep.subr.mxu0 0.0
      %2385 = vmatpush1.msra.mxu0 0.0
      %2386 = vmatprep.subr.mxu0 0.0
      %2387 = vmatpush1.msra.mxu0 0.0
      %2388 = vmatprep.subr.mxu0 0.0
      %2389 = vmatpush1.msra.mxu0 0.0
      %2390 = vmatprep.subr.mxu0 0.0
      %2391 = vmatpush1.msra.mxu0 0.0
      %2392 = vmatprep.subr.mxu0 0.0
      %2393 = vmatpush1.msra.mxu0 0.0
      %2394 = vmatprep.subr.mxu0 0.0
      %2395 = vmatpush1.msra.mxu0 0.0
      %2396 = vmatprep.subr.mxu0 0.0
      %2397 = vmatpush1.msra.mxu0 0.0
      %2398 = vmatprep.subr.mxu0 0.0
      %2399 = vmatpush1.msra.mxu0 0.0
      %2400 = vmatprep.subr.mxu0 0.0
      %2401 = vmatpush1.msra.mxu0 0.0
      %2402 = vmatprep.subr.mxu0 0.0
      %2403 = vmatpush1.msra.mxu0 0.0
      %2404 = vmatprep.subr.mxu0 0.0
      %2405 = vmatpush1.msra.mxu0 0.0
      %2406 = vmatprep.subr.mxu0 0.0
      %2407 = vmatpush1.msra.mxu0 0.0
      %2408 = vmatprep.subr.mxu0 0.0
      %2409 = vmatpush1.msra.mxu0 0.0
      %2410 = vmatprep.subr.mxu0 0.0
      %2411 = vmatpush1.msra.mxu0 0.0
      %2412 = vmatprep.subr.mxu0 0.0
      %2413 = vmatpush1.msra.mxu0 0.0
      %2414 = vmatprep.mubr.f32.mxu0 0.0
      %2415 = vmatmul.mubr.f32.gmra.mrb[0].mxu0 %v2348
      %v2416 = vpop.f32.mrb[0].mxu0
      %v2417 = vadd.f32 0.0, %v2416
      %v2418 = vpop.f32.mrb[0].mxu0
      %2419 = vdwg.mxu0
      %v2420 = vmax.f32 %v2343, %v2417
      %vm2421 = vcmask 521216
      %2422 = vst.msk [vmem:[#allocation6] sm:$0x3f] %vm2421, 0.0
      %vm2423 = vcmask 519168
      %2424 = vst.msk [vmem:[#allocation6 + $0x1] sm:$0xf] %vm2423, %v2420
      %v2425 = vld [vmem:[#allocation6] sm:$0xf]
      %v2426 = vpack.c.bf16 %v2425, %v2425
      %v2427 = vld [vmem:[%s9] sm:$0xf]
      %v2428 = vld [vmem:[%s9 + $0x4] sm:$0xf]
      %v2429 = vld [vmem:[%s9 + $0x8] sm:$0xf]
      %v2430 = vld [vmem:[%s9 + $0xc] sm:$0xf]
      %v2431 = vld [vmem:[%s9 + $0x10] sm:$0xf]
      %v2432 = vld [vmem:[%s9 + $0x14] sm:$0xf]
      %v2433 = vld [vmem:[%s9 + $0x18] sm:$0xf]
      %v2434 = vld [vmem:[%s9 + $0x1c] sm:$0xf]
      %v2435 = vld [vmem:[#allocation6 + $0x1] sm:$0xf]
      %v2436 = vpack.c.bf16 %v2435, %v2435
      %s2437 = scalar_lea.vmem %s9, 32
      %v2438 = vld [vmem:[%s2437] sm:$0xf]
      %v2439 = vld [vmem:[%s2437 + $0x4] sm:$0xf]
      %v2440 = vld [vmem:[%s2437 + $0x8] sm:$0xf]
      %v2441 = vld [vmem:[%s2437 + $0xc] sm:$0xf]
      %v2442 = vld [vmem:[%s2437 + $0x10] sm:$0xf]
      %v2443 = vld [vmem:[%s2437 + $0x14] sm:$0xf]
      %v2444 = vld [vmem:[%s2437 + $0x18] sm:$0xf]
      %v2445 = vld [vmem:[%s2437 + $0x1c] sm:$0xf]
      %v2454 = vunpack.c.l.b16 %v2438
      %v2455 = vunpack.c.l.b16 %v2439
      %v2456 = vunpack.c.l.b16 %v2440
      %v2457 = vunpack.c.l.b16 %v2441
      %v2458 = vunpack.c.l.b16 %v2442
      %v2459 = vunpack.c.l.b16 %v2443
      %v2460 = vunpack.c.l.b16 %v2444
      %v2461 = vunpack.c.l.b16 %v2445
      %v2462 = vpack.c.b16 %v2455, %v2454
      %v2463 = vpack.c.b16 %v2457, %v2456
      %v2464 = vpack.c.b16 %v2459, %v2458
      %v2465 = vpack.c.b16 %v2461, %v2460
      %v2471 = vsel %vm1517, %v2436, 0
      %2473 = vmatprep.subr.bf16.mxu0 0
      %2474 = vmatpush1.bf16.msra.mxu0 %v2462
      %2475 = vmatprep.subr.bf16.mxu0 0
      %2476 = vmatpush1.bf16.msra.mxu0 %v2463
      %2477 = vmatprep.subr.bf16.mxu0 0
      %2478 = vmatpush1.bf16.msra.mxu0 %v2464
      %2479 = vmatprep.subr.bf16.mxu0 0
      %2480 = vmatpush1.bf16.msra.mxu0 %v2465
      %2481 = vmatprep.subr.bf16.mxu0 0
      %2482 = vmatpush1.bf16.msra.mxu0 0
      %2483 = vmatprep.subr.bf16.mxu0 0
      %2484 = vmatpush1.bf16.msra.mxu0 0
      %2485 = vmatprep.subr.bf16.mxu0 0
      %2486 = vmatpush1.bf16.msra.mxu0 0
      %2487 = vmatprep.subr.bf16.mxu0 0
      %2488 = vmatpush1.bf16.msra.mxu0 0
      %2489 = vmatprep.subr.bf16.mxu0 0
      %2490 = vmatpush1.bf16.msra.mxu0 0
      %2491 = vmatprep.subr.bf16.mxu0 0
      %2492 = vmatpush1.bf16.msra.mxu0 0
      %2493 = vmatprep.subr.bf16.mxu0 0
      %2494 = vmatpush1.bf16.msra.mxu0 0
      %2495 = vmatprep.subr.bf16.mxu0 0
      %2496 = vmatpush1.bf16.msra.mxu0 0
      %2497 = vmatprep.subr.bf16.mxu0 0
      %2498 = vmatpush1.bf16.msra.mxu0 0
      %2499 = vmatprep.subr.bf16.mxu0 0
      %2500 = vmatpush1.bf16.msra.mxu0 0
      %2501 = vmatprep.subr.bf16.mxu0 0
      %2502 = vmatpush1.bf16.msra.mxu0 0
      %2503 = vmatprep.subr.bf16.mxu0 0
      %2504 = vmatpush1.bf16.msra.mxu0 0
      %2505 = vmatprep.mubr.bf16.mxu0 0
      %2506 = vmatmul.mubr.bf16.gmra.mrb[0].mxu0 %v2471
      %v2507 = vpop.f32.mrb[0].mxu0
      %v2508 = vadd.f32 0.0, %v2507
      %v2509 = vpop.f32.mrb[0].mxu0
      %v2510 = vpop.f32.mrb[0].mxu0
      %v2511 = vpop.f32.mrb[0].mxu0
      %2512 = vdwg.mxu0
      %v2521 = vunpack.c.l.b16 %v2427
      %v2522 = vunpack.c.l.b16 %v2428
      %v2523 = vunpack.c.l.b16 %v2429
      %v2524 = vunpack.c.l.b16 %v2430
      %v2525 = vunpack.c.l.b16 %v2431
      %v2526 = vunpack.c.l.b16 %v2432
      %v2527 = vunpack.c.l.b16 %v2433
      %v2528 = vunpack.c.l.b16 %v2434
      %v2529 = vpack.c.b16 %v2522, %v2521
      %v2530 = vpack.c.b16 %v2524, %v2523
      %v2531 = vpack.c.b16 %v2526, %v2525
      %v2532 = vpack.c.b16 %v2528, %v2527
      %v2538 = vsel %vm1517, %v2426, 0
      %2540 = vmatprep.subr.bf16.mxu0 0
      %2541 = vmatpush1.bf16.msra.mxu0 %v2529
      %2542 = vmatprep.subr.bf16.mxu0 0
      %2543 = vmatpush1.bf16.msra.mxu0 %v2530
      %2544 = vmatprep.subr.bf16.mxu0 0
      %2545 = vmatpush1.bf16.msra.mxu0 %v2531
      %2546 = vmatprep.subr.bf16.mxu0 0
      %2547 = vmatpush1.bf16.msra.mxu0 %v2532
      %2548 = vmatprep.subr.bf16.mxu0 0
      %2549 = vmatpush1.bf16.msra.mxu0 0
      %2550 = vmatprep.subr.bf16.mxu0 0
      %2551 = vmatpush1.bf16.msra.mxu0 0
      %2552 = vmatprep.subr.bf16.mxu0 0
      %2553 = vmatpush1.bf16.msra.mxu0 0
      %2554 = vmatprep.subr.bf16.mxu0 0
      %2555 = vmatpush1.bf16.msra.mxu0 0
      %2556 = vmatprep.subr.bf16.mxu0 0
      %2557 = vmatpush1.bf16.msra.mxu0 0
      %2558 = vmatprep.subr.bf16.mxu0 0
      %2559 = vmatpush1.bf16.msra.mxu0 0
      %2560 = vmatprep.subr.bf16.mxu0 0
      %2561 = vmatpush1.bf16.msra.mxu0 0
      %2562 = vmatprep.subr.bf16.mxu0 0
      %2563 = vmatpush1.bf16.msra.mxu0 0
      %2564 = vmatprep.subr.bf16.mxu0 0
      %2565 = vmatpush1.bf16.msra.mxu0 0
      %2566 = vmatprep.subr.bf16.mxu0 0
      %2567 = vmatpush1.bf16.msra.mxu0 0
      %2568 = vmatprep.subr.bf16.mxu0 0
      %2569 = vmatpush1.bf16.msra.mxu0 0
      %2570 = vmatprep.subr.bf16.mxu0 0
      %2571 = vmatpush1.bf16.msra.mxu0 0
      %2572 = vmatprep.mubr.bf16.mxu0 0
      %2573 = vmatmul.mubr.bf16.gmra.mrb[0].mxu0 %v2538
      %v2574 = vpop.f32.mrb[0].mxu0
      %v2575 = vadd.f32 %v2508, %v2574
      %v2576 = vpop.f32.mrb[0].mxu0
      %v2577 = vpop.f32.mrb[0].mxu0
      %v2578 = vpop.f32.mrb[0].mxu0
      %2579 = vdwg.mxu0
      %v2580 = vld [vmem:[#allocation6 + $0x2] sm:$0xf]
      %v2581 = vpack.c.bf16 %v2580, %v2580
      %s2582 = scalar_lea.vmem %s9, 64
      %v2583 = vld [vmem:[%s2582] sm:$0xf]
      %v2584 = vld [vmem:[%s2582 + $0x4] sm:$0xf]
      %v2585 = vld [vmem:[%s2582 + $0x8] sm:$0xf]
      %v2586 = vld [vmem:[%s2582 + $0xc] sm:$0xf]
      %v2587 = vld [vmem:[%s2582 + $0x10] sm:$0xf]
      %v2588 = vld [vmem:[%s2582 + $0x14] sm:$0xf]
      %v2589 = vld [vmem:[%s2582 + $0x18] sm:$0xf]
      %v2590 = vld [vmem:[%s2582 + $0x1c] sm:$0xf]
      %v2599 = vunpack.c.l.b16 %v2583
      %v2600 = vunpack.c.l.b16 %v2584
      %v2601 = vunpack.c.l.b16 %v2585
      %v2602 = vunpack.c.l.b16 %v2586
      %v2603 = vunpack.c.l.b16 %v2587
      %v2604 = vunpack.c.l.b16 %v2588
      %v2605 = vunpack.c.l.b16 %v2589
      %v2606 = vunpack.c.l.b16 %v2590
      %v2607 = vpack.c.b16 %v2600, %v2599
      %v2608 = vpack.c.b16 %v2602, %v2601
      %v2609 = vpack.c.b16 %v2604, %v2603
      %v2610 = vpack.c.b16 %v2606, %v2605
      %v2616 = vsel %vm1517, %v2581, 0
      %2618 = vmatprep.subr.bf16.mxu0 0
      %2619 = vmatpush1.bf16.msra.mxu0 %v2607
      %2620 = vmatprep.subr.bf16.mxu0 0
      %2621 = vmatpush1.bf16.msra.mxu0 %v2608
      %2622 = vmatprep.subr.bf16.mxu0 0
      %2623 = vmatpush1.bf16.msra.mxu0 %v2609
      %2624 = vmatprep.subr.bf16.mxu0 0
      %2625 = vmatpush1.bf16.msra.mxu0 %v2610
      %2626 = vmatprep.subr.bf16.mxu0 0
      %2627 = vmatpush1.bf16.msra.mxu0 0
      %2628 = vmatprep.subr.bf16.mxu0 0
      %2629 = vmatpush1.bf16.msra.mxu0 0
      %2630 = vmatprep.subr.bf16.mxu0 0
      %2631 = vmatpush1.bf16.msra.mxu0 0
      %2632 = vmatprep.subr.bf16.mxu0 0
      %2633 = vmatpush1.bf16.msra.mxu0 0
      %2634 = vmatprep.subr.bf16.mxu0 0
      %2635 = vmatpush1.bf16.msra.mxu0 0
      %2636 = vmatprep.subr.bf16.mxu0 0
      %2637 = vmatpush1.bf16.msra.mxu0 0
      %2638 = vmatprep.subr.bf16.mxu0 0
      %2639 = vmatpush1.bf16.msra.mxu0 0
      %2640 = vmatprep.subr.bf16.mxu0 0
      %2641 = vmatpush1.bf16.msra.mxu0 0
      %2642 = vmatprep.subr.bf16.mxu0 0
      %2643 = vmatpush1.bf16.msra.mxu0 0
      %2644 = vmatprep.subr.bf16.mxu0 0
      %2645 = vmatpush1.bf16.msra.mxu0 0
      %2646 = vmatprep.subr.bf16.mxu0 0
      %2647 = vmatpush1.bf16.msra.mxu0 0
      %2648 = vmatprep.subr.bf16.mxu0 0
      %2649 = vmatpush1.bf16.msra.mxu0 0
      %2650 = vmatprep.mubr.bf16.mxu0 0
      %2651 = vmatmul.mubr.bf16.gmra.mrb[0].mxu0 %v2616
      %v2652 = vpop.f32.mrb[0].mxu0
      %v2653 = vadd.f32 0.0, %v2652
      %v2654 = vpop.f32.mrb[0].mxu0
      %v2655 = vpop.f32.mrb[0].mxu0
      %v2656 = vpop.f32.mrb[0].mxu0
      %2657 = vdwg.mxu0
      %v2658 = vadd.f32 %v2575, %v2653
      %v2659 = vld [vmem:[%s10] sm:$0x1]
      %v2661 = vlaneseq
      %v2662 = vshrl.u32 %v2661, 7
      %v2663 = vsub.s32 0, %v2662
      %v2664 = vrot.slane %v2659, %v2663
      %v2666 = vadd.f32 %v2658, %v2664
      %v2667 = vmax.f32 %v2666, 0.0
      %2668 = vst [vmem:[%s600] sm:$0xf] %v2667
      %p2669 = scmp.lt.s32.totalorder %s30, 1
      %s2670 = scalar_select %p2669, %s30, 1
      %s2671 = smul.addr %s2670, 4
      %s2672 = scalar_lea.vmem %s19, %s2671
      // Predicated region
      $region97: #{feature_extractor.1} parent=95 // pred_check
        %p2673 = pneg %p452
      $region98: #{feature_extractor.1} parent=95 // pred_check_branch
        %2675 = sbr.rel (%p2673) target = $region100
      $region99: #{feature_extractor.1} parent=95 // pred_region
        _
      $region100: #{feature_extractor.1} parent=95 // pred_fallthru
        _
    $region96: #{feature_extractor.1} parent=5 // pred_fallthru
      _
    %p2676 = scmp.le.s32.totalorder 2, %s25
    // Predicated region
    $region101: #{feature_extractor.1} parent=5 // pred_check
      %p2677 = pneg %p2676
    $region102: #{feature_extractor.1} parent=5 // pred_check_branch
      %2679 = sbr.rel (%p2677) target = $region104
    $region103: #{feature_extractor.1} parent=5 // pred_region
      %s2680 = ssub.s32 %s25, 2
      // Predicated region
      $region105: #{feature_extractor.1} parent=103 // pred_check
        %p2681 = pneg %p458
      $region106: #{feature_extractor.1} parent=103 // pred_check_branch
        %2683 = sbr.rel (%p2681) target = $region108
      $region107: #{feature_extractor.1} parent=103 // pred_region
        %p2684 = scmp.lt.s32.totalorder %s31, 1
        %s2685 = scalar_select %p2684, %s31, 1
        %s2686 = smul.addr %s2685, 4
        %s2687 = scalar_lea.vmem %s19, %s2686
      $region108: #{feature_extractor.1} parent=103 // pred_fallthru
        _
    $region104: #{feature_extractor.1} parent=5 // pred_fallthru
      _
  $region6: #{feature_extractor.1} parent=0 // loop_footer
    %s29 = sadd.s32 1, %s25
  $region7: #{feature_extractor.1} parent=0 // loop_footer_branch
    %24 = sbr.rel target = $region3
  $region8: #{feature_extractor.1} parent=0 // loop_exit
    _

</llo_original>
